<compile_context>
chip_gen: v7x
topology: tpu7x:2x2x1
jax: 0.10.0
libtpu: 0.0.40
codegen_flags: <defaults>
</compile_context>

<pallas_src>
import functools

import jax
import jax.numpy as jnp
import numpy as np
from jax.experimental import pallas as pl
from jax.experimental.pallas import tpu as pltpu


# ---------------------------------------------------------------------------
# Fused Pallas kernel: both SchnetConv layers (cfconv message + product-reduce
# + block-diagonal IB_MLP) for one (dst-tile, src-tile) grid point.
# Grid: (i over dst tiles [parallel], j over src tiles [arbitrary/reduction]).
# ---------------------------------------------------------------------------
def _alignn_conv_kernel(h_src_ref, h_dst_ref, h_edge_ref, e_var_ref, adj_ref,
                        mu_ref, w_ref, b_ref, out_ref, prod_ref, deg_ref,
                        *, gamma, rc):
    j = pl.program_id(1)

    # init the per-dst-tile accumulators at the first source tile
    @pl.when(j == 0)
    def _():
        prod_ref[...] = jnp.ones(prod_ref.shape, jnp.float32)
        deg_ref[...] = jnp.zeros(deg_ref.shape, jnp.float32)

    mu = mu_ref[...].reshape(1, 1, -1).astype(jnp.float32)           # [1, 1, F]

    for g in range(2):   # static 2-iteration loop: g=0 radius graph, g=1 angle graph
        e = e_var_ref[g].astype(jnp.float32)                         # [TN, TS]
        adj = adj_ref[g].astype(jnp.float32)                         # [TN, TS]
        h_s = h_src_ref[g].astype(jnp.float32)                       # [TS, F]
        h_e = h_edge_ref[g].astype(jnp.float32)                      # [TN, TS, F]

        # SmoothCutoff (cosine): fc(x) = 0.5*(cos(pi*x/rc)+1) for x < rc, else 0.
        # Stored bf is rbf*cutoff and cfconv multiplies by cutoff again -> cutoff^2.
        cut = jnp.where(e < rc, 0.5 * (jnp.cos(jnp.pi * e / rc) + 1.0), 0.0)
        cut2 = (cut * cut)[:, :, None]                               # [TN, TS, 1]

        # Gaussian RBF over all edges of the tile at once (single EUP exp pass).
        bf = jnp.exp(-gamma * (e[:, :, None] - mu) ** 2)             # [TN, TS, F]

        # cfconv message; non-edges contribute the multiplicative identity.
        msg = h_s[None, :, :] * h_e * (bf * cut2)                    # [TN, TS, F]
        msg = jnp.where(adj[:, :, None] > 0.5, msg, 1.0)

        # product over this source tile: log2 halving tree (fully vectorized).
        tn, ts, f = msg.shape
        n_pad = 1 << (ts - 1).bit_length()                           # next power of two (static)
        if n_pad != ts:
            msg = jnp.concatenate(
                [msg, jnp.ones((tn, n_pad - ts, f), jnp.float32)], axis=1)
        while n_pad > 1:
            half = n_pad // 2
            msg = msg[:, :half, :] * msg[:, half:, :]
            n_pad = half

        # accumulate product / in-degree across source tiles
        prod_ref[g] = prod_ref[g] * msg[:, 0, :]
        deg_ref[g] = deg_ref[g] + jnp.sum(adj, axis=1, keepdims=True)

    # finalize after the last source tile: zero-in-degree fallback + IB_MLP
    @pl.when(j == pl.num_programs(1) - 1)
    def _():
        accs = []
        for g in range(2):
            h_d = h_dst_ref[g].astype(jnp.float32)                   # [TN, F]
            # DGL semantics: zero-in-degree dst nodes keep their original node feature.
            accs.append(jnp.where(deg_ref[g] > 0.5, prod_ref[g], h_d))
        acc = jnp.concatenate(accs, axis=-1)                         # [TN, 2F] (lane-dense)

        # IB_MLP (assumed Linear + softplus); block-diagonal weight -> one MXU matmul
        # serving both graphs and a 128-lane-dense output tile (unmasked stores).
        z = jnp.dot(acc, w_ref[...], preferred_element_type=jnp.float32) + b_ref[...]
        out_ref[...] = jax.nn.softplus(z)


# ---------------------------------------------------------------------------
# Wrapper: one pallas_call computes both graph convolutions.
# ---------------------------------------------------------------------------
def alignn_conv(radius_graph, angle_graph, params, rc, *, tile_n=None, tile_s=None):
    h_r, he_r, d_r, adj_r = radius_graph
    h_a, he_a, ang_a, adj_a = angle_graph
    n, f = h_r.shape
    assert h_a.shape == (n, f), "fused kernel packs both graphs along a leading axis"
    f_out = params["w_r"].shape[1]

    # stack the two graphs along a leading axis -> one kernel launch for both convs
    h_nodes = jnp.stack([h_r, h_a])        # [2, N, F]
    h_edge = jnp.stack([he_r, he_a])       # [2, N, N, F]
    e_var = jnp.stack([d_r, ang_a])        # [2, N, N]
    adj = jnp.stack([adj_r, adj_a])        # [2, N, N]

    # block-diagonal IB_MLP weight and concatenated bias: one [2F, 2F_out] matmul,
    # lane-dense [*, 2F_out] output (2F_out = 128 here).
    w_bd = jnp.zeros((2 * f, 2 * f_out), jnp.float32)
    w_bd = w_bd.at[:f, :f_out].set(params["w_r"])
    w_bd = w_bd.at[f:, f_out:].set(params["w_a"])
    b_cat = jnp.concatenate([params["b_r"], params["b_a"]], axis=-1)   # [1, 2F_out]

    if tile_n is None:
        tile_n = min(n, 128)   # dst tile: single grid step at small N; 128 rows at scale
    if tile_s is None:
        tile_s = min(n, 128)   # src tile: streamed via the 'arbitrary' reduction axis
    assert n % tile_n == 0 and n % tile_s == 0

    kernel = functools.partial(_alignn_conv_kernel,
                               gamma=float(params["gamma"]), rc=float(rc))
    out = pl.pallas_call(
        kernel,
        out_shape=jax.ShapeDtypeStruct((n, 2 * f_out), jnp.float32),
        grid_spec=pltpu.PrefetchScalarGridSpec(
            num_scalar_prefetch=0,
            grid=(n // tile_n, n // tile_s),
            in_specs=[
                pl.BlockSpec((2, tile_s, f), lambda i, j: (0, j, 0)),            # src node feats (src tile)
                pl.BlockSpec((2, tile_n, f), lambda i, j: (0, i, 0)),            # dst node feats (dst tile)
                pl.BlockSpec((2, tile_n, tile_s, f), lambda i, j: (0, i, j, 0)),  # edge feats tile
                pl.BlockSpec((2, tile_n, tile_s), lambda i, j: (0, i, j)),        # edge scalar (d / angle)
                pl.BlockSpec((2, tile_n, tile_s), lambda i, j: (0, i, j)),        # adjacency mask
                pl.BlockSpec((1, f), lambda i, j: (0, 0)),                        # RBF centers
                pl.BlockSpec((2 * f, 2 * f_out), lambda i, j: (0, 0)),            # block-diag IB_MLP weight
                pl.BlockSpec((1, 2 * f_out), lambda i, j: (0, 0)),                # IB_MLP bias (concat)
            ],
            out_specs=pl.BlockSpec((tile_n, 2 * f_out), lambda i, j: (i, 0)),
            scratch_shapes=[
                pltpu.VMEM((2, tile_n, f), jnp.float32),   # running product accumulator
                pltpu.VMEM((2, tile_n, 1), jnp.float32),   # running in-degree accumulator
            ],
        ),
        compiler_params=pltpu.CompilerParams(
            dimension_semantics=("parallel", "arbitrary")),
    )(h_nodes, h_nodes, h_edge, e_var, adj, params["mu"], w_bd, b_cat)

    return out[:, :f_out], out[:, f_out:]


# ---------------------------------------------------------------------------
# Pure-JAX reference (same math, vectorized) for a correctness check
# ---------------------------------------------------------------------------
def schnet_conv_ref(h_nodes, h_edge, e_var, adj, mu, gamma, rc, w, b):
    cut = jnp.where(e_var < rc, 0.5 * (jnp.cos(jnp.pi * e_var / rc) + 1.0), 0.0)
    bf = jnp.exp(-gamma * (e_var[:, :, None] - mu.reshape(1, 1, -1)) ** 2)
    msg = h_nodes[None, :, :] * h_edge * bf * (cut * cut)[:, :, None]
    msg = jnp.where(adj[:, :, None] > 0.5, msg, 1.0)
    prod = jnp.prod(msg, axis=1)
    deg = jnp.sum(adj, axis=1, keepdims=True)
    h_new = jnp.where(deg > 0.5, prod, h_nodes)   # zero-in-degree keeps original h
    return jax.nn.softplus(h_new @ w + b)


if __name__ == "__main__":
    # small, AlignnConv-consistent sizes: in_feats == out_feats == radial_feats == 64
    F = 64          # in_feats (== radial_feats == out_feats)
    F_OUT = 64
    RC = 5.0        # in_range = (0.0, 5.0), cutoff=True
    R_MIN, R_MAX = 0.0, RC

    key = jax.random.PRNGKey(0)
    keys = jax.random.split(key, 16)

    # --- deterministic parameters (shared by both test sizes) ---
    mu = jnp.linspace(R_MIN, R_MAX, F, dtype=jnp.float32).reshape(1, F)   # RBF centers
    delta = (R_MAX - R_MIN) / (F - 1)
    gamma = 1.0 / (delta * delta)
    params = {
        "mu": mu,
        "gamma": gamma,
        "w_r": jax.random.normal(keys[8], (F, F_OUT), jnp.float32) * (1.0 / np.sqrt(F)),
        "b_r": jax.random.normal(keys[9], (1, F_OUT), jnp.float32) * 0.1,
        "w_a": jax.random.normal(keys[10], (F, F_OUT), jnp.float32) * (1.0 / np.sqrt(F)),
        "b_a": jax.random.normal(keys[11], (1, F_OUT), jnp.float32) * 0.1,
    }

    def check(radius_graph, angle_graph, rtol, atol, **kw):
        v, e = alignn_conv(radius_graph, angle_graph, params, RC, **kw)
        v = jax.block_until_ready(v)
        e = jax.block_until_ready(e)
        v_ref = schnet_conv_ref(*radius_graph, params["mu"], params["gamma"], RC,
                                params["w_r"], params["b_r"])
        e_ref = schnet_conv_ref(*angle_graph, params["mu"], params["gamma"], RC,
                                params["w_a"], params["b_a"])
        np.testing.assert_allclose(np.asarray(v), np.asarray(v_ref), rtol=rtol, atol=atol)
        np.testing.assert_allclose(np.asarray(e), np.asarray(e_ref), rtol=rtol, atol=atol)

    # --- test 1: demo size (N=16, single grid point) -----------------------
    N = 16

    def make_graph_small(kh, khe, ke, ka, scalar_max):
        h_nodes = jax.random.normal(kh, (N, F), jnp.float32)
        h_edge = jax.random.normal(khe, (N, N, F), jnp.float32)
        e_var = jax.random.uniform(ke, (N, N), jnp.float32, 0.1, scalar_max)
        adj = (jax.random.uniform(ka, (N, N), jnp.float32) < 0.3).astype(jnp.float32)
        idx = jnp.arange(1, N)
        adj = adj.at[idx, (idx + 1) % N].set(1.0)   # dsts 1..N-1 have >= 1 incoming edge
        adj = adj.at[0, :].set(0.0)                 # dst 0 isolated: exercises zero-in-degree path
        return h_nodes, h_edge, e_var, adj

    radius_graph = make_graph_small(keys[0], keys[1], keys[2], keys[3], RC)            # edata['d']
    angle_graph = make_graph_small(keys[4], keys[5], keys[6], keys[7], float(np.pi))   # edata['angle']
    check(radius_graph, angle_graph, rtol=1e-4, atol=1e-5)

    # --- test 2: larger size (N=256, grid (2,2)) exercising the tiled
    #             source-axis reduction / accumulator path -------------------
    NB = 256

    def make_graph_big(kh, khe, ke, scalar_max):
        h_nodes = jax.random.normal(kh, (NB, F), jnp.float32)
        h_edge = jax.random.normal(khe, (NB, NB, F), jnp.float32)
        e_var = jax.random.uniform(ke, (NB, NB), jnp.float32, 0.1, scalar_max)
        adj = jnp.zeros((NB, NB), jnp.float32)
        idx = jnp.arange(1, NB)
        adj = adj.at[idx, (idx * 7 + 3) % NB].set(1.0)     # edges land in both src tiles
        adj = adj.at[idx, (idx * 13 + 131) % NB].set(1.0)
        return h_nodes, h_edge, e_var, adj                 # dst 0 isolated (zero-in-degree)

    radius_graph_b = make_graph_big(keys[12], keys[13], keys[14], RC)
    angle_graph_b = make_graph_big(keys[15], keys[13], keys[14], float(np.pi))
    check(radius_graph_b, angle_graph_b, rtol=1e-3, atol=1e-5, tile_n=128, tile_s=128)

    print("KERNEL_OK")
</pallas_src>

<mosaic_0001>
module attributes {stable_mosaic.version = 11 : i64} {
  func.func @_alignn_conv_kernel(%arg0: i32, %arg1: i32, %arg2: memref<2x16x64xf32, #tpu.memory_space<vmem>>, %arg3: memref<2x16x64xf32, #tpu.memory_space<vmem>>, %arg4: memref<2x16x16x64xf32, #tpu.memory_space<vmem>>, %arg5: memref<2x16x16xf32, #tpu.memory_space<vmem>>, %arg6: memref<2x16x16xf32, #tpu.memory_space<vmem>>, %arg7: memref<1x64xf32, #tpu.memory_space<vmem>>, %arg8: memref<128x128xf32, #tpu.memory_space<vmem>>, %arg9: memref<1x128xf32, #tpu.memory_space<vmem>>, %arg10: memref<16x128xf32, #tpu.memory_space<vmem>>, %arg11: memref<2x16x64xf32, #tpu.memory_space<vmem>>, %arg12: memref<2x16x1xf32, #tpu.memory_space<vmem>>) attributes {dimension_semantics = [#tpu.dimension_semantics<parallel>, #tpu.dimension_semantics<arbitrary>], iteration_bounds = array<i64: 1, 1>, scalar_prefetch = 0 : i64, scratch_operands = 2 : i64, tpu.core_type = #tpu.core_type<tc>, window_params = [{transform_indices = @transform_0, window_bounds = array<i64: 2, 16, 64>}, {transform_indices = @transform_1, window_bounds = array<i64: 2, 16, 64>}, {transform_indices = @transform_2, window_bounds = array<i64: 2, 16, 16, 64>}, {transform_indices = @transform_3, window_bounds = array<i64: 2, 16, 16>}, {transform_indices = @transform_4, window_bounds = array<i64: 2, 16, 16>}, {pipeline_mode = #tpu.pipeline_mode<synchronous>, transform_indices = @transform_5, window_bounds = array<i64: 1, 64>}, {pipeline_mode = #tpu.pipeline_mode<synchronous>, transform_indices = @transform_6, window_bounds = array<i64: 128, 128>}, {pipeline_mode = #tpu.pipeline_mode<synchronous>, transform_indices = @transform_7, window_bounds = array<i64: 1, 128>}, {transform_indices = @transform_8, window_bounds = array<i64: 16, 128>}]} {
    %c0_i32 = arith.constant 0 : i32
    %0 = arith.cmpi eq, %arg1, %c0_i32 : i32
    %1 = arith.extui %0 : i1 to i32
    %c0_i32_0 = arith.constant 0 : i32
    %2 = arith.cmpi ne, %1, %c0_i32_0 : i32
    scf.if %2 {
      %cst_72 = arith.constant 1.000000e+00 : f32
      %150 = vector.broadcast %cst_72 : f32 to vector<2x16x64xf32>
      %c0_73 = arith.constant 0 : index
      %c0_74 = arith.constant 0 : index
      %c0_75 = arith.constant 0 : index
      %151 = vector.load %arg11[%c0_73, %c0_74, %c0_75] : memref<2x16x64xf32, #tpu.memory_space<vmem>>, vector<2x16x64xf32>
      tpu.vector_store %arg11[%c0_73, %c0_74, %c0_75], %150 {strides = array<i32>} : memref<2x16x64xf32, #tpu.memory_space<vmem>>, vector<2x16x64xf32>,
      %cst_76 = arith.constant 0.000000e+00 : f32
      %152 = vector.broadcast %cst_76 : f32 to vector<2x16x1xf32>
      %c0_77 = arith.constant 0 : index
      %c0_78 = arith.constant 0 : index
      %c0_79 = arith.constant 0 : index
      %153 = vector.load %arg12[%c0_77, %c0_78, %c0_79] : memref<2x16x1xf32, #tpu.memory_space<vmem>>, vector<2x16x1xf32>
      tpu.vector_store %arg12[%c0_77, %c0_78, %c0_79], %152 {strides = array<i32>} : memref<2x16x1xf32, #tpu.memory_space<vmem>>, vector<2x16x1xf32>,
    } else {
    }
    %c0 = arith.constant 0 : index
    %c0_1 = arith.constant 0 : index
    %3 = vector.load %arg7[%c0, %c0_1] : memref<1x64xf32, #tpu.memory_space<vmem>>, vector<1x64xf32>
    %4 = vector.shape_cast %3 : vector<1x64xf32> to vector<1x1x64xf32>
    %c0_2 = arith.constant 0 : index
    %c0_3 = arith.constant 0 : index
    %c0_4 = arith.constant 0 : index
    %5 = vector.load %arg5[%c0_2, %c0_3, %c0_4] : memref<2x16x16xf32, #tpu.memory_space<vmem>>, vector<1x16x16xf32>
    %6 = vector.shape_cast %5 : vector<1x16x16xf32> to vector<16x16xf32>
    %c0_5 = arith.constant 0 : index
    %c0_6 = arith.constant 0 : index
    %c0_7 = arith.constant 0 : index
    %7 = vector.load %arg6[%c0_5, %c0_6, %c0_7] : memref<2x16x16xf32, #tpu.memory_space<vmem>>, vector<1x16x16xf32>
    %8 = vector.shape_cast %7 : vector<1x16x16xf32> to vector<16x16xf32>
    %c0_8 = arith.constant 0 : index
    %c0_9 = arith.constant 0 : index
    %c0_10 = arith.constant 0 : index
    %9 = vector.load %arg2[%c0_8, %c0_9, %c0_10] : memref<2x16x64xf32, #tpu.memory_space<vmem>>, vector<1x16x64xf32>
    %10 = vector.shape_cast %9 : vector<1x16x64xf32> to vector<16x64xf32>
    %c0_11 = arith.constant 0 : index
    %c0_12 = arith.constant 0 : index
    %c0_13 = arith.constant 0 : index
    %c0_14 = arith.constant 0 : index
    %11 = vector.load %arg4[%c0_11, %c0_12, %c0_13, %c0_14] : memref<2x16x16x64xf32, #tpu.memory_space<vmem>>, vector<1x16x16x64xf32>
    %12 = vector.shape_cast %11 : vector<1x16x16x64xf32> to vector<16x16x64xf32>
    %cst = arith.constant 5.000000e+00 : f32
    %13 = vector.broadcast %cst : f32 to vector<16x16xf32>
    %14 = arith.cmpf olt, %6, %13 : vector<16x16xf32>
    %cst_15 = arith.constant 3.14159274 : f32
    %15 = vector.broadcast %cst_15 : f32 to vector<16x16xf32>
    %16 = arith.mulf %15, %6 : vector<16x16xf32>
    %cst_16 = arith.constant 5.000000e+00 : f32
    %17 = vector.broadcast %cst_16 : f32 to vector<16x16xf32>
    %18 = arith.divf %16, %17 : vector<16x16xf32>
    %19 = math.cos %18 : vector<16x16xf32>
    %cst_17 = arith.constant 1.000000e+00 : f32
    %20 = vector.broadcast %cst_17 : f32 to vector<16x16xf32>
    %21 = arith.addf %19, %20 : vector<16x16xf32>
    %cst_18 = arith.constant 5.000000e-01 : f32
    %22 = vector.broadcast %cst_18 : f32 to vector<16x16xf32>
    %23 = arith.mulf %22, %21 : vector<16x16xf32>
    %cst_19 = arith.constant 0.000000e+00 : f32
    %24 = vector.broadcast %cst_19 : f32 to vector<16x16xf32>
    %25 = arith.select %14, %23, %24 : vector<16x16xi1>, vector<16x16xf32>
    %26 = arith.mulf %25, %25 : vector<16x16xf32>
    %27 = vector.shape_cast %26 : vector<16x16xf32> to vector<16x16x1xf32>
    %28 = vector.shape_cast %6 : vector<16x16xf32> to vector<16x16x1xf32>
    %29 = vector.broadcast %28 : vector<16x16x1xf32> to vector<16x16x64xf32>
    %30 = vector.broadcast %4 : vector<1x1x64xf32> to vector<16x16x64xf32>
    %31 = arith.subf %29, %30 : vector<16x16x64xf32>
    %32 = arith.mulf %31, %31 : vector<16x16x64xf32>
    %cst_20 = arith.constant -1.587600e+02 : f32
    %33 = vector.broadcast %cst_20 : f32 to vector<16x16x64xf32>
    %34 = arith.mulf %33, %32 : vector<16x16x64xf32>
    %35 = math.exp %34 : vector<16x16x64xf32>
    %36 = vector.shape_cast %10 : vector<16x64xf32> to vector<1x16x64xf32>
    %37 = vector.broadcast %36 : vector<1x16x64xf32> to vector<16x16x64xf32>
    %38 = arith.mulf %37, %12 : vector<16x16x64xf32>
    %39 = vector.broadcast %27 : vector<16x16x1xf32> to vector<16x16x64xf32>
    %40 = arith.mulf %35, %39 : vector<16x16x64xf32>
    %41 = arith.mulf %38, %40 : vector<16x16x64xf32>
    %42 = vector.shape_cast %8 : vector<16x16xf32> to vector<16x16x1xf32>
    %cst_21 = arith.constant 5.000000e-01 : f32
    %43 = vector.broadcast %cst_21 : f32 to vector<16x16x1xf32>
    %44 = arith.cmpf ogt, %42, %43 : vector<16x16x1xf32>
    %cst_22 = arith.constant 1.000000e+00 : f32
    %45 = vector.shape_cast %44 : vector<16x16x1xi1> to vector<16x16x1xi1>
    %46 = vector.broadcast %45 : vector<16x16x1xi1> to vector<16x16x64xi1>
    %47 = vector.broadcast %cst_22 : f32 to vector<16x16x64xf32>
    %48 = arith.select %46, %41, %47 : vector<16x16x64xi1>, vector<16x16x64xf32>
    %49 = vector.extract_strided_slice %48 {offsets = [0, 0, 0], sizes = [16, 8, 64], strides = [1, 1, 1]} : vector<16x16x64xf32> to vector<16x8x64xf32>
    %50 = vector.extract_strided_slice %48 {offsets = [0, 8, 0], sizes = [16, 8, 64], strides = [1, 1, 1]} : vector<16x16x64xf32> to vector<16x8x64xf32>
    %51 = arith.mulf %49, %50 : vector<16x8x64xf32>
    %52 = vector.extract_strided_slice %51 {offsets = [0, 0, 0], sizes = [16, 4, 64], strides = [1, 1, 1]} : vector<16x8x64xf32> to vector<16x4x64xf32>
    %53 = vector.extract_strided_slice %51 {offsets = [0, 4, 0], sizes = [16, 4, 64], strides = [1, 1, 1]} : vector<16x8x64xf32> to vector<16x4x64xf32>
    %54 = arith.mulf %52, %53 : vector<16x4x64xf32>
    %55 = vector.extract_strided_slice %54 {offsets = [0, 0, 0], sizes = [16, 2, 64], strides = [1, 1, 1]} : vector<16x4x64xf32> to vector<16x2x64xf32>
    %56 = vector.extract_strided_slice %54 {offsets = [0, 2, 0], sizes = [16, 2, 64], strides = [1, 1, 1]} : vector<16x4x64xf32> to vector<16x2x64xf32>
    %57 = arith.mulf %55, %56 : vector<16x2x64xf32>
    %58 = vector.extract_strided_slice %57 {offsets = [0, 0, 0], sizes = [16, 1, 64], strides = [1, 1, 1]} : vector<16x2x64xf32> to vector<16x1x64xf32>
    %59 = vector.extract_strided_slice %57 {offsets = [0, 1, 0], sizes = [16, 1, 64], strides = [1, 1, 1]} : vector<16x2x64xf32> to vector<16x1x64xf32>
    %60 = arith.mulf %58, %59 : vector<16x1x64xf32>
    %c0_23 = arith.constant 0 : index
    %c0_24 = arith.constant 0 : index
    %c0_25 = arith.constant 0 : index
    %61 = vector.load %arg11[%c0_23, %c0_24, %c0_25] : memref<2x16x64xf32, #tpu.memory_space<vmem>>, vector<1x16x64xf32>
    %62 = vector.shape_cast %61 : vector<1x16x64xf32> to vector<16x64xf32>
    %63 = vector.shape_cast %60 : vector<16x1x64xf32> to vector<16x64xf32>
    %64 = arith.mulf %62, %63 : vector<16x64xf32>
    %c0_26 = arith.constant 0 : index
    %c0_27 = arith.constant 0 : index
    %c0_28 = arith.constant 0 : index
    %65 = vector.load %arg11[%c0_26, %c0_27, %c0_28] : memref<2x16x64xf32, #tpu.memory_space<vmem>>, vector<1x16x64xf32>
    %66 = vector.shape_cast %65 : vector<1x16x64xf32> to vector<16x64xf32>
    %67 = vector.shape_cast %64 : vector<16x64xf32> to vector<1x16x64xf32>
    tpu.vector_store %arg11[%c0_26, %c0_27, %c0_28], %67 {strides = array<i32>} : memref<2x16x64xf32, #tpu.memory_space<vmem>>, vector<1x16x64xf32>,
    %c0_29 = arith.constant 0 : index
    %c0_30 = arith.constant 0 : index
    %c0_31 = arith.constant 0 : index
    %68 = vector.load %arg12[%c0_29, %c0_30, %c0_31] : memref<2x16x1xf32, #tpu.memory_space<vmem>>, vector<1x16x1xf32>
    %69 = vector.shape_cast %68 : vector<1x16x1xf32> to vector<16x1xf32>
    %cst_32 = arith.constant dense<0.000000e+00> : vector<16xf32>
    %70 = vector.multi_reduction <add>, %8, %cst_32 [1] : vector<16x16xf32> to vector<16xf32>
    %71 = vector.shape_cast %70 : vector<16xf32> to vector<16x1xf32>
    %72 = arith.addf %69, %71 : vector<16x1xf32>
    %c0_33 = arith.constant 0 : index
    %c0_34 = arith.constant 0 : index
    %c0_35 = arith.constant 0 : index
    %73 = vector.load %arg12[%c0_33, %c0_34, %c0_35] : memref<2x16x1xf32, #tpu.memory_space<vmem>>, vector<1x16x1xf32>
    %74 = vector.shape_cast %73 : vector<1x16x1xf32> to vector<16x1xf32>
    %75 = vector.shape_cast %72 : vector<16x1xf32> to vector<1x16x1xf32>
    tpu.vector_store %arg12[%c0_33, %c0_34, %c0_35], %75 {strides = array<i32>} : memref<2x16x1xf32, #tpu.memory_space<vmem>>, vector<1x16x1xf32>,
    %c1 = arith.constant 1 : index
    %c0_36 = arith.constant 0 : index
    %c0_37 = arith.constant 0 : index
    %76 = vector.load %arg5[%c1, %c0_36, %c0_37] : memref<2x16x16xf32, #tpu.memory_space<vmem>>, vector<1x16x16xf32>
    %77 = vector.shape_cast %76 : vector<1x16x16xf32> to vector<16x16xf32>
    %c1_38 = arith.constant 1 : index
    %c0_39 = arith.constant 0 : index
    %c0_40 = arith.constant 0 : index
    %78 = vector.load %arg6[%c1_38, %c0_39, %c0_40] : memref<2x16x16xf32, #tpu.memory_space<vmem>>, vector<1x16x16xf32>
    %79 = vector.shape_cast %78 : vector<1x16x16xf32> to vector<16x16xf32>
    %c1_41 = arith.constant 1 : index
    %c0_42 = arith.constant 0 : index
    %c0_43 = arith.constant 0 : index
    %80 = vector.load %arg2[%c1_41, %c0_42, %c0_43] : memref<2x16x64xf32, #tpu.memory_space<vmem>>, vector<1x16x64xf32>
    %81 = vector.shape_cast %80 : vector<1x16x64xf32> to vector<16x64xf32>
    %c1_44 = arith.constant 1 : index
    %c0_45 = arith.constant 0 : index
    %c0_46 = arith.constant 0 : index
    %c0_47 = arith.constant 0 : index
    %82 = vector.load %arg4[%c1_44, %c0_45, %c0_46, %c0_47] : memref<2x16x16x64xf32, #tpu.memory_space<vmem>>, vector<1x16x16x64xf32>
    %83 = vector.shape_cast %82 : vector<1x16x16x64xf32> to vector<16x16x64xf32>
    %cst_48 = arith.constant 5.000000e+00 : f32
    %84 = vector.broadcast %cst_48 : f32 to vector<16x16xf32>
    %85 = arith.cmpf olt, %77, %84 : vector<16x16xf32>
    %cst_49 = arith.constant 3.14159274 : f32
    %86 = vector.broadcast %cst_49 : f32 to vector<16x16xf32>
    %87 = arith.mulf %86, %77 : vector<16x16xf32>
    %cst_50 = arith.constant 5.000000e+00 : f32
    %88 = vector.broadcast %cst_50 : f32 to vector<16x16xf32>
    %89 = arith.divf %87, %88 : vector<16x16xf32>
    %90 = math.cos %89 : vector<16x16xf32>
    %cst_51 = arith.constant 1.000000e+00 : f32
    %91 = vector.broadcast %cst_51 : f32 to vector<16x16xf32>
    %92 = arith.addf %90, %91 : vector<16x16xf32>
    %cst_52 = arith.constant 5.000000e-01 : f32
    %93 = vector.broadcast %cst_52 : f32 to vector<16x16xf32>
    %94 = arith.mulf %93, %92 : vector<16x16xf32>
    %cst_53 = arith.constant 0.000000e+00 : f32
    %95 = vector.broadcast %cst_53 : f32 to vector<16x16xf32>
    %96 = arith.select %85, %94, %95 : vector<16x16xi1>, vector<16x16xf32>
    %97 = arith.mulf %96, %96 : vector<16x16xf32>
    %98 = vector.shape_cast %97 : vector<16x16xf32> to vector<16x16x1xf32>
    %99 = vector.shape_cast %77 : vector<16x16xf32> to vector<16x16x1xf32>
    %100 = vector.broadcast %99 : vector<16x16x1xf32> to vector<16x16x64xf32>
    %101 = vector.broadcast %4 : vector<1x1x64xf32> to vector<16x16x64xf32>
    %102 = arith.subf %100, %101 : vector<16x16x64xf32>
    %103 = arith.mulf %102, %102 : vector<16x16x64xf32>
    %cst_54 = arith.constant -1.587600e+02 : f32
    %104 = vector.broadcast %cst_54 : f32 to vector<16x16x64xf32>
    %105 = arith.mulf %104, %103 : vector<16x16x64xf32>
    %106 = math.exp %105 : vector<16x16x64xf32>
    %107 = vector.shape_cast %81 : vector<16x64xf32> to vector<1x16x64xf32>
    %108 = vector.broadcast %107 : vector<1x16x64xf32> to vector<16x16x64xf32>
    %109 = arith.mulf %108, %83 : vector<16x16x64xf32>
    %110 = vector.broadcast %98 : vector<16x16x1xf32> to vector<16x16x64xf32>
    %111 = arith.mulf %106, %110 : vector<16x16x64xf32>
    %112 = arith.mulf %109, %111 : vector<16x16x64xf32>
    %113 = vector.shape_cast %79 : vector<16x16xf32> to vector<16x16x1xf32>
    %cst_55 = arith.constant 5.000000e-01 : f32
    %114 = vector.broadcast %cst_55 : f32 to vector<16x16x1xf32>
    %115 = arith.cmpf ogt, %113, %114 : vector<16x16x1xf32>
    %cst_56 = arith.constant 1.000000e+00 : f32
    %116 = vector.shape_cast %115 : vector<16x16x1xi1> to vector<16x16x1xi1>
    %117 = vector.broadcast %116 : vector<16x16x1xi1> to vector<16x16x64xi1>
    %118 = vector.broadcast %cst_56 : f32 to vector<16x16x64xf32>
    %119 = arith.select %117, %112, %118 : vector<16x16x64xi1>, vector<16x16x64xf32>
    %120 = vector.extract_strided_slice %119 {offsets = [0, 0, 0], sizes = [16, 8, 64], strides = [1, 1, 1]} : vector<16x16x64xf32> to vector<16x8x64xf32>
    %121 = vector.extract_strided_slice %119 {offsets = [0, 8, 0], sizes = [16, 8, 64], strides = [1, 1, 1]} : vector<16x16x64xf32> to vector<16x8x64xf32>
    %122 = arith.mulf %120, %121 : vector<16x8x64xf32>
    %123 = vector.extract_strided_slice %122 {offsets = [0, 0, 0], sizes = [16, 4, 64], strides = [1, 1, 1]} : vector<16x8x64xf32> to vector<16x4x64xf32>
    %124 = vector.extract_strided_slice %122 {offsets = [0, 4, 0], sizes = [16, 4, 64], strides = [1, 1, 1]} : vector<16x8x64xf32> to vector<16x4x64xf32>
    %125 = arith.mulf %123, %124 : vector<16x4x64xf32>
    %126 = vector.extract_strided_slice %125 {offsets = [0, 0, 0], sizes = [16, 2, 64], strides = [1, 1, 1]} : vector<16x4x64xf32> to vector<16x2x64xf32>
    %127 = vector.extract_strided_slice %125 {offsets = [0, 2, 0], sizes = [16, 2, 64], strides = [1, 1, 1]} : vector<16x4x64xf32> to vector<16x2x64xf32>
    %128 = arith.mulf %126, %127 : vector<16x2x64xf32>
    %129 = vector.extract_strided_slice %128 {offsets = [0, 0, 0], sizes = [16, 1, 64], strides = [1, 1, 1]} : vector<16x2x64xf32> to vector<16x1x64xf32>
    %130 = vector.extract_strided_slice %128 {offsets = [0, 1, 0], sizes = [16, 1, 64], strides = [1, 1, 1]} : vector<16x2x64xf32> to vector<16x1x64xf32>
    %131 = arith.mulf %129, %130 : vector<16x1x64xf32>
    %c1_57 = arith.constant 1 : index
    %c0_58 = arith.constant 0 : index
    %c0_59 = arith.constant 0 : index
    %132 = vector.load %arg11[%c1_57, %c0_58, %c0_59] : memref<2x16x64xf32, #tpu.memory_space<vmem>>, vector<1x16x64xf32>
    %133 = vector.shape_cast %132 : vector<1x16x64xf32> to vector<16x64xf32>
    %134 = vector.shape_cast %131 : vector<16x1x64xf32> to vector<16x64xf32>
    %135 = arith.mulf %133, %134 : vector<16x64xf32>
    %c1_60 = arith.constant 1 : index
    %c0_61 = arith.constant 0 : index
    %c0_62 = arith.constant 0 : index
    %136 = vector.load %arg11[%c1_60, %c0_61, %c0_62] : memref<2x16x64xf32, #tpu.memory_space<vmem>>, vector<1x16x64xf32>
    %137 = vector.shape_cast %136 : vector<1x16x64xf32> to vector<16x64xf32>
    %138 = vector.shape_cast %135 : vector<16x64xf32> to vector<1x16x64xf32>
    tpu.vector_store %arg11[%c1_60, %c0_61, %c0_62], %138 {strides = array<i32>} : memref<2x16x64xf32, #tpu.memory_space<vmem>>, vector<1x16x64xf32>,
    %c1_63 = arith.constant 1 : index
    %c0_64 = arith.constant 0 : index
    %c0_65 = arith.constant 0 : index
    %139 = vector.load %arg12[%c1_63, %c0_64, %c0_65] : memref<2x16x1xf32, #tpu.memory_space<vmem>>, vector<1x16x1xf32>
    %140 = vector.shape_cast %139 : vector<1x16x1xf32> to vector<16x1xf32>
    %cst_66 = arith.constant dense<0.000000e+00> : vector<16xf32>
    %141 = vector.multi_reduction <add>, %79, %cst_66 [1] : vector<16x16xf32> to vector<16xf32>
    %142 = vector.shape_cast %141 : vector<16xf32> to vector<16x1xf32>
    %143 = arith.addf %140, %142 : vector<16x1xf32>
    %c1_67 = arith.constant 1 : index
    %c0_68 = arith.constant 0 : index
    %c0_69 = arith.constant 0 : index
    %144 = vector.load %arg12[%c1_67, %c0_68, %c0_69] : memref<2x16x1xf32, #tpu.memory_space<vmem>>, vector<1x16x1xf32>
    %145 = vector.shape_cast %144 : vector<1x16x1xf32> to vector<16x1xf32>
    %146 = vector.shape_cast %143 : vector<16x1xf32> to vector<1x16x1xf32>
    tpu.vector_store %arg12[%c1_67, %c0_68, %c0_69], %146 {strides = array<i32>} : memref<2x16x1xf32, #tpu.memory_space<vmem>>, vector<1x16x1xf32>,
    %c0_i32_70 = arith.constant 0 : i32
    %147 = arith.cmpi eq, %arg1, %c0_i32_70 : i32
    %148 = arith.extui %147 : i1 to i32
    %c0_i32_71 = arith.constant 0 : i32
    %149 = arith.cmpi ne, %148, %c0_i32_71 : i32
    scf.if %149 {
      %c0_72 = arith.constant 0 : index
      %c0_73 = arith.constant 0 : index
      %c0_74 = arith.constant 0 : index
      %150 = vector.load %arg3[%c0_72, %c0_73, %c0_74] : memref<2x16x64xf32, #tpu.memory_space<vmem>>, vector<1x16x64xf32>
      %151 = vector.shape_cast %150 : vector<1x16x64xf32> to vector<16x64xf32>
      %c0_75 = arith.constant 0 : index
      %c0_76 = arith.constant 0 : index
      %c0_77 = arith.constant 0 : index
      %152 = vector.load %arg12[%c0_75, %c0_76, %c0_77] : memref<2x16x1xf32, #tpu.memory_space<vmem>>, vector<1x16x1xf32>
      %153 = vector.shape_cast %152 : vector<1x16x1xf32> to vector<16x1xf32>
      %cst_78 = arith.constant 5.000000e-01 : f32
      %154 = vector.broadcast %cst_78 : f32 to vector<16x1xf32>
      %155 = arith.cmpf ogt, %153, %154 : vector<16x1xf32>
      %c0_79 = arith.constant 0 : index
      %c0_80 = arith.constant 0 : index
      %c0_81 = arith.constant 0 : index
      %156 = vector.load %arg11[%c0_79, %c0_80, %c0_81] : memref<2x16x64xf32, #tpu.memory_space<vmem>>, vector<1x16x64xf32>
      %157 = vector.shape_cast %156 : vector<1x16x64xf32> to vector<16x64xf32>
      %158 = vector.shape_cast %155 : vector<16x1xi1> to vector<16x1xi1>
      %159 = vector.broadcast %158 : vector<16x1xi1> to vector<16x64xi1>
      %160 = arith.select %159, %157, %151 : vector<16x64xi1>, vector<16x64xf32>
      %c1_82 = arith.constant 1 : index
      %c0_83 = arith.constant 0 : index
      %c0_84 = arith.constant 0 : index
      %161 = vector.load %arg3[%c1_82, %c0_83, %c0_84] : memref<2x16x64xf32, #tpu.memory_space<vmem>>, vector<1x16x64xf32>
      %162 = vector.shape_cast %161 : vector<1x16x64xf32> to vector<16x64xf32>
      %c1_85 = arith.constant 1 : index
      %c0_86 = arith.constant 0 : index
      %c0_87 = arith.constant 0 : index
      %163 = vector.load %arg12[%c1_85, %c0_86, %c0_87] : memref<2x16x1xf32, #tpu.memory_space<vmem>>, vector<1x16x1xf32>
      %164 = vector.shape_cast %163 : vector<1x16x1xf32> to vector<16x1xf32>
      %cst_88 = arith.constant 5.000000e-01 : f32
      %165 = vector.broadcast %cst_88 : f32 to vector<16x1xf32>
      %166 = arith.cmpf ogt, %164, %165 : vector<16x1xf32>
      %c1_89 = arith.constant 1 : index
      %c0_90 = arith.constant 0 : index
      %c0_91 = arith.constant 0 : index
      %167 = vector.load %arg11[%c1_89, %c0_90, %c0_91] : memref<2x16x64xf32, #tpu.memory_space<vmem>>, vector<1x16x64xf32>
      %168 = vector.shape_cast %167 : vector<1x16x64xf32> to vector<16x64xf32>
      %169 = vector.shape_cast %166 : vector<16x1xi1> to vector<16x1xi1>
      %170 = vector.broadcast %169 : vector<16x1xi1> to vector<16x64xi1>
      %171 = arith.select %170, %168, %162 : vector<16x64xi1>, vector<16x64xf32>
      %172 = tpu.concatenate %160, %171 in 1 : vector<16x64xf32>, vector<16x64xf32> -> vector<16x128xf32>
      %c0_92 = arith.constant 0 : index
      %c0_93 = arith.constant 0 : index
      %173 = vector.load %arg8[%c0_92, %c0_93] : memref<128x128xf32, #tpu.memory_space<vmem>>, vector<128x128xf32>
      %cst_94 = arith.constant dense<0.000000e+00> : vector<16x128xf32>
      %174 = tpu.matmul %172, %173, %cst_94 {dimension_numbers = #tpu.dot_dimension_numbers<[1], [0], [0], [1], [0, 0, 1, 1], [], []>} : vector<16x128xf32>, vector<128x128xf32>, vector<16x128xf32> -> vector<16x128xf32>
      %c0_95 = arith.constant 0 : index
      %c0_96 = arith.constant 0 : index
      %175 = vector.load %arg9[%c0_95, %c0_96] : memref<1x128xf32, #tpu.memory_space<vmem>>, vector<1x128xf32>
      %176 = vector.broadcast %175 : vector<1x128xf32> to vector<16x128xf32>
      %177 = arith.addf %174, %176 : vector<16x128xf32>
      %cst_97 = arith.constant 0.000000e+00 : f32
      %178 = vector.broadcast %cst_97 : f32 to vector<16x128xf32>
      %179 = arith.maximumf %177, %178 : vector<16x128xf32>
      %180 = vector.broadcast %cst_97 : f32 to vector<16x128xf32>
      %181 = arith.subf %177, %180 : vector<16x128xf32>
      %182 = arith.cmpf one, %181, %181 : vector<16x128xf32>
      %183 = vector.broadcast %cst_97 : f32 to vector<16x128xf32>
      %184 = arith.addf %177, %183 : vector<16x128xf32>
      %185 = math.absf %181 : vector<16x128xf32>
      %cst_98 = arith.constant 0.000000e+00 : f32
      %186 = vector.broadcast %cst_98 : f32 to vector<16x128xf32>
      %187 = arith.subf %186, %185 : vector<16x128xf32>
      %188 = math.exp %187 : vector<16x128xf32>
      %189 = math.log1p %188 : vector<16x128xf32>
      %190 = arith.addf %179, %189 : vector<16x128xf32>
      %191 = arith.select %182, %184, %190 : vector<16x128xi1>, vector<16x128xf32>
      %c0_99 = arith.constant 0 : index
      %c0_100 = arith.constant 0 : index
      %192 = vector.load %arg10[%c0_99, %c0_100] : memref<16x128xf32, #tpu.memory_space<vmem>>, vector<16x128xf32>
      tpu.vector_store %arg10[%c0_99, %c0_100], %191 {strides = array<i32>} : memref<16x128xf32, #tpu.memory_space<vmem>>, vector<16x128xf32>,
    } else {
    }
    return
  }
  func.func @transform_0(%arg0: i32, %arg1: i32) -> (i32, i32, i32) {
    %c0_i32 = arith.constant 0 : i32
    %c0_i32_0 = arith.constant 0 : i32
    %c0_i32_1 = arith.constant 0 : i32
    return %c0_i32, %arg1, %c0_i32_0 : i32, i32, i32
  }
  func.func @transform_1(%arg0: i32, %arg1: i32) -> (i32, i32, i32) {
    %c0_i32 = arith.constant 0 : i32
    %c0_i32_0 = arith.constant 0 : i32
    %c0_i32_1 = arith.constant 0 : i32
    return %c0_i32, %arg0, %c0_i32_0 : i32, i32, i32
  }
  func.func @transform_2(%arg0: i32, %arg1: i32) -> (i32, i32, i32, i32) {
    %c0_i32 = arith.constant 0 : i32
    %c0_i32_0 = arith.constant 0 : i32
    %c0_i32_1 = arith.constant 0 : i32
    return %c0_i32, %arg0, %arg1, %c0_i32_0 : i32, i32, i32, i32
  }
  func.func @transform_3(%arg0: i32, %arg1: i32) -> (i32, i32, i32) {
    %c0_i32 = arith.constant 0 : i32
    %c0_i32_0 = arith.constant 0 : i32
    return %c0_i32, %arg0, %arg1 : i32, i32, i32
  }
  func.func @transform_4(%arg0: i32, %arg1: i32) -> (i32, i32, i32) {
    %c0_i32 = arith.constant 0 : i32
    %c0_i32_0 = arith.constant 0 : i32
    return %c0_i32, %arg0, %arg1 : i32, i32, i32
  }
  func.func @transform_5(%arg0: i32, %arg1: i32) -> (i32, i32) {
    %c0_i32 = arith.constant 0 : i32
    %c0_i32_0 = arith.constant 0 : i32
    %c0_i32_1 = arith.constant 0 : i32
    return %c0_i32, %c0_i32_0 : i32, i32
  }
  func.func @transform_6(%arg0: i32, %arg1: i32) -> (i32, i32) {
    %c0_i32 = arith.constant 0 : i32
    %c0_i32_0 = arith.constant 0 : i32
    %c0_i32_1 = arith.constant 0 : i32
    return %c0_i32, %c0_i32_0 : i32, i32
  }
  func.func @transform_7(%arg0: i32, %arg1: i32) -> (i32, i32) {
    %c0_i32 = arith.constant 0 : i32
    %c0_i32_0 = arith.constant 0 : i32
    %c0_i32_1 = arith.constant 0 : i32
    return %c0_i32, %c0_i32_0 : i32, i32
  }
  func.func @transform_8(%arg0: i32, %arg1: i32) -> (i32, i32) {
    %c0_i32 = arith.constant 0 : i32
    %c0_i32_0 = arith.constant 0 : i32
    return %arg0, %c0_i32 : i32, i32
  }
}

</mosaic_0001>

<llo_original>
// kernel: tpu_custom_call.1
$region0: #{tpu_custom_call.1}
  #allocation0 [shape = 'u32[]', space=smem, size = 0x4, offset = 0x4, fixed_abs, tag = 'smem constant byte address 0x4 - core index']
  #allocation1 [shape = 'u32[144,128]{1,0:T(1,128)}', space=vmem, size = 0x12000, scoped, tag = 'internal scratch']
  #allocation2 [shape = 'f32[2,16,64]{2,1,0:T(8,128)}', space=vmem, size = 0x4000, scoped, tag = 'scratch operand']
  #allocation3 [shape = 'f32[2,16,1]{2,1,0:T(8,128)}', space=vmem, size = 0x4000, scoped, tag = 'scratch operand']
  %s0 = inlined_call_operand.hbm [shape: f32[2,16,64], index: 0, kind: input, shape index: {}]
  %s1 = inlined_call_operand.hbm [shape: f32[2,16,64], index: 1, kind: input, shape index: {}]
  %s2 = inlined_call_operand.hbm [shape: f32[2,16,16,64], index: 2, kind: input, shape index: {}]
  %s3 = inlined_call_operand.hbm [shape: f32[2,16,16], index: 3, kind: input, shape index: {}]
  %s4 = inlined_call_operand.hbm [shape: f32[2,16,16], index: 4, kind: input, shape index: {}]
  %s5 = inlined_call_operand.vmem [shape: f32[1,64], index: 5, kind: input, shape index: {}]
  %s6 = inlined_call_operand.hbm [shape: f32[128,128], index: 6, kind: input, shape index: {}]
  %s7 = inlined_call_operand.vmem [shape: f32[1,128], index: 7, kind: input, shape index: {}]
  %s8 = inlined_call_operand.hbm [shape: f32[16,128], index: 8, kind: output, shape index: {}]
  %s9 = sld [smem:[#allocation0]]
  $region74: #{tpu_custom_call.1} parent=0
    _
  %s11 = ssub.s32 1, %s9
  %s12 = scalar_select 0, %s11, %s9
  $region1: #{tpu_custom_call.1} parent=0
    #allocation4 [shape = 'u8[16384]{0}', space=vmem, size = 0x4000, scoped, tag = 'input window, operand 0, single buffered']
    #allocation5 [shape = 's32[1]{0}', space=sflag, size = 0x4, scoped, tag = 'scoped memory for tpu_custom_call.1']
    #allocation6 [shape = 's32[1]{0}', space=sflag, size = 0x4, scoped, tag = 'scoped memory for tpu_custom_call.1']
    #allocation7 [shape = 'u8[16384]{0}', space=vmem, size = 0x4000, scoped, tag = 'input window, operand 1, single buffered']
    #allocation8 [shape = 's32[1]{0}', space=sflag, size = 0x4, scoped, tag = 'scoped memory for tpu_custom_call.1']
    #allocation9 [shape = 'u8[262144]{0}', space=vmem, size = 0x40000, scoped, tag = 'input window, operand 2, single buffered']
    #allocation10 [shape = 'u8[16384]{0}', space=vmem, size = 0x4000, scoped, tag = 'input window, operand 3, single buffered']
    #allocation11 [shape = 's32[1]{0}', space=sflag, size = 0x4, scoped, tag = 'scoped memory for tpu_custom_call.1']
    #allocation12 [shape = 'u8[16384]{0}', space=vmem, size = 0x4000, scoped, tag = 'input window, operand 4, single buffered']
    #allocation13 [shape = 'u8[65536]{0}', space=vmem, size = 0x10000, scoped, tag = 'input window, operand 6, single buffered']
    #allocation14 [shape = 's32[1]{0}', space=sflag, size = 0x4, scoped, tag = 'scoped memory for tpu_custom_call.1']
    #allocation15 [shape = 'u8[8192]{0}', space=vmem, size = 0x2000, scoped, tag = 'output window, operand 0, single buffered']
    %13 = vsyncpa [#allocation5], 0
    %14 = vsyncpa [#allocation8], 0
    %15 = vsyncpa [#allocation11], 0
    %16 = vsyncpa [#allocation14], 0
    %17 = vsyncpa [#allocation6], 0
    // Predicated region
    $region2: #{tpu_custom_call.1} parent=1 // pred_check
      _
    $region3: #{tpu_custom_call.1} parent=1 // pred_check_branch
      %19 = sbr.rel (0) target = $region5
    $region4: #{tpu_custom_call.1} parent=1 // pred_region
      %s21 = ssub.s32 512, 512
      %22 = vsyncadd [#allocation5], %s21
      %s23 = sshll.u32 [#allocation4], 4
      %s24 = int_to_ptr.vmem [resolvable:$true] %s23
      %29 = dma.hbm_to_vmem [thread:$0]  %s0, 512, %s24, [#allocation5], 128, 128, 8
    $region5: #{tpu_custom_call.1} parent=1 // pred_fallthru
      _
    // Predicated region
    $region6: #{tpu_custom_call.1} parent=1 // pred_check
      _
    $region7: #{tpu_custom_call.1} parent=1 // pred_check_branch
      %31 = sbr.rel (0) target = $region9
    $region8: #{tpu_custom_call.1} parent=1 // pred_region
      %s33 = ssub.s32 512, 512
      %34 = vsyncadd [#allocation8], %s33
      %s35 = sshll.u32 [#allocation7], 4
      %s36 = int_to_ptr.vmem [resolvable:$true] %s35
      %41 = dma.hbm_to_vmem [thread:$0]  %s1, 512, %s36, [#allocation8], 128, 128, 8
    $region9: #{tpu_custom_call.1} parent=1 // pred_fallthru
      _
    // Predicated region
    $region10: #{tpu_custom_call.1} parent=1 // pred_check
      _
    $region11: #{tpu_custom_call.1} parent=1 // pred_check_branch
      %43 = sbr.rel (0) target = $region13
    $region12: #{tpu_custom_call.1} parent=1 // pred_region
      %s45 = ssub.s32 8192, 8192
      %46 = vsyncadd [#allocation8], %s45
      %s47 = sshll.u32 [#allocation9], 4
      %s48 = int_to_ptr.vmem [resolvable:$true] %s47
      %53 = dma.hbm_to_vmem [thread:$0]  %s2, 8192, %s48, [#allocation8], 128, 128, 8
    $region13: #{tpu_custom_call.1} parent=1 // pred_fallthru
      _
    // Predicated region
    $region14: #{tpu_custom_call.1} parent=1 // pred_check
      _
    $region15: #{tpu_custom_call.1} parent=1 // pred_check_branch
      %55 = sbr.rel (0) target = $region17
    $region16: #{tpu_custom_call.1} parent=1 // pred_region
      %s57 = ssub.s32 512, 512
      %58 = vsyncadd [#allocation11], %s57
      %s59 = sshll.u32 [#allocation10], 4
      %s60 = int_to_ptr.vmem [resolvable:$true] %s59
      %65 = dma.hbm_to_vmem [thread:$0]  %s3, 512, %s60, [#allocation11], 128, 128, 8
    $region17: #{tpu_custom_call.1} parent=1 // pred_fallthru
      _
    // Predicated region
    $region18: #{tpu_custom_call.1} parent=1 // pred_check
      _
    $region19: #{tpu_custom_call.1} parent=1 // pred_check_branch
      %67 = sbr.rel (0) target = $region21
    $region20: #{tpu_custom_call.1} parent=1 // pred_region
      %s69 = ssub.s32 512, 512
      %70 = vsyncadd [#allocation11], %s69
      %s71 = sshll.u32 [#allocation12], 4
      %s72 = int_to_ptr.vmem [resolvable:$true] %s71
      %77 = dma.hbm_to_vmem [thread:$0]  %s4, 512, %s72, [#allocation11], 128, 128, 8
    $region21: #{tpu_custom_call.1} parent=1 // pred_fallthru
      _
    // Predicated region
    $region22: #{tpu_custom_call.1} parent=1 // pred_check
      _
    $region23: #{tpu_custom_call.1} parent=1 // pred_check_branch
      %79 = sbr.rel (0) target = $region25
    $region24: #{tpu_custom_call.1} parent=1 // pred_region
      _
    $region25: #{tpu_custom_call.1} parent=1 // pred_fallthru
      _
    // Predicated region
    $region26: #{tpu_custom_call.1} parent=1 // pred_check
      _
    $region27: #{tpu_custom_call.1} parent=1 // pred_check_branch
      %81 = sbr.rel (0) target = $region29
    $region28: #{tpu_custom_call.1} parent=1 // pred_region
      %s83 = ssub.s32 2048, 2048
      %84 = vsyncadd [#allocation14], %s83
      %s85 = sshll.u32 [#allocation13], 4
      %s86 = int_to_ptr.vmem [resolvable:$true] %s85
      %91 = dma.hbm_to_vmem [thread:$0]  %s6, 2048, %s86, [#allocation14], 128, 128, 8
    $region29: #{tpu_custom_call.1} parent=1 // pred_fallthru
      _
    // Predicated region
    $region30: #{tpu_custom_call.1} parent=1 // pred_check
      _
    $region31: #{tpu_custom_call.1} parent=1 // pred_check_branch
      %93 = sbr.rel (0) target = $region33
    $region32: #{tpu_custom_call.1} parent=1 // pred_region
      _
    $region33: #{tpu_custom_call.1} parent=1 // pred_fallthru
      _
    // Predicated region
    $region34: #{tpu_custom_call.1} parent=1 // pred_check
      _
    $region35: #{tpu_custom_call.1} parent=1 // pred_check_branch
      %95 = sbr.rel (0) target = $region37
    $region36: #{tpu_custom_call.1} parent=1 // pred_region
      %96 = dma.done [#allocation5], 512
    $region37: #{tpu_custom_call.1} parent=1 // pred_fallthru
      _
    // Predicated region
    $region38: #{tpu_custom_call.1} parent=1 // pred_check
      _
    $region39: #{tpu_custom_call.1} parent=1 // pred_check_branch
      %98 = sbr.rel (0) target = $region41
    $region40: #{tpu_custom_call.1} parent=1 // pred_region
      %99 = dma.done [#allocation8], 512
    $region41: #{tpu_custom_call.1} parent=1 // pred_fallthru
      _
    // Predicated region
    $region42: #{tpu_custom_call.1} parent=1 // pred_check
      _
    $region43: #{tpu_custom_call.1} parent=1 // pred_check_branch
      %101 = sbr.rel (0) target = $region45
    $region44: #{tpu_custom_call.1} parent=1 // pred_region
      %102 = dma.done [#allocation8], 8192
    $region45: #{tpu_custom_call.1} parent=1 // pred_fallthru
      _
    // Predicated region
    $region46: #{tpu_custom_call.1} parent=1 // pred_check
      _
    $region47: #{tpu_custom_call.1} parent=1 // pred_check_branch
      %104 = sbr.rel (0) target = $region49
    $region48: #{tpu_custom_call.1} parent=1 // pred_region
      %105 = dma.done [#allocation11], 512
    $region49: #{tpu_custom_call.1} parent=1 // pred_fallthru
      _
    // Predicated region
    $region50: #{tpu_custom_call.1} parent=1 // pred_check
      _
    $region51: #{tpu_custom_call.1} parent=1 // pred_check_branch
      %107 = sbr.rel (0) target = $region53
    $region52: #{tpu_custom_call.1} parent=1 // pred_region
      %108 = dma.done [#allocation11], 512
    $region53: #{tpu_custom_call.1} parent=1 // pred_fallthru
      _
    // Predicated region
    $region54: #{tpu_custom_call.1} parent=1 // pred_check
      _
    $region55: #{tpu_custom_call.1} parent=1 // pred_check_branch
      %110 = sbr.rel (0) target = $region57
    $region56: #{tpu_custom_call.1} parent=1 // pred_region
      %111 = dma.done [#allocation14], 2048
    $region57: #{tpu_custom_call.1} parent=1 // pred_fallthru
      _
    %p112 = scmp.eq.s32.totalorder 0, 0
    // Predicated region
    $region58: #{tpu_custom_call.1} parent=1 // pred_check
      %p113 = pneg %p112
    $region59: #{tpu_custom_call.1} parent=1 // pred_check_branch
      %115 = sbr.rel (%p113) target = $region61
    $region60: #{tpu_custom_call.1} parent=1 // pred_region
      %vm116 = vcmask 523264
      %117 = vst.msk [vmem:[#allocation2] sm:$0xff] %vm116, 1.0
      %118 = vst.msk [vmem:[#allocation2 + $0x8] sm:$0xff] %vm116, 1.0
      %119 = vst.msk [vmem:[#allocation2 + $0x10] sm:$0xff] %vm116, 1.0
      %120 = vst.msk [vmem:[#allocation2 + $0x18] sm:$0xff] %vm116, 1.0
      %vm121 = vcmask 7168
      %122 = vst.msk [vmem:[#allocation3] sm:$0xff] %vm121, 0.0
      %123 = vst.msk [vmem:[#allocation3 + $0x8] sm:$0xff] %vm121, 0.0
      %124 = vst.msk [vmem:[#allocation3 + $0x10] sm:$0xff] %vm121, 0.0
      %125 = vst.msk [vmem:[#allocation3 + $0x18] sm:$0xff] %vm121, 0.0
    $region61: #{tpu_custom_call.1} parent=1 // pred_fallthru
      _
    %v126 = vld [vmem:[%s5] sm:$0x1]
    %v127 = vld [vmem:[#allocation10] sm:$0xff]
    %v128 = vld [vmem:[#allocation10 + $0x8] sm:$0xff]
    %v129 = vld [vmem:[#allocation12] sm:$0xff]
    %v130 = vld [vmem:[#allocation12 + $0x8] sm:$0xff]
    %v131 = vld [vmem:[#allocation4] sm:$0xff]
    %v132 = vld [vmem:[#allocation4 + $0x8] sm:$0xff]
    %v133 = vld [vmem:[#allocation9] sm:$0xff]
    %v134 = vld [vmem:[#allocation9 + $0x8] sm:$0xff]
    %v135 = vld [vmem:[#allocation9 + $0x10] sm:$0xff]
    %v136 = vld [vmem:[#allocation9 + $0x18] sm:$0xff]
    %v137 = vld [vmem:[#allocation9 + $0x20] sm:$0xff]
    %v138 = vld [vmem:[#allocation9 + $0x28] sm:$0xff]
    %v139 = vld [vmem:[#allocation9 + $0x30] sm:$0xff]
    %v140 = vld [vmem:[#allocation9 + $0x38] sm:$0xff]
    %v141 = vld [vmem:[#allocation9 + $0x40] sm:$0xff]
    %v142 = vld [vmem:[#allocation9 + $0x48] sm:$0xff]
    %v143 = vld [vmem:[#allocation9 + $0x50] sm:$0xff]
    %v144 = vld [vmem:[#allocation9 + $0x58] sm:$0xff]
    %v145 = vld [vmem:[#allocation9 + $0x60] sm:$0xff]
    %v146 = vld [vmem:[#allocation9 + $0x68] sm:$0xff]
    %v147 = vld [vmem:[#allocation9 + $0x70] sm:$0xff]
    %v148 = vld [vmem:[#allocation9 + $0x78] sm:$0xff]
    %v149 = vld [vmem:[#allocation9 + $0x80] sm:$0xff]
    %v150 = vld [vmem:[#allocation9 + $0x88] sm:$0xff]
    %v151 = vld [vmem:[#allocation9 + $0x90] sm:$0xff]
    %v152 = vld [vmem:[#allocation9 + $0x98] sm:$0xff]
    %v153 = vld [vmem:[#allocation9 + $0xa0] sm:$0xff]
    %v154 = vld [vmem:[#allocation9 + $0xa8] sm:$0xff]
    %v155 = vld [vmem:[#allocation9 + $0xb0] sm:$0xff]
    %v156 = vld [vmem:[#allocation9 + $0xb8] sm:$0xff]
    %v157 = vld [vmem:[#allocation9 + $0xc0] sm:$0xff]
    %v158 = vld [vmem:[#allocation9 + $0xc8] sm:$0xff]
    %v159 = vld [vmem:[#allocation9 + $0xd0] sm:$0xff]
    %v160 = vld [vmem:[#allocation9 + $0xd8] sm:$0xff]
    %v161 = vld [vmem:[#allocation9 + $0xe0] sm:$0xff]
    %v162 = vld [vmem:[#allocation9 + $0xe8] sm:$0xff]
    %v163 = vld [vmem:[#allocation9 + $0xf0] sm:$0xff]
    %v164 = vld [vmem:[#allocation9 + $0xf8] sm:$0xff]
    %vm165 = vcmp.lt.f32.partialorder %v127, 5.0
    %vm166 = vcmp.lt.f32.partialorder %v128, 5.0
    %v167 = vmul.f32 %v127, 3.1415927
    %v168 = vmul.f32 %v128, 3.1415927
    %v169 = vrcp.pop 5.0
    %v170 = vmul.f32 %v167, %v169
    %v171 = vmul.f32 %v168, %v169
    %v172 = vand.u32 2147483647, %v170
    %vm173 = vcmp.le.f32.partialorder %v172, 0.7853982
    %vm174 = vcmp.lt.s32.totalorder %v170, 0
    %v175 = vand.u32 %v170, 2139095040
    %v176 = vshrl.u32 %v175, 23
    %v177 = vsub.s32 %v176, 127
    %v178 = vand.u32 2147483647, %v170
    %v179 = vand.u32 %v178, 8388607
    %v180 = vor.u32 %v179, 8388608
    %v181 = vsub.s32 0, %v180
    %v182 = vadd.s32 %v177, 1
    %vm183 = vcmp.gt.s32.totalorder %v182, 0
    %v184 = vsel %vm183, %v182, 0
    %v185 = vshrl.u32 %v184, 5
    %v186 = vand.u32 %v184, 31
    %v187 = vsub.s32 32, %v186
    %v188 = vshrl.u32 683565275, %v187
    %v189 = vshll.u32 683565275, %v186
    %v190 = vshrl.u32 2475754826, %v187
    %v191 = vor.u32 %v189, %v190
    %v192 = vshll.u32 2475754826, %v186
    %v193 = vshrl.u32 2131351028, %v187
    %v194 = vor.u32 %v192, %v193
    %v195 = vshll.u32 2131351028, %v186
    %v196 = vshrl.u32 2102212464, %v187
    %v197 = vor.u32 %v195, %v196
    %v198 = vshll.u32 2102212464, %v186
    %v199 = vshrl.u32 920167782, %v187
    %v200 = vor.u32 %v198, %v199
    %v201 = vshll.u32 920167782, %v186
    %v202 = vshrl.u32 1326507024, %v187
    %v203 = vor.u32 %v201, %v202
    %vm204 = vcmp.lt.s32.totalorder %v185, 1
    %vm205 = vcmp.lt.s32.totalorder %v185, 2
    %vm206 = vcmp.lt.s32.totalorder %v185, 3
    %vm207 = vcmp.lt.s32.totalorder %v185, 4
    %v208 = vsel %vm204, %v188, %v191
    %v209 = vsel %vm207, %v197, 2102212464
    %v210 = vsel %vm206, %v194, %v209
    %v211 = vsel %vm205, %v208, %v210
    %v212 = vsel %vm204, %v191, %v194
    %v213 = vsel %vm207, %v200, 920167782
    %v214 = vsel %vm206, %v197, %v213
    %v215 = vsel %vm205, %v212, %v214
    %v216 = vsel %vm204, %v194, %v197
    %v217 = vsel %vm207, %v203, 1326507024
    %v218 = vsel %vm206, %v200, %v217
    %v219 = vsel %vm205, %v216, %v218
    %v220 = vshll.u32 %v180, 8
    %v221 = vmul.u32.u64.compose %v220, %v219
    %v222 = vextract.low.u32 %v221
    %v223 = vextract.high.u32 %v221
    %v224 = vmul.u32.u64.compose %v220, %v215
    %v225 = vextract.low.u32 %v224
    %v226 = vextract.high.u32 %v224
    %v227 = vmul.u32 %v220, %v211
    %v228 = vadd.s32 %v223, %v225
    %vm229 = vc.u32 %v223, %v225
    %v230 = vadd.s32 %v226, 1
    %v231 = vsel %vm229, %v230, %v226
    %v232 = vadd.s32 %v227, %v231
    %v233 = vadd.s32 %v232, 536870912
    %v234 = vshrl.u32 %v233, 30
    %v235 = vshll.u32 %v234, 30
    %v236 = vsub.s32 %v232, %v235
    %vm237 = vcmp.lt.s32.totalorder %v236, 0
    %v238 = vsub.s32 0, %v236
    %v239 = vsel %vm237, %v238, %v236
    %v240 = vclz %v239
    %v241 = vsub.s32 %v240, 2
    %vm242 = vcmp.gt.s32.totalorder 0, %v241
    %v243 = vsel %vm242, 0, %v241
    %v244 = vsub.s32 32, %v243
    %v245 = vshll.u32 %v236, %v243
    %v246 = vshrl.u32 %v228, %v244
    %v247 = vor.u32 %v245, %v246
    %v248 = vsub.s32 4294967266, %v243
    %v249 = vadd.s32 %v248, 127
    %v250 = vshll.u32 %v249, 23
    %v251 = vor.u32 4788187, %v250
    %v252 = vand.u32 2147483647, %v251
    %v254 = vcvt.s32.f32 %v247
    %v255 = vmul.f32 %v254, %v252
    %v256 = vxor.u32 %v255, 2147483648
    %v257 = vsel %vm174, %v256, %v255
    %v258 = vsub.s32 4, %v234
    %v259 = vsel %vm174, %v258, %v234
    %v260 = vsel %vm173, %v170, %v257
    %v261 = vsel %vm173, 0, %v259
    %v262 = vcosq.f32.pop %v260
    %v263 = vsinq.f32.pop %v260
    %vm264 = vweird.f32 %v170
    %v265 = vand.u32 %v261, 3
    %vm266 = vcmp.lt.s32.totalorder %v265, 2
    %vm267 = vcmp.eq.s32.totalorder %v265, 0
    %v268 = vxor.u32 %v263, 2147483648
    %v269 = vsel %vm267, %v262, %v268
    %vm270 = vcmp.eq.s32.totalorder %v265, 2
    %v271 = vxor.u32 %v262, 2147483648
    %v272 = vsel %vm270, %v271, %v263
    %v273 = vsel %vm266, %v269, %v272
    %v274 = vsel %vm264, nan, %v273
    %v275 = vand.u32 2147483647, %v171
    %vm276 = vcmp.le.f32.partialorder %v275, 0.7853982
    %vm277 = vcmp.lt.s32.totalorder %v171, 0
    %v278 = vand.u32 %v171, 2139095040
    %v279 = vshrl.u32 %v278, 23
    %v280 = vsub.s32 %v279, 127
    %v281 = vand.u32 2147483647, %v171
    %v282 = vand.u32 %v281, 8388607
    %v283 = vor.u32 %v282, 8388608
    %v284 = vsub.s32 0, %v283
    %v285 = vadd.s32 %v280, 1
    %vm286 = vcmp.gt.s32.totalorder %v285, 0
    %v287 = vsel %vm286, %v285, 0
    %v288 = vshrl.u32 %v287, 5
    %v289 = vand.u32 %v287, 31
    %v290 = vsub.s32 32, %v289
    %v291 = vshrl.u32 683565275, %v290
    %v292 = vshll.u32 683565275, %v289
    %v293 = vshrl.u32 2475754826, %v290
    %v294 = vor.u32 %v292, %v293
    %v295 = vshll.u32 2475754826, %v289
    %v296 = vshrl.u32 2131351028, %v290
    %v297 = vor.u32 %v295, %v296
    %v298 = vshll.u32 2131351028, %v289
    %v299 = vshrl.u32 2102212464, %v290
    %v300 = vor.u32 %v298, %v299
    %v301 = vshll.u32 2102212464, %v289
    %v302 = vshrl.u32 920167782, %v290
    %v303 = vor.u32 %v301, %v302
    %v304 = vshll.u32 920167782, %v289
    %v305 = vshrl.u32 1326507024, %v290
    %v306 = vor.u32 %v304, %v305
    %vm307 = vcmp.lt.s32.totalorder %v288, 1
    %vm308 = vcmp.lt.s32.totalorder %v288, 2
    %vm309 = vcmp.lt.s32.totalorder %v288, 3
    %vm310 = vcmp.lt.s32.totalorder %v288, 4
    %v311 = vsel %vm307, %v291, %v294
    %v312 = vsel %vm310, %v300, 2102212464
    %v313 = vsel %vm309, %v297, %v312
    %v314 = vsel %vm308, %v311, %v313
    %v315 = vsel %vm307, %v294, %v297
    %v316 = vsel %vm310, %v303, 920167782
    %v317 = vsel %vm309, %v300, %v316
    %v318 = vsel %vm308, %v315, %v317
    %v319 = vsel %vm307, %v297, %v300
    %v320 = vsel %vm310, %v306, 1326507024
    %v321 = vsel %vm309, %v303, %v320
    %v322 = vsel %vm308, %v319, %v321
    %v323 = vshll.u32 %v283, 8
    %v324 = vmul.u32.u64.compose %v323, %v322
    %v325 = vextract.low.u32 %v324
    %v326 = vextract.high.u32 %v324
    %v327 = vmul.u32.u64.compose %v323, %v318
    %v328 = vextract.low.u32 %v327
    %v329 = vextract.high.u32 %v327
    %v330 = vmul.u32 %v323, %v314
    %v331 = vadd.s32 %v326, %v328
    %vm332 = vc.u32 %v326, %v328
    %v333 = vadd.s32 %v329, 1
    %v334 = vsel %vm332, %v333, %v329
    %v335 = vadd.s32 %v330, %v334
    %v336 = vadd.s32 %v335, 536870912
    %v337 = vshrl.u32 %v336, 30
    %v338 = vshll.u32 %v337, 30
    %v339 = vsub.s32 %v335, %v338
    %vm340 = vcmp.lt.s32.totalorder %v339, 0
    %v341 = vsub.s32 0, %v339
    %v342 = vsel %vm340, %v341, %v339
    %v343 = vclz %v342
    %v344 = vsub.s32 %v343, 2
    %vm345 = vcmp.gt.s32.totalorder 0, %v344
    %v346 = vsel %vm345, 0, %v344
    %v347 = vsub.s32 32, %v346
    %v348 = vshll.u32 %v339, %v346
    %v349 = vshrl.u32 %v331, %v347
    %v350 = vor.u32 %v348, %v349
    %v351 = vsub.s32 4294967266, %v346
    %v352 = vadd.s32 %v351, 127
    %v353 = vshll.u32 %v352, 23
    %v354 = vor.u32 4788187, %v353
    %v355 = vand.u32 2147483647, %v354
    %v357 = vcvt.s32.f32 %v350
    %v358 = vmul.f32 %v357, %v355
    %v359 = vxor.u32 %v358, 2147483648
    %v360 = vsel %vm277, %v359, %v358
    %v361 = vsub.s32 4, %v337
    %v362 = vsel %vm277, %v361, %v337
    %v363 = vsel %vm276, %v171, %v360
    %v364 = vsel %vm276, 0, %v362
    %v365 = vcosq.f32.pop %v363
    %v366 = vsinq.f32.pop %v363
    %vm367 = vweird.f32 %v171
    %v368 = vand.u32 %v364, 3
    %vm369 = vcmp.lt.s32.totalorder %v368, 2
    %vm370 = vcmp.eq.s32.totalorder %v368, 0
    %v371 = vxor.u32 %v366, 2147483648
    %v372 = vsel %vm370, %v365, %v371
    %vm373 = vcmp.eq.s32.totalorder %v368, 2
    %v374 = vxor.u32 %v365, 2147483648
    %v375 = vsel %vm373, %v374, %v366
    %v376 = vsel %vm369, %v372, %v375
    %v377 = vsel %vm367, nan, %v376
    %v378 = vadd.f32 %v274, 1.0
    %v379 = vadd.f32 %v377, 1.0
    %v380 = vmul.f32 %v378, 0.5
    %v381 = vmul.f32 %v379, 0.5
    %v382 = vsel %vm165, %v380, 0.0
    %v383 = vsel %vm166, %v381, 0.0
    %v384 = vmul.f32 %v382, %v382
    %v385 = vmul.f32 %v383, %v383
    %v386 = vlaneseq
    %v387 = vshrl.u32 %v386, 7
    %v388 = vsub.s32 0, %v387
    %v389 = vrot.slane %v384, %v388
    %391 = vbcast.lane.b32.xlu0 %v389, 256
    %v392 = vpop.permute.xlu0 %391
    %s394 = sor.u32 256, 8
    %395 = vbcast.lane.b32.xlu0 %v389, %s394
    %v396 = vpop.permute.xlu0 %395
    %v397 = vlaneseq
    %v398 = vshrl.u32 %v397, 7
    %v399 = vsub.s32 1, %v398
    %v400 = vrot.slane %v384, %v399
    %402 = vbcast.lane.b32.xlu0 %v400, 256
    %v403 = vpop.permute.xlu0 %402
    %s405 = sor.u32 256, 8
    %406 = vbcast.lane.b32.xlu0 %v400, %s405
    %v407 = vpop.permute.xlu0 %406
    %v408 = vlaneseq
    %v409 = vshrl.u32 %v408, 7
    %v410 = vsub.s32 2, %v409
    %v411 = vrot.slane %v384, %v410
    %413 = vbcast.lane.b32.xlu0 %v411, 256
    %v414 = vpop.permute.xlu0 %413
    %s416 = sor.u32 256, 8
    %417 = vbcast.lane.b32.xlu0 %v411, %s416
    %v418 = vpop.permute.xlu0 %417
    %v419 = vlaneseq
    %v420 = vshrl.u32 %v419, 7
    %v421 = vsub.s32 3, %v420
    %v422 = vrot.slane %v384, %v421
    %424 = vbcast.lane.b32.xlu0 %v422, 256
    %v425 = vpop.permute.xlu0 %424
    %s427 = sor.u32 256, 8
    %428 = vbcast.lane.b32.xlu0 %v422, %s427
    %v429 = vpop.permute.xlu0 %428
    %v430 = vlaneseq
    %v431 = vshrl.u32 %v430, 7
    %v432 = vsub.s32 4, %v431
    %v433 = vrot.slane %v384, %v432
    %435 = vbcast.lane.b32.xlu0 %v433, 256
    %v436 = vpop.permute.xlu0 %435
    %s438 = sor.u32 256, 8
    %439 = vbcast.lane.b32.xlu0 %v433, %s438
    %v440 = vpop.permute.xlu0 %439
    %v441 = vlaneseq
    %v442 = vshrl.u32 %v441, 7
    %v443 = vsub.s32 5, %v442
    %v444 = vrot.slane %v384, %v443
    %446 = vbcast.lane.b32.xlu0 %v444, 256
    %v447 = vpop.permute.xlu0 %446
    %s449 = sor.u32 256, 8
    %450 = vbcast.lane.b32.xlu0 %v444, %s449
    %v451 = vpop.permute.xlu0 %450
    %v452 = vlaneseq
    %v453 = vshrl.u32 %v452, 7
    %v454 = vsub.s32 6, %v453
    %v455 = vrot.slane %v384, %v454
    %457 = vbcast.lane.b32.xlu0 %v455, 256
    %v458 = vpop.permute.xlu0 %457
    %s460 = sor.u32 256, 8
    %461 = vbcast.lane.b32.xlu0 %v455, %s460
    %v462 = vpop.permute.xlu0 %461
    %v463 = vlaneseq
    %v464 = vshrl.u32 %v463, 7
    %v465 = vsub.s32 7, %v464
    %v466 = vrot.slane %v384, %v465
    %468 = vbcast.lane.b32.xlu0 %v466, 256
    %v469 = vpop.permute.xlu0 %468
    %s471 = sor.u32 256, 8
    %472 = vbcast.lane.b32.xlu0 %v466, %s471
    %v473 = vpop.permute.xlu0 %472
    %v474 = vlaneseq
    %v475 = vshrl.u32 %v474, 7
    %v476 = vsub.s32 0, %v475
    %v477 = vrot.slane %v385, %v476
    %479 = vbcast.lane.b32.xlu0 %v477, 256
    %v480 = vpop.permute.xlu0 %479
    %s482 = sor.u32 256, 8
    %483 = vbcast.lane.b32.xlu0 %v477, %s482
    %v484 = vpop.permute.xlu0 %483
    %v485 = vlaneseq
    %v486 = vshrl.u32 %v485, 7
    %v487 = vsub.s32 1, %v486
    %v488 = vrot.slane %v385, %v487
    %490 = vbcast.lane.b32.xlu0 %v488, 256
    %v491 = vpop.permute.xlu0 %490
    %s493 = sor.u32 256, 8
    %494 = vbcast.lane.b32.xlu0 %v488, %s493
    %v495 = vpop.permute.xlu0 %494
    %v496 = vlaneseq
    %v497 = vshrl.u32 %v496, 7
    %v498 = vsub.s32 2, %v497
    %v499 = vrot.slane %v385, %v498
    %501 = vbcast.lane.b32.xlu0 %v499, 256
    %v502 = vpop.permute.xlu0 %501
    %s504 = sor.u32 256, 8
    %505 = vbcast.lane.b32.xlu0 %v499, %s504
    %v506 = vpop.permute.xlu0 %505
    %v507 = vlaneseq
    %v508 = vshrl.u32 %v507, 7
    %v509 = vsub.s32 3, %v508
    %v510 = vrot.slane %v385, %v509
    %512 = vbcast.lane.b32.xlu0 %v510, 256
    %v513 = vpop.permute.xlu0 %512
    %s515 = sor.u32 256, 8
    %516 = vbcast.lane.b32.xlu0 %v510, %s515
    %v517 = vpop.permute.xlu0 %516
    %v518 = vlaneseq
    %v519 = vshrl.u32 %v518, 7
    %v520 = vsub.s32 4, %v519
    %v521 = vrot.slane %v385, %v520
    %523 = vbcast.lane.b32.xlu0 %v521, 256
    %v524 = vpop.permute.xlu0 %523
    %s526 = sor.u32 256, 8
    %527 = vbcast.lane.b32.xlu0 %v521, %s526
    %v528 = vpop.permute.xlu0 %527
    %v529 = vlaneseq
    %v530 = vshrl.u32 %v529, 7
    %v531 = vsub.s32 5, %v530
    %v532 = vrot.slane %v385, %v531
    %534 = vbcast.lane.b32.xlu0 %v532, 256
    %v535 = vpop.permute.xlu0 %534
    %s537 = sor.u32 256, 8
    %538 = vbcast.lane.b32.xlu0 %v532, %s537
    %v539 = vpop.permute.xlu0 %538
    %v540 = vlaneseq
    %v541 = vshrl.u32 %v540, 7
    %v542 = vsub.s32 6, %v541
    %v543 = vrot.slane %v385, %v542
    %545 = vbcast.lane.b32.xlu0 %v543, 256
    %v546 = vpop.permute.xlu0 %545
    %s548 = sor.u32 256, 8
    %549 = vbcast.lane.b32.xlu0 %v543, %s548
    %v550 = vpop.permute.xlu0 %549
    %v551 = vlaneseq
    %v552 = vshrl.u32 %v551, 7
    %v553 = vsub.s32 7, %v552
    %v554 = vrot.slane %v385, %v553
    %556 = vbcast.lane.b32.xlu0 %v554, 256
    %v557 = vpop.permute.xlu0 %556
    %s559 = sor.u32 256, 8
    %560 = vbcast.lane.b32.xlu0 %v554, %s559
    %v561 = vpop.permute.xlu0 %560
    %v562 = vlaneseq
    %v563 = vshrl.u32 %v562, 7
    %v564 = vsub.s32 0, %v563
    %v565 = vrot.slane %v127, %v564
    %567 = vbcast.lane.b32.xlu0 %v565, 256
    %v568 = vpop.permute.xlu0 %567
    %s570 = sor.u32 256, 8
    %571 = vbcast.lane.b32.xlu0 %v565, %s570
    %v572 = vpop.permute.xlu0 %571
    %v573 = vlaneseq
    %v574 = vshrl.u32 %v573, 7
    %v575 = vsub.s32 1, %v574
    %v576 = vrot.slane %v127, %v575
    %578 = vbcast.lane.b32.xlu0 %v576, 256
    %v579 = vpop.permute.xlu0 %578
    %s581 = sor.u32 256, 8
    %582 = vbcast.lane.b32.xlu0 %v576, %s581
    %v583 = vpop.permute.xlu0 %582
    %v584 = vlaneseq
    %v585 = vshrl.u32 %v584, 7
    %v586 = vsub.s32 2, %v585
    %v587 = vrot.slane %v127, %v586
    %589 = vbcast.lane.b32.xlu0 %v587, 256
    %v590 = vpop.permute.xlu0 %589
    %s592 = sor.u32 256, 8
    %593 = vbcast.lane.b32.xlu0 %v587, %s592
    %v594 = vpop.permute.xlu0 %593
    %v595 = vlaneseq
    %v596 = vshrl.u32 %v595, 7
    %v597 = vsub.s32 3, %v596
    %v598 = vrot.slane %v127, %v597
    %600 = vbcast.lane.b32.xlu0 %v598, 256
    %v601 = vpop.permute.xlu0 %600
    %s603 = sor.u32 256, 8
    %604 = vbcast.lane.b32.xlu0 %v598, %s603
    %v605 = vpop.permute.xlu0 %604
    %v606 = vlaneseq
    %v607 = vshrl.u32 %v606, 7
    %v608 = vsub.s32 4, %v607
    %v609 = vrot.slane %v127, %v608
    %611 = vbcast.lane.b32.xlu0 %v609, 256
    %v612 = vpop.permute.xlu0 %611
    %s614 = sor.u32 256, 8
    %615 = vbcast.lane.b32.xlu0 %v609, %s614
    %v616 = vpop.permute.xlu0 %615
    %v617 = vlaneseq
    %v618 = vshrl.u32 %v617, 7
    %v619 = vsub.s32 5, %v618
    %v620 = vrot.slane %v127, %v619
    %622 = vbcast.lane.b32.xlu0 %v620, 256
    %v623 = vpop.permute.xlu0 %622
    %s625 = sor.u32 256, 8
    %626 = vbcast.lane.b32.xlu0 %v620, %s625
    %v627 = vpop.permute.xlu0 %626
    %v628 = vlaneseq
    %v629 = vshrl.u32 %v628, 7
    %v630 = vsub.s32 6, %v629
    %v631 = vrot.slane %v127, %v630
    %633 = vbcast.lane.b32.xlu0 %v631, 256
    %v634 = vpop.permute.xlu0 %633
    %s636 = sor.u32 256, 8
    %637 = vbcast.lane.b32.xlu0 %v631, %s636
    %v638 = vpop.permute.xlu0 %637
    %v639 = vlaneseq
    %v640 = vshrl.u32 %v639, 7
    %v641 = vsub.s32 7, %v640
    %v642 = vrot.slane %v127, %v641
    %644 = vbcast.lane.b32.xlu0 %v642, 256
    %v645 = vpop.permute.xlu0 %644
    %s647 = sor.u32 256, 8
    %648 = vbcast.lane.b32.xlu0 %v642, %s647
    %v649 = vpop.permute.xlu0 %648
    %v650 = vlaneseq
    %v651 = vshrl.u32 %v650, 7
    %v652 = vsub.s32 0, %v651
    %v653 = vrot.slane %v128, %v652
    %655 = vbcast.lane.b32.xlu0 %v653, 256
    %v656 = vpop.permute.xlu0 %655
    %s658 = sor.u32 256, 8
    %659 = vbcast.lane.b32.xlu0 %v653, %s658
    %v660 = vpop.permute.xlu0 %659
    %v661 = vlaneseq
    %v662 = vshrl.u32 %v661, 7
    %v663 = vsub.s32 1, %v662
    %v664 = vrot.slane %v128, %v663
    %666 = vbcast.lane.b32.xlu0 %v664, 256
    %v667 = vpop.permute.xlu0 %666
    %s669 = sor.u32 256, 8
    %670 = vbcast.lane.b32.xlu0 %v664, %s669
    %v671 = vpop.permute.xlu0 %670
    %v672 = vlaneseq
    %v673 = vshrl.u32 %v672, 7
    %v674 = vsub.s32 2, %v673
    %v675 = vrot.slane %v128, %v674
    %677 = vbcast.lane.b32.xlu0 %v675, 256
    %v678 = vpop.permute.xlu0 %677
    %s680 = sor.u32 256, 8
    %681 = vbcast.lane.b32.xlu0 %v675, %s680
    %v682 = vpop.permute.xlu0 %681
    %v683 = vlaneseq
    %v684 = vshrl.u32 %v683, 7
    %v685 = vsub.s32 3, %v684
    %v686 = vrot.slane %v128, %v685
    %688 = vbcast.lane.b32.xlu0 %v686, 256
    %v689 = vpop.permute.xlu0 %688
    %s691 = sor.u32 256, 8
    %692 = vbcast.lane.b32.xlu0 %v686, %s691
    %v693 = vpop.permute.xlu0 %692
    %v694 = vlaneseq
    %v695 = vshrl.u32 %v694, 7
    %v696 = vsub.s32 4, %v695
    %v697 = vrot.slane %v128, %v696
    %699 = vbcast.lane.b32.xlu0 %v697, 256
    %v700 = vpop.permute.xlu0 %699
    %s702 = sor.u32 256, 8
    %703 = vbcast.lane.b32.xlu0 %v697, %s702
    %v704 = vpop.permute.xlu0 %703
    %v705 = vlaneseq
    %v706 = vshrl.u32 %v705, 7
    %v707 = vsub.s32 5, %v706
    %v708 = vrot.slane %v128, %v707
    %710 = vbcast.lane.b32.xlu0 %v708, 256
    %v711 = vpop.permute.xlu0 %710
    %s713 = sor.u32 256, 8
    %714 = vbcast.lane.b32.xlu0 %v708, %s713
    %v715 = vpop.permute.xlu0 %714
    %v716 = vlaneseq
    %v717 = vshrl.u32 %v716, 7
    %v718 = vsub.s32 6, %v717
    %v719 = vrot.slane %v128, %v718
    %721 = vbcast.lane.b32.xlu0 %v719, 256
    %v722 = vpop.permute.xlu0 %721
    %s724 = sor.u32 256, 8
    %725 = vbcast.lane.b32.xlu0 %v719, %s724
    %v726 = vpop.permute.xlu0 %725
    %v727 = vlaneseq
    %v728 = vshrl.u32 %v727, 7
    %v729 = vsub.s32 7, %v728
    %v730 = vrot.slane %v128, %v729
    %732 = vbcast.lane.b32.xlu0 %v730, 256
    %v733 = vpop.permute.xlu0 %732
    %s735 = sor.u32 256, 8
    %736 = vbcast.lane.b32.xlu0 %v730, %s735
    %v737 = vpop.permute.xlu0 %736
    %v739 = vlaneseq
    %v740 = vshrl.u32 %v739, 7
    %v741 = vsub.s32 0, %v740
    %v742 = vrot.slane %v126, %v741
    %v744 = vsub.f32 %v568, %v742
    %v745 = vsub.f32 %v572, %v742
    %v746 = vsub.f32 %v579, %v742
    %v747 = vsub.f32 %v583, %v742
    %v748 = vsub.f32 %v590, %v742
    %v749 = vsub.f32 %v594, %v742
    %v750 = vsub.f32 %v601, %v742
    %v751 = vsub.f32 %v605, %v742
    %v752 = vsub.f32 %v612, %v742
    %v753 = vsub.f32 %v616, %v742
    %v754 = vsub.f32 %v623, %v742
    %v755 = vsub.f32 %v627, %v742
    %v756 = vsub.f32 %v634, %v742
    %v757 = vsub.f32 %v638, %v742
    %v758 = vsub.f32 %v645, %v742
    %v759 = vsub.f32 %v649, %v742
    %v760 = vsub.f32 %v656, %v742
    %v761 = vsub.f32 %v660, %v742
    %v762 = vsub.f32 %v667, %v742
    %v763 = vsub.f32 %v671, %v742
    %v764 = vsub.f32 %v678, %v742
    %v765 = vsub.f32 %v682, %v742
    %v766 = vsub.f32 %v689, %v742
    %v767 = vsub.f32 %v693, %v742
    %v768 = vsub.f32 %v700, %v742
    %v769 = vsub.f32 %v704, %v742
    %v770 = vsub.f32 %v711, %v742
    %v771 = vsub.f32 %v715, %v742
    %v772 = vsub.f32 %v722, %v742
    %v773 = vsub.f32 %v726, %v742
    %v774 = vsub.f32 %v733, %v742
    %v775 = vsub.f32 %v737, %v742
    %v776 = vmul.f32 %v744, %v744
    %v777 = vmul.f32 %v745, %v745
    %v778 = vmul.f32 %v746, %v746
    %v779 = vmul.f32 %v747, %v747
    %v780 = vmul.f32 %v748, %v748
    %v781 = vmul.f32 %v749, %v749
    %v782 = vmul.f32 %v750, %v750
    %v783 = vmul.f32 %v751, %v751
    %v784 = vmul.f32 %v752, %v752
    %v785 = vmul.f32 %v753, %v753
    %v786 = vmul.f32 %v754, %v754
    %v787 = vmul.f32 %v755, %v755
    %v788 = vmul.f32 %v756, %v756
    %v789 = vmul.f32 %v757, %v757
    %v790 = vmul.f32 %v758, %v758
    %v791 = vmul.f32 %v759, %v759
    %v792 = vmul.f32 %v760, %v760
    %v793 = vmul.f32 %v761, %v761
    %v794 = vmul.f32 %v762, %v762
    %v795 = vmul.f32 %v763, %v763
    %v796 = vmul.f32 %v764, %v764
    %v797 = vmul.f32 %v765, %v765
    %v798 = vmul.f32 %v766, %v766
    %v799 = vmul.f32 %v767, %v767
    %v800 = vmul.f32 %v768, %v768
    %v801 = vmul.f32 %v769, %v769
    %v802 = vmul.f32 %v770, %v770
    %v803 = vmul.f32 %v771, %v771
    %v804 = vmul.f32 %v772, %v772
    %v805 = vmul.f32 %v773, %v773
    %v806 = vmul.f32 %v774, %v774
    %v807 = vmul.f32 %v775, %v775
    %v808 = vmul.f32 %v776, -158.76
    %v809 = vmul.f32 %v777, -158.76
    %v810 = vmul.f32 %v778, -158.76
    %v811 = vmul.f32 %v779, -158.76
    %v812 = vmul.f32 %v780, -158.76
    %v813 = vmul.f32 %v781, -158.76
    %v814 = vmul.f32 %v782, -158.76
    %v815 = vmul.f32 %v783, -158.76
    %v816 = vmul.f32 %v784, -158.76
    %v817 = vmul.f32 %v785, -158.76
    %v818 = vmul.f32 %v786, -158.76
    %v819 = vmul.f32 %v787, -158.76
    %v820 = vmul.f32 %v788, -158.76
    %v821 = vmul.f32 %v789, -158.76
    %v822 = vmul.f32 %v790, -158.76
    %v823 = vmul.f32 %v791, -158.76
    %v824 = vmul.f32 %v792, -158.76
    %v825 = vmul.f32 %v793, -158.76
    %v826 = vmul.f32 %v794, -158.76
    %v827 = vmul.f32 %v795, -158.76
    %v828 = vmul.f32 %v796, -158.76
    %v829 = vmul.f32 %v797, -158.76
    %v830 = vmul.f32 %v798, -158.76
    %v831 = vmul.f32 %v799, -158.76
    %v832 = vmul.f32 %v800, -158.76
    %v833 = vmul.f32 %v801, -158.76
    %v834 = vmul.f32 %v802, -158.76
    %v835 = vmul.f32 %v803, -158.76
    %v836 = vmul.f32 %v804, -158.76
    %v837 = vmul.f32 %v805, -158.76
    %v838 = vmul.f32 %v806, -158.76
    %v839 = vmul.f32 %v807, -158.76
    %v840 = vmul.f32 %v808, 1.442695
    %v841 = vpow.pop %v840
    %v842 = vmul.f32 %v809, 1.442695
    %v843 = vpow.pop %v842
    %v844 = vmul.f32 %v810, 1.442695
    %v845 = vpow.pop %v844
    %v846 = vmul.f32 %v811, 1.442695
    %v847 = vpow.pop %v846
    %v848 = vmul.f32 %v812, 1.442695
    %v849 = vpow.pop %v848
    %v850 = vmul.f32 %v813, 1.442695
    %v851 = vpow.pop %v850
    %v852 = vmul.f32 %v814, 1.442695
    %v853 = vpow.pop %v852
    %v854 = vmul.f32 %v815, 1.442695
    %v855 = vpow.pop %v854
    %v856 = vmul.f32 %v816, 1.442695
    %v857 = vpow.pop %v856
    %v858 = vmul.f32 %v817, 1.442695
    %v859 = vpow.pop %v858
    %v860 = vmul.f32 %v818, 1.442695
    %v861 = vpow.pop %v860
    %v862 = vmul.f32 %v819, 1.442695
    %v863 = vpow.pop %v862
    %v864 = vmul.f32 %v820, 1.442695
    %v865 = vpow.pop %v864
    %v866 = vmul.f32 %v821, 1.442695
    %v867 = vpow.pop %v866
    %v868 = vmul.f32 %v822, 1.442695
    %v869 = vpow.pop %v868
    %v870 = vmul.f32 %v823, 1.442695
    %v871 = vpow.pop %v870
    %v872 = vmul.f32 %v824, 1.442695
    %v873 = vpow.pop %v872
    %v874 = vmul.f32 %v825, 1.442695
    %v875 = vpow.pop %v874
    %v876 = vmul.f32 %v826, 1.442695
    %v877 = vpow.pop %v876
    %v878 = vmul.f32 %v827, 1.442695
    %v879 = vpow.pop %v878
    %v880 = vmul.f32 %v828, 1.442695
    %v881 = vpow.pop %v880
    %v882 = vmul.f32 %v829, 1.442695
    %v883 = vpow.pop %v882
    %v884 = vmul.f32 %v830, 1.442695
    %v885 = vpow.pop %v884
    %v886 = vmul.f32 %v831, 1.442695
    %v887 = vpow.pop %v886
    %v888 = vmul.f32 %v832, 1.442695
    %v889 = vpow.pop %v888
    %v890 = vmul.f32 %v833, 1.442695
    %v891 = vpow.pop %v890
    %v892 = vmul.f32 %v834, 1.442695
    %v893 = vpow.pop %v892
    %v894 = vmul.f32 %v835, 1.442695
    %v895 = vpow.pop %v894
    %v896 = vmul.f32 %v836, 1.442695
    %v897 = vpow.pop %v896
    %v898 = vmul.f32 %v837, 1.442695
    %v899 = vpow.pop %v898
    %v900 = vmul.f32 %v838, 1.442695
    %v901 = vpow.pop %v900
    %v902 = vmul.f32 %v839, 1.442695
    %v903 = vpow.pop %v902
    %v904 = vmul.f32 %v131, %v133
    %v905 = vmul.f32 %v132, %v134
    %v906 = vmul.f32 %v131, %v135
    %v907 = vmul.f32 %v132, %v136
    %v908 = vmul.f32 %v131, %v137
    %v909 = vmul.f32 %v132, %v138
    %v910 = vmul.f32 %v131, %v139
    %v911 = vmul.f32 %v132, %v140
    %v912 = vmul.f32 %v131, %v141
    %v913 = vmul.f32 %v132, %v142
    %v914 = vmul.f32 %v131, %v143
    %v915 = vmul.f32 %v132, %v144
    %v916 = vmul.f32 %v131, %v145
    %v917 = vmul.f32 %v132, %v146
    %v918 = vmul.f32 %v131, %v147
    %v919 = vmul.f32 %v132, %v148
    %v920 = vmul.f32 %v131, %v149
    %v921 = vmul.f32 %v132, %v150
    %v922 = vmul.f32 %v131, %v151
    %v923 = vmul.f32 %v132, %v152
    %v924 = vmul.f32 %v131, %v153
    %v925 = vmul.f32 %v132, %v154
    %v926 = vmul.f32 %v131, %v155
    %v927 = vmul.f32 %v132, %v156
    %v928 = vmul.f32 %v131, %v157
    %v929 = vmul.f32 %v132, %v158
    %v930 = vmul.f32 %v131, %v159
    %v931 = vmul.f32 %v132, %v160
    %v932 = vmul.f32 %v131, %v161
    %v933 = vmul.f32 %v132, %v162
    %v934 = vmul.f32 %v131, %v163
    %v935 = vmul.f32 %v132, %v164
    %v936 = vmul.f32 %v841, %v392
    %v937 = vmul.f32 %v843, %v396
    %v938 = vmul.f32 %v845, %v403
    %v939 = vmul.f32 %v847, %v407
    %v940 = vmul.f32 %v849, %v414
    %v941 = vmul.f32 %v851, %v418
    %v942 = vmul.f32 %v853, %v425
    %v943 = vmul.f32 %v855, %v429
    %v944 = vmul.f32 %v857, %v436
    %v945 = vmul.f32 %v859, %v440
    %v946 = vmul.f32 %v861, %v447
    %v947 = vmul.f32 %v863, %v451
    %v948 = vmul.f32 %v865, %v458
    %v949 = vmul.f32 %v867, %v462
    %v950 = vmul.f32 %v869, %v469
    %v951 = vmul.f32 %v871, %v473
    %v952 = vmul.f32 %v873, %v480
    %v953 = vmul.f32 %v875, %v484
    %v954 = vmul.f32 %v877, %v491
    %v955 = vmul.f32 %v879, %v495
    %v956 = vmul.f32 %v881, %v502
    %v957 = vmul.f32 %v883, %v506
    %v958 = vmul.f32 %v885, %v513
    %v959 = vmul.f32 %v887, %v517
    %v960 = vmul.f32 %v889, %v524
    %v961 = vmul.f32 %v891, %v528
    %v962 = vmul.f32 %v893, %v535
    %v963 = vmul.f32 %v895, %v539
    %v964 = vmul.f32 %v897, %v546
    %v965 = vmul.f32 %v899, %v550
    %v966 = vmul.f32 %v901, %v557
    %v967 = vmul.f32 %v903, %v561
    %v968 = vmul.f32 %v904, %v936
    %v969 = vmul.f32 %v905, %v937
    %v970 = vmul.f32 %v906, %v938
    %v971 = vmul.f32 %v907, %v939
    %v972 = vmul.f32 %v908, %v940
    %v973 = vmul.f32 %v909, %v941
    %v974 = vmul.f32 %v910, %v942
    %v975 = vmul.f32 %v911, %v943
    %v976 = vmul.f32 %v912, %v944
    %v977 = vmul.f32 %v913, %v945
    %v978 = vmul.f32 %v914, %v946
    %v979 = vmul.f32 %v915, %v947
    %v980 = vmul.f32 %v916, %v948
    %v981 = vmul.f32 %v917, %v949
    %v982 = vmul.f32 %v918, %v950
    %v983 = vmul.f32 %v919, %v951
    %v984 = vmul.f32 %v920, %v952
    %v985 = vmul.f32 %v921, %v953
    %v986 = vmul.f32 %v922, %v954
    %v987 = vmul.f32 %v923, %v955
    %v988 = vmul.f32 %v924, %v956
    %v989 = vmul.f32 %v925, %v957
    %v990 = vmul.f32 %v926, %v958
    %v991 = vmul.f32 %v927, %v959
    %v992 = vmul.f32 %v928, %v960
    %v993 = vmul.f32 %v929, %v961
    %v994 = vmul.f32 %v930, %v962
    %v995 = vmul.f32 %v931, %v963
    %v996 = vmul.f32 %v932, %v964
    %v997 = vmul.f32 %v933, %v965
    %v998 = vmul.f32 %v934, %v966
    %v999 = vmul.f32 %v935, %v967
    %v1000 = vlaneseq
    %v1001 = vshrl.u32 %v1000, 7
    %v1002 = vsub.s32 0, %v1001
    %v1003 = vrot.slane %v129, %v1002
    %1005 = vbcast.lane.b32.xlu0 %v1003, 256
    %v1006 = vpop.permute.xlu0 %1005
    %s1008 = sor.u32 256, 8
    %1009 = vbcast.lane.b32.xlu0 %v1003, %s1008
    %v1010 = vpop.permute.xlu0 %1009
    %v1011 = vlaneseq
    %v1012 = vshrl.u32 %v1011, 7
    %v1013 = vsub.s32 1, %v1012
    %v1014 = vrot.slane %v129, %v1013
    %1016 = vbcast.lane.b32.xlu0 %v1014, 256
    %v1017 = vpop.permute.xlu0 %1016
    %s1019 = sor.u32 256, 8
    %1020 = vbcast.lane.b32.xlu0 %v1014, %s1019
    %v1021 = vpop.permute.xlu0 %1020
    %v1022 = vlaneseq
    %v1023 = vshrl.u32 %v1022, 7
    %v1024 = vsub.s32 2, %v1023
    %v1025 = vrot.slane %v129, %v1024
    %1027 = vbcast.lane.b32.xlu0 %v1025, 256
    %v1028 = vpop.permute.xlu0 %1027
    %s1030 = sor.u32 256, 8
    %1031 = vbcast.lane.b32.xlu0 %v1025, %s1030
    %v1032 = vpop.permute.xlu0 %1031
    %v1033 = vlaneseq
    %v1034 = vshrl.u32 %v1033, 7
    %v1035 = vsub.s32 3, %v1034
    %v1036 = vrot.slane %v129, %v1035
    %1038 = vbcast.lane.b32.xlu0 %v1036, 256
    %v1039 = vpop.permute.xlu0 %1038
    %s1041 = sor.u32 256, 8
    %1042 = vbcast.lane.b32.xlu0 %v1036, %s1041
    %v1043 = vpop.permute.xlu0 %1042
    %v1044 = vlaneseq
    %v1045 = vshrl.u32 %v1044, 7
    %v1046 = vsub.s32 4, %v1045
    %v1047 = vrot.slane %v129, %v1046
    %1049 = vbcast.lane.b32.xlu0 %v1047, 256
    %v1050 = vpop.permute.xlu0 %1049
    %s1052 = sor.u32 256, 8
    %1053 = vbcast.lane.b32.xlu0 %v1047, %s1052
    %v1054 = vpop.permute.xlu0 %1053
    %v1055 = vlaneseq
    %v1056 = vshrl.u32 %v1055, 7
    %v1057 = vsub.s32 5, %v1056
    %v1058 = vrot.slane %v129, %v1057
    %1060 = vbcast.lane.b32.xlu0 %v1058, 256
    %v1061 = vpop.permute.xlu0 %1060
    %s1063 = sor.u32 256, 8
    %1064 = vbcast.lane.b32.xlu0 %v1058, %s1063
    %v1065 = vpop.permute.xlu0 %1064
    %v1066 = vlaneseq
    %v1067 = vshrl.u32 %v1066, 7
    %v1068 = vsub.s32 6, %v1067
    %v1069 = vrot.slane %v129, %v1068
    %1071 = vbcast.lane.b32.xlu0 %v1069, 256
    %v1072 = vpop.permute.xlu0 %1071
    %s1074 = sor.u32 256, 8
    %1075 = vbcast.lane.b32.xlu0 %v1069, %s1074
    %v1076 = vpop.permute.xlu0 %1075
    %v1077 = vlaneseq
    %v1078 = vshrl.u32 %v1077, 7
    %v1079 = vsub.s32 7, %v1078
    %v1080 = vrot.slane %v129, %v1079
    %1082 = vbcast.lane.b32.xlu0 %v1080, 256
    %v1083 = vpop.permute.xlu0 %1082
    %s1085 = sor.u32 256, 8
    %1086 = vbcast.lane.b32.xlu0 %v1080, %s1085
    %v1087 = vpop.permute.xlu0 %1086
    %v1088 = vlaneseq
    %v1089 = vshrl.u32 %v1088, 7
    %v1090 = vsub.s32 0, %v1089
    %v1091 = vrot.slane %v130, %v1090
    %1093 = vbcast.lane.b32.xlu0 %v1091, 256
    %v1094 = vpop.permute.xlu0 %1093
    %s1096 = sor.u32 256, 8
    %1097 = vbcast.lane.b32.xlu0 %v1091, %s1096
    %v1098 = vpop.permute.xlu0 %1097
    %v1099 = vlaneseq
    %v1100 = vshrl.u32 %v1099, 7
    %v1101 = vsub.s32 1, %v1100
    %v1102 = vrot.slane %v130, %v1101
    %1104 = vbcast.lane.b32.xlu0 %v1102, 256
    %v1105 = vpop.permute.xlu0 %1104
    %s1107 = sor.u32 256, 8
    %1108 = vbcast.lane.b32.xlu0 %v1102, %s1107
    %v1109 = vpop.permute.xlu0 %1108
    %v1110 = vlaneseq
    %v1111 = vshrl.u32 %v1110, 7
    %v1112 = vsub.s32 2, %v1111
    %v1113 = vrot.slane %v130, %v1112
    %1115 = vbcast.lane.b32.xlu0 %v1113, 256
    %v1116 = vpop.permute.xlu0 %1115
    %s1118 = sor.u32 256, 8
    %1119 = vbcast.lane.b32.xlu0 %v1113, %s1118
    %v1120 = vpop.permute.xlu0 %1119
    %v1121 = vlaneseq
    %v1122 = vshrl.u32 %v1121, 7
    %v1123 = vsub.s32 3, %v1122
    %v1124 = vrot.slane %v130, %v1123
    %1126 = vbcast.lane.b32.xlu0 %v1124, 256
    %v1127 = vpop.permute.xlu0 %1126
    %s1129 = sor.u32 256, 8
    %1130 = vbcast.lane.b32.xlu0 %v1124, %s1129
    %v1131 = vpop.permute.xlu0 %1130
    %v1132 = vlaneseq
    %v1133 = vshrl.u32 %v1132, 7
    %v1134 = vsub.s32 4, %v1133
    %v1135 = vrot.slane %v130, %v1134
    %1137 = vbcast.lane.b32.xlu0 %v1135, 256
    %v1138 = vpop.permute.xlu0 %1137
    %s1140 = sor.u32 256, 8
    %1141 = vbcast.lane.b32.xlu0 %v1135, %s1140
    %v1142 = vpop.permute.xlu0 %1141
    %v1143 = vlaneseq
    %v1144 = vshrl.u32 %v1143, 7
    %v1145 = vsub.s32 5, %v1144
    %v1146 = vrot.slane %v130, %v1145
    %1148 = vbcast.lane.b32.xlu0 %v1146, 256
    %v1149 = vpop.permute.xlu0 %1148
    %s1151 = sor.u32 256, 8
    %1152 = vbcast.lane.b32.xlu0 %v1146, %s1151
    %v1153 = vpop.permute.xlu0 %1152
    %v1154 = vlaneseq
    %v1155 = vshrl.u32 %v1154, 7
    %v1156 = vsub.s32 6, %v1155
    %v1157 = vrot.slane %v130, %v1156
    %1159 = vbcast.lane.b32.xlu0 %v1157, 256
    %v1160 = vpop.permute.xlu0 %1159
    %s1162 = sor.u32 256, 8
    %1163 = vbcast.lane.b32.xlu0 %v1157, %s1162
    %v1164 = vpop.permute.xlu0 %1163
    %v1165 = vlaneseq
    %v1166 = vshrl.u32 %v1165, 7
    %v1167 = vsub.s32 7, %v1166
    %v1168 = vrot.slane %v130, %v1167
    %1170 = vbcast.lane.b32.xlu0 %v1168, 256
    %v1171 = vpop.permute.xlu0 %1170
    %s1173 = sor.u32 256, 8
    %1174 = vbcast.lane.b32.xlu0 %v1168, %s1173
    %v1175 = vpop.permute.xlu0 %1174
    %vm1176 = vcmp.gt.f32.partialorder %v1006, 0.5
    %vm1177 = vcmp.gt.f32.partialorder %v1010, 0.5
    %vm1178 = vcmp.gt.f32.partialorder %v1017, 0.5
    %vm1179 = vcmp.gt.f32.partialorder %v1021, 0.5
    %vm1180 = vcmp.gt.f32.partialorder %v1028, 0.5
    %vm1181 = vcmp.gt.f32.partialorder %v1032, 0.5
    %vm1182 = vcmp.gt.f32.partialorder %v1039, 0.5
    %vm1183 = vcmp.gt.f32.partialorder %v1043, 0.5
    %vm1184 = vcmp.gt.f32.partialorder %v1050, 0.5
    %vm1185 = vcmp.gt.f32.partialorder %v1054, 0.5
    %vm1186 = vcmp.gt.f32.partialorder %v1061, 0.5
    %vm1187 = vcmp.gt.f32.partialorder %v1065, 0.5
    %vm1188 = vcmp.gt.f32.partialorder %v1072, 0.5
    %vm1189 = vcmp.gt.f32.partialorder %v1076, 0.5
    %vm1190 = vcmp.gt.f32.partialorder %v1083, 0.5
    %vm1191 = vcmp.gt.f32.partialorder %v1087, 0.5
    %vm1192 = vcmp.gt.f32.partialorder %v1094, 0.5
    %vm1193 = vcmp.gt.f32.partialorder %v1098, 0.5
    %vm1194 = vcmp.gt.f32.partialorder %v1105, 0.5
    %vm1195 = vcmp.gt.f32.partialorder %v1109, 0.5
    %vm1196 = vcmp.gt.f32.partialorder %v1116, 0.5
    %vm1197 = vcmp.gt.f32.partialorder %v1120, 0.5
    %vm1198 = vcmp.gt.f32.partialorder %v1127, 0.5
    %vm1199 = vcmp.gt.f32.partialorder %v1131, 0.5
    %vm1200 = vcmp.gt.f32.partialorder %v1138, 0.5
    %vm1201 = vcmp.gt.f32.partialorder %v1142, 0.5
    %vm1202 = vcmp.gt.f32.partialorder %v1149, 0.5
    %vm1203 = vcmp.gt.f32.partialorder %v1153, 0.5
    %vm1204 = vcmp.gt.f32.partialorder %v1160, 0.5
    %vm1205 = vcmp.gt.f32.partialorder %v1164, 0.5
    %vm1206 = vcmp.gt.f32.partialorder %v1171, 0.5
    %vm1207 = vcmp.gt.f32.partialorder %v1175, 0.5
    %v1208 = vsel %vm1176, 1, 0
    %v1209 = vsel %vm1177, 1, 0
    %v1210 = vsel %vm1178, 1, 0
    %v1211 = vsel %vm1179, 1, 0
    %v1212 = vsel %vm1180, 1, 0
    %v1213 = vsel %vm1181, 1, 0
    %v1214 = vsel %vm1182, 1, 0
    %v1215 = vsel %vm1183, 1, 0
    %v1216 = vsel %vm1184, 1, 0
    %v1217 = vsel %vm1185, 1, 0
    %v1218 = vsel %vm1186, 1, 0
    %v1219 = vsel %vm1187, 1, 0
    %v1220 = vsel %vm1188, 1, 0
    %v1221 = vsel %vm1189, 1, 0
    %v1222 = vsel %vm1190, 1, 0
    %v1223 = vsel %vm1191, 1, 0
    %v1224 = vsel %vm1192, 1, 0
    %v1225 = vsel %vm1193, 1, 0
    %v1226 = vsel %vm1194, 1, 0
    %v1227 = vsel %vm1195, 1, 0
    %v1228 = vsel %vm1196, 1, 0
    %v1229 = vsel %vm1197, 1, 0
    %v1230 = vsel %vm1198, 1, 0
    %v1231 = vsel %vm1199, 1, 0
    %v1232 = vsel %vm1200, 1, 0
    %v1233 = vsel %vm1201, 1, 0
    %v1234 = vsel %vm1202, 1, 0
    %v1235 = vsel %vm1203, 1, 0
    %v1236 = vsel %vm1204, 1, 0
    %v1237 = vsel %vm1205, 1, 0
    %v1238 = vsel %vm1206, 1, 0
    %v1239 = vsel %vm1207, 1, 0
    %vm1240 = vcmp.eq.s32.totalorder %v1208, 1
    %vm1241 = vcmp.eq.s32.totalorder %v1209, 1
    %vm1242 = vcmp.eq.s32.totalorder %v1210, 1
    %vm1243 = vcmp.eq.s32.totalorder %v1211, 1
    %vm1244 = vcmp.eq.s32.totalorder %v1212, 1
    %vm1245 = vcmp.eq.s32.totalorder %v1213, 1
    %vm1246 = vcmp.eq.s32.totalorder %v1214, 1
    %vm1247 = vcmp.eq.s32.totalorder %v1215, 1
    %vm1248 = vcmp.eq.s32.totalorder %v1216, 1
    %vm1249 = vcmp.eq.s32.totalorder %v1217, 1
    %vm1250 = vcmp.eq.s32.totalorder %v1218, 1
    %vm1251 = vcmp.eq.s32.totalorder %v1219, 1
    %vm1252 = vcmp.eq.s32.totalorder %v1220, 1
    %vm1253 = vcmp.eq.s32.totalorder %v1221, 1
    %vm1254 = vcmp.eq.s32.totalorder %v1222, 1
    %vm1255 = vcmp.eq.s32.totalorder %v1223, 1
    %vm1256 = vcmp.eq.s32.totalorder %v1224, 1
    %vm1257 = vcmp.eq.s32.totalorder %v1225, 1
    %vm1258 = vcmp.eq.s32.totalorder %v1226, 1
    %vm1259 = vcmp.eq.s32.totalorder %v1227, 1
    %vm1260 = vcmp.eq.s32.totalorder %v1228, 1
    %vm1261 = vcmp.eq.s32.totalorder %v1229, 1
    %vm1262 = vcmp.eq.s32.totalorder %v1230, 1
    %vm1263 = vcmp.eq.s32.totalorder %v1231, 1
    %vm1264 = vcmp.eq.s32.totalorder %v1232, 1
    %vm1265 = vcmp.eq.s32.totalorder %v1233, 1
    %vm1266 = vcmp.eq.s32.totalorder %v1234, 1
    %vm1267 = vcmp.eq.s32.totalorder %v1235, 1
    %vm1268 = vcmp.eq.s32.totalorder %v1236, 1
    %vm1269 = vcmp.eq.s32.totalorder %v1237, 1
    %vm1270 = vcmp.eq.s32.totalorder %v1238, 1
    %vm1271 = vcmp.eq.s32.totalorder %v1239, 1
    %v1272 = vsel %vm1240, %v968, 1.0
    %v1273 = vsel %vm1241, %v969, 1.0
    %v1274 = vsel %vm1242, %v970, 1.0
    %v1275 = vsel %vm1243, %v971, 1.0
    %v1276 = vsel %vm1244, %v972, 1.0
    %v1277 = vsel %vm1245, %v973, 1.0
    %v1278 = vsel %vm1246, %v974, 1.0
    %v1279 = vsel %vm1247, %v975, 1.0
    %v1280 = vsel %vm1248, %v976, 1.0
    %v1281 = vsel %vm1249, %v977, 1.0
    %v1282 = vsel %vm1250, %v978, 1.0
    %v1283 = vsel %vm1251, %v979, 1.0
    %v1284 = vsel %vm1252, %v980, 1.0
    %v1285 = vsel %vm1253, %v981, 1.0
    %v1286 = vsel %vm1254, %v982, 1.0
    %v1287 = vsel %vm1255, %v983, 1.0
    %v1288 = vsel %vm1256, %v984, 1.0
    %v1289 = vsel %vm1257, %v985, 1.0
    %v1290 = vsel %vm1258, %v986, 1.0
    %v1291 = vsel %vm1259, %v987, 1.0
    %v1292 = vsel %vm1260, %v988, 1.0
    %v1293 = vsel %vm1261, %v989, 1.0
    %v1294 = vsel %vm1262, %v990, 1.0
    %v1295 = vsel %vm1263, %v991, 1.0
    %v1296 = vsel %vm1264, %v992, 1.0
    %v1297 = vsel %vm1265, %v993, 1.0
    %v1298 = vsel %vm1266, %v994, 1.0
    %v1299 = vsel %vm1267, %v995, 1.0
    %v1300 = vsel %vm1268, %v996, 1.0
    %v1301 = vsel %vm1269, %v997, 1.0
    %v1302 = vsel %vm1270, %v998, 1.0
    %v1303 = vsel %vm1271, %v999, 1.0
    %v1304 = vmul.f32 %v1272, %v1273
    %v1305 = vmul.f32 %v1274, %v1275
    %v1306 = vmul.f32 %v1276, %v1277
    %v1307 = vmul.f32 %v1278, %v1279
    %v1308 = vmul.f32 %v1280, %v1281
    %v1309 = vmul.f32 %v1282, %v1283
    %v1310 = vmul.f32 %v1284, %v1285
    %v1311 = vmul.f32 %v1286, %v1287
    %v1312 = vmul.f32 %v1288, %v1289
    %v1313 = vmul.f32 %v1290, %v1291
    %v1314 = vmul.f32 %v1292, %v1293
    %v1315 = vmul.f32 %v1294, %v1295
    %v1316 = vmul.f32 %v1296, %v1297
    %v1317 = vmul.f32 %v1298, %v1299
    %v1318 = vmul.f32 %v1300, %v1301
    %v1319 = vmul.f32 %v1302, %v1303
    %v1336 = vrot.slane %v1304, 4
    %v1337 = vrot.slane %v1305, 4
    %v1338 = vrot.slane %v1306, 4
    %v1339 = vrot.slane %v1307, 4
    %v1340 = vrot.slane %v1308, 4
    %v1341 = vrot.slane %v1309, 4
    %v1342 = vrot.slane %v1310, 4
    %v1343 = vrot.slane %v1311, 4
    %v1344 = vrot.slane %v1312, 4
    %v1345 = vrot.slane %v1313, 4
    %v1346 = vrot.slane %v1314, 4
    %v1347 = vrot.slane %v1315, 4
    %v1348 = vrot.slane %v1316, 4
    %v1349 = vrot.slane %v1317, 4
    %v1350 = vrot.slane %v1318, 4
    %v1351 = vrot.slane %v1319, 4
    %v1368 = vmul.f32 %v1304, %v1336
    %v1369 = vmul.f32 %v1305, %v1337
    %v1370 = vmul.f32 %v1306, %v1338
    %v1371 = vmul.f32 %v1307, %v1339
    %v1372 = vmul.f32 %v1308, %v1340
    %v1373 = vmul.f32 %v1309, %v1341
    %v1374 = vmul.f32 %v1310, %v1342
    %v1375 = vmul.f32 %v1311, %v1343
    %v1376 = vmul.f32 %v1312, %v1344
    %v1377 = vmul.f32 %v1313, %v1345
    %v1378 = vmul.f32 %v1314, %v1346
    %v1379 = vmul.f32 %v1315, %v1347
    %v1380 = vmul.f32 %v1316, %v1348
    %v1381 = vmul.f32 %v1317, %v1349
    %v1382 = vmul.f32 %v1318, %v1350
    %v1383 = vmul.f32 %v1319, %v1351
    %v1400 = vrot.slane %v1368, 2
    %v1401 = vrot.slane %v1369, 2
    %v1402 = vrot.slane %v1370, 2
    %v1403 = vrot.slane %v1371, 2
    %v1404 = vrot.slane %v1372, 2
    %v1405 = vrot.slane %v1373, 2
    %v1406 = vrot.slane %v1374, 2
    %v1407 = vrot.slane %v1375, 2
    %v1408 = vrot.slane %v1376, 2
    %v1409 = vrot.slane %v1377, 2
    %v1410 = vrot.slane %v1378, 2
    %v1411 = vrot.slane %v1379, 2
    %v1412 = vrot.slane %v1380, 2
    %v1413 = vrot.slane %v1381, 2
    %v1414 = vrot.slane %v1382, 2
    %v1415 = vrot.slane %v1383, 2
    %v1432 = vmul.f32 %v1368, %v1400
    %v1433 = vmul.f32 %v1369, %v1401
    %v1434 = vmul.f32 %v1370, %v1402
    %v1435 = vmul.f32 %v1371, %v1403
    %v1436 = vmul.f32 %v1372, %v1404
    %v1437 = vmul.f32 %v1373, %v1405
    %v1438 = vmul.f32 %v1374, %v1406
    %v1439 = vmul.f32 %v1375, %v1407
    %v1440 = vmul.f32 %v1376, %v1408
    %v1441 = vmul.f32 %v1377, %v1409
    %v1442 = vmul.f32 %v1378, %v1410
    %v1443 = vmul.f32 %v1379, %v1411
    %v1444 = vmul.f32 %v1380, %v1412
    %v1445 = vmul.f32 %v1381, %v1413
    %v1446 = vmul.f32 %v1382, %v1414
    %v1447 = vmul.f32 %v1383, %v1415
    %v1464 = vrot.slane %v1432, 1
    %v1465 = vrot.slane %v1433, 1
    %v1466 = vrot.slane %v1434, 1
    %v1467 = vrot.slane %v1435, 1
    %v1468 = vrot.slane %v1436, 1
    %v1469 = vrot.slane %v1437, 1
    %v1470 = vrot.slane %v1438, 1
    %v1471 = vrot.slane %v1439, 1
    %v1472 = vrot.slane %v1440, 1
    %v1473 = vrot.slane %v1441, 1
    %v1474 = vrot.slane %v1442, 1
    %v1475 = vrot.slane %v1443, 1
    %v1476 = vrot.slane %v1444, 1
    %v1477 = vrot.slane %v1445, 1
    %v1478 = vrot.slane %v1446, 1
    %v1479 = vrot.slane %v1447, 1
    %v1496 = vmul.f32 %v1432, %v1464
    %v1497 = vmul.f32 %v1433, %v1465
    %v1498 = vmul.f32 %v1434, %v1466
    %v1499 = vmul.f32 %v1435, %v1467
    %v1500 = vmul.f32 %v1436, %v1468
    %v1501 = vmul.f32 %v1437, %v1469
    %v1502 = vmul.f32 %v1438, %v1470
    %v1503 = vmul.f32 %v1439, %v1471
    %v1504 = vmul.f32 %v1440, %v1472
    %v1505 = vmul.f32 %v1441, %v1473
    %v1506 = vmul.f32 %v1442, %v1474
    %v1507 = vmul.f32 %v1443, %v1475
    %v1508 = vmul.f32 %v1444, %v1476
    %v1509 = vmul.f32 %v1445, %v1477
    %v1510 = vmul.f32 %v1446, %v1478
    %v1511 = vmul.f32 %v1447, %v1479
    %v1512 = vld [vmem:[#allocation2] sm:$0xff]
    %v1513 = vld [vmem:[#allocation2 + $0x8] sm:$0xff]
    %v1530 = vrot.slane %v1497, 7
    %vm1531 = vcmask 1041409
    %v1532 = vsel %vm1531, %v1530, %v1496
    %v1533 = vrot.slane %v1498, 6
    %vm1534 = vcmask 1042434
    %v1535 = vsel %vm1534, %v1533, %v1532
    %v1536 = vrot.slane %v1499, 5
    %vm1537 = vcmask 1043459
    %v1538 = vsel %vm1537, %v1536, %v1535
    %v1539 = vrot.slane %v1500, 4
    %vm1540 = vcmask 1044484
    %v1541 = vsel %vm1540, %v1539, %v1538
    %v1542 = vrot.slane %v1501, 3
    %vm1543 = vcmask 1045509
    %v1544 = vsel %vm1543, %v1542, %v1541
    %v1545 = vrot.slane %v1502, 2
    %vm1546 = vcmask 1046534
    %v1547 = vsel %vm1546, %v1545, %v1544
    %v1548 = vrot.slane %v1503, 1
    %vm1549 = vcmask 1047559
    %v1550 = vsel %vm1549, %v1548, %v1547
    %v1551 = vrot.slane %v1505, 7
    %v1552 = vsel %vm1531, %v1551, %v1504
    %v1553 = vrot.slane %v1506, 6
    %v1554 = vsel %vm1534, %v1553, %v1552
    %v1555 = vrot.slane %v1507, 5
    %v1556 = vsel %vm1537, %v1555, %v1554
    %v1557 = vrot.slane %v1508, 4
    %v1558 = vsel %vm1540, %v1557, %v1556
    %v1559 = vrot.slane %v1509, 3
    %v1560 = vsel %vm1543, %v1559, %v1558
    %v1561 = vrot.slane %v1510, 2
    %v1562 = vsel %vm1546, %v1561, %v1560
    %v1563 = vrot.slane %v1511, 1
    %v1564 = vsel %vm1549, %v1563, %v1562
    %v1567 = vmul.f32 %v1512, %v1550
    %v1568 = vmul.f32 %v1513, %v1564
    %vm1569 = vcmask 523264
    %1570 = vst.msk [vmem:[#allocation2] sm:$0xff] %vm1569, %v1567
    %1571 = vst.msk [vmem:[#allocation2 + $0x8] sm:$0xff] %vm1569, %v1568
    %v1572 = vld [vmem:[#allocation3] sm:$0xff]
    %v1573 = vld [vmem:[#allocation3 + $0x8] sm:$0xff]
    %vm1574 = vcmask 130048
    %v1575 = vsel %vm1574, %v129, 0.0
    %1576 = vadd.xlane.f32.xlu0 %v1575
    %v1577 = vpop.xlane.xlu0 %1576
    %v1578 = vsel %vm1574, %v130, 0.0
    %1579 = vadd.xlane.f32.xlu0 %v1578
    %v1580 = vpop.xlane.xlu0 %1579
    %v1581 = vadd.f32 %v1572, %v1577
    %v1582 = vadd.f32 %v1573, %v1580
    %vm1583 = vcmask 7168
    %1584 = vst.msk [vmem:[#allocation3] sm:$0xff] %vm1583, %v1581
    %1585 = vst.msk [vmem:[#allocation3 + $0x8] sm:$0xff] %vm1583, %v1582
    %s1586 = scalar_lea.vmem [#allocation10], 16
    %v1587 = vld [vmem:[%s1586] sm:$0xff]
    %v1588 = vld [vmem:[%s1586 + $0x8] sm:$0xff]
    %s1589 = scalar_lea.vmem [#allocation12], 16
    %v1590 = vld [vmem:[%s1589] sm:$0xff]
    %v1591 = vld [vmem:[%s1589 + $0x8] sm:$0xff]
    %s1592 = scalar_lea.vmem [#allocation4], 16
    %v1593 = vld [vmem:[%s1592] sm:$0xff]
    %v1594 = vld [vmem:[%s1592 + $0x8] sm:$0xff]
    %s1595 = scalar_lea.vmem [#allocation9], 256
    %v1596 = vld [vmem:[%s1595] sm:$0xff]
    %v1597 = vld [vmem:[%s1595 + $0x8] sm:$0xff]
    %v1598 = vld [vmem:[%s1595 + $0x10] sm:$0xff]
    %v1599 = vld [vmem:[%s1595 + $0x18] sm:$0xff]
    %v1600 = vld [vmem:[%s1595 + $0x20] sm:$0xff]
    %v1601 = vld [vmem:[%s1595 + $0x28] sm:$0xff]
    %v1602 = vld [vmem:[%s1595 + $0x30] sm:$0xff]
    %v1603 = vld [vmem:[%s1595 + $0x38] sm:$0xff]
    %v1604 = vld [vmem:[%s1595 + $0x40] sm:$0xff]
    %v1605 = vld [vmem:[%s1595 + $0x48] sm:$0xff]
    %v1606 = vld [vmem:[%s1595 + $0x50] sm:$0xff]
    %v1607 = vld [vmem:[%s1595 + $0x58] sm:$0xff]
    %v1608 = vld [vmem:[%s1595 + $0x60] sm:$0xff]
    %v1609 = vld [vmem:[%s1595 + $0x68] sm:$0xff]
    %v1610 = vld [vmem:[%s1595 + $0x70] sm:$0xff]
    %v1611 = vld [vmem:[%s1595 + $0x78] sm:$0xff]
    %v1612 = vld [vmem:[%s1595 + $0x80] sm:$0xff]
    %v1613 = vld [vmem:[%s1595 + $0x88] sm:$0xff]
    %v1614 = vld [vmem:[%s1595 + $0x90] sm:$0xff]
    %v1615 = vld [vmem:[%s1595 + $0x98] sm:$0xff]
    %v1616 = vld [vmem:[%s1595 + $0xa0] sm:$0xff]
    %v1617 = vld [vmem:[%s1595 + $0xa8] sm:$0xff]
    %v1618 = vld [vmem:[%s1595 + $0xb0] sm:$0xff]
    %v1619 = vld [vmem:[%s1595 + $0xb8] sm:$0xff]
    %v1620 = vld [vmem:[%s1595 + $0xc0] sm:$0xff]
    %v1621 = vld [vmem:[%s1595 + $0xc8] sm:$0xff]
    %v1622 = vld [vmem:[%s1595 + $0xd0] sm:$0xff]
    %v1623 = vld [vmem:[%s1595 + $0xd8] sm:$0xff]
    %v1624 = vld [vmem:[%s1595 + $0xe0] sm:$0xff]
    %v1625 = vld [vmem:[%s1595 + $0xe8] sm:$0xff]
    %v1626 = vld [vmem:[%s1595 + $0xf0] sm:$0xff]
    %v1627 = vld [vmem:[%s1595 + $0xf8] sm:$0xff]
    %vm1628 = vcmp.lt.f32.partialorder %v1587, 5.0
    %vm1629 = vcmp.lt.f32.partialorder %v1588, 5.0
    %v1630 = vmul.f32 %v1587, 3.1415927
    %v1631 = vmul.f32 %v1588, 3.1415927
    %v1632 = vmul.f32 %v1630, %v169
    %v1633 = vmul.f32 %v1631, %v169
    %v1634 = vand.u32 2147483647, %v1632
    %vm1635 = vcmp.le.f32.partialorder %v1634, 0.7853982
    %vm1636 = vcmp.lt.s32.totalorder %v1632, 0
    %v1637 = vand.u32 %v1632, 2139095040
    %v1638 = vshrl.u32 %v1637, 23
    %v1639 = vsub.s32 %v1638, 127
    %v1640 = vand.u32 2147483647, %v1632
    %v1641 = vand.u32 %v1640, 8388607
    %v1642 = vor.u32 %v1641, 8388608
    %v1643 = vsub.s32 0, %v1642
    %v1644 = vadd.s32 %v1639, 1
    %vm1645 = vcmp.gt.s32.totalorder %v1644, 0
    %v1646 = vsel %vm1645, %v1644, 0
    %v1647 = vshrl.u32 %v1646, 5
    %v1648 = vand.u32 %v1646, 31
    %v1649 = vsub.s32 32, %v1648
    %v1650 = vshrl.u32 683565275, %v1649
    %v1651 = vshll.u32 683565275, %v1648
    %v1652 = vshrl.u32 2475754826, %v1649
    %v1653 = vor.u32 %v1651, %v1652
    %v1654 = vshll.u32 2475754826, %v1648
    %v1655 = vshrl.u32 2131351028, %v1649
    %v1656 = vor.u32 %v1654, %v1655
    %v1657 = vshll.u32 2131351028, %v1648
    %v1658 = vshrl.u32 2102212464, %v1649
    %v1659 = vor.u32 %v1657, %v1658
    %v1660 = vshll.u32 2102212464, %v1648
    %v1661 = vshrl.u32 920167782, %v1649
    %v1662 = vor.u32 %v1660, %v1661
    %v1663 = vshll.u32 920167782, %v1648
    %v1664 = vshrl.u32 1326507024, %v1649
    %v1665 = vor.u32 %v1663, %v1664
    %vm1666 = vcmp.lt.s32.totalorder %v1647, 1
    %vm1667 = vcmp.lt.s32.totalorder %v1647, 2
    %vm1668 = vcmp.lt.s32.totalorder %v1647, 3
    %vm1669 = vcmp.lt.s32.totalorder %v1647, 4
    %v1670 = vsel %vm1666, %v1650, %v1653
    %v1671 = vsel %vm1669, %v1659, 2102212464
    %v1672 = vsel %vm1668, %v1656, %v1671
    %v1673 = vsel %vm1667, %v1670, %v1672
    %v1674 = vsel %vm1666, %v1653, %v1656
    %v1675 = vsel %vm1669, %v1662, 920167782
    %v1676 = vsel %vm1668, %v1659, %v1675
    %v1677 = vsel %vm1667, %v1674, %v1676
    %v1678 = vsel %vm1666, %v1656, %v1659
    %v1679 = vsel %vm1669, %v1665, 1326507024
    %v1680 = vsel %vm1668, %v1662, %v1679
    %v1681 = vsel %vm1667, %v1678, %v1680
    %v1682 = vshll.u32 %v1642, 8
    %v1683 = vmul.u32.u64.compose %v1682, %v1681
    %v1684 = vextract.low.u32 %v1683
    %v1685 = vextract.high.u32 %v1683
    %v1686 = vmul.u32.u64.compose %v1682, %v1677
    %v1687 = vextract.low.u32 %v1686
    %v1688 = vextract.high.u32 %v1686
    %v1689 = vmul.u32 %v1682, %v1673
    %v1690 = vadd.s32 %v1685, %v1687
    %vm1691 = vc.u32 %v1685, %v1687
    %v1692 = vadd.s32 %v1688, 1
    %v1693 = vsel %vm1691, %v1692, %v1688
    %v1694 = vadd.s32 %v1689, %v1693
    %v1695 = vadd.s32 %v1694, 536870912
    %v1696 = vshrl.u32 %v1695, 30
    %v1697 = vshll.u32 %v1696, 30
    %v1698 = vsub.s32 %v1694, %v1697
    %vm1699 = vcmp.lt.s32.totalorder %v1698, 0
    %v1700 = vsub.s32 0, %v1698
    %v1701 = vsel %vm1699, %v1700, %v1698
    %v1702 = vclz %v1701
    %v1703 = vsub.s32 %v1702, 2
    %vm1704 = vcmp.gt.s32.totalorder 0, %v1703
    %v1705 = vsel %vm1704, 0, %v1703
    %v1706 = vsub.s32 32, %v1705
    %v1707 = vshll.u32 %v1698, %v1705
    %v1708 = vshrl.u32 %v1690, %v1706
    %v1709 = vor.u32 %v1707, %v1708
    %v1710 = vsub.s32 4294967266, %v1705
    %v1711 = vadd.s32 %v1710, 127
    %v1712 = vshll.u32 %v1711, 23
    %v1713 = vor.u32 4788187, %v1712
    %v1714 = vand.u32 2147483647, %v1713
    %v1716 = vcvt.s32.f32 %v1709
    %v1717 = vmul.f32 %v1716, %v1714
    %v1718 = vxor.u32 %v1717, 2147483648
    %v1719 = vsel %vm1636, %v1718, %v1717
    %v1720 = vsub.s32 4, %v1696
    %v1721 = vsel %vm1636, %v1720, %v1696
    %v1722 = vsel %vm1635, %v1632, %v1719
    %v1723 = vsel %vm1635, 0, %v1721
    %v1724 = vcosq.f32.pop %v1722
    %v1725 = vsinq.f32.pop %v1722
    %vm1726 = vweird.f32 %v1632
    %v1727 = vand.u32 %v1723, 3
    %vm1728 = vcmp.lt.s32.totalorder %v1727, 2
    %vm1729 = vcmp.eq.s32.totalorder %v1727, 0
    %v1730 = vxor.u32 %v1725, 2147483648
    %v1731 = vsel %vm1729, %v1724, %v1730
    %vm1732 = vcmp.eq.s32.totalorder %v1727, 2
    %v1733 = vxor.u32 %v1724, 2147483648
    %v1734 = vsel %vm1732, %v1733, %v1725
    %v1735 = vsel %vm1728, %v1731, %v1734
    %v1736 = vsel %vm1726, nan, %v1735
    %v1737 = vand.u32 2147483647, %v1633
    %vm1738 = vcmp.le.f32.partialorder %v1737, 0.7853982
    %vm1739 = vcmp.lt.s32.totalorder %v1633, 0
    %v1740 = vand.u32 %v1633, 2139095040
    %v1741 = vshrl.u32 %v1740, 23
    %v1742 = vsub.s32 %v1741, 127
    %v1743 = vand.u32 2147483647, %v1633
    %v1744 = vand.u32 %v1743, 8388607
    %v1745 = vor.u32 %v1744, 8388608
    %v1746 = vsub.s32 0, %v1745
    %v1747 = vadd.s32 %v1742, 1
    %vm1748 = vcmp.gt.s32.totalorder %v1747, 0
    %v1749 = vsel %vm1748, %v1747, 0
    %v1750 = vshrl.u32 %v1749, 5
    %v1751 = vand.u32 %v1749, 31
    %v1752 = vsub.s32 32, %v1751
    %v1753 = vshrl.u32 683565275, %v1752
    %v1754 = vshll.u32 683565275, %v1751
    %v1755 = vshrl.u32 2475754826, %v1752
    %v1756 = vor.u32 %v1754, %v1755
    %v1757 = vshll.u32 2475754826, %v1751
    %v1758 = vshrl.u32 2131351028, %v1752
    %v1759 = vor.u32 %v1757, %v1758
    %v1760 = vshll.u32 2131351028, %v1751
    %v1761 = vshrl.u32 2102212464, %v1752
    %v1762 = vor.u32 %v1760, %v1761
    %v1763 = vshll.u32 2102212464, %v1751
    %v1764 = vshrl.u32 920167782, %v1752
    %v1765 = vor.u32 %v1763, %v1764
    %v1766 = vshll.u32 920167782, %v1751
    %v1767 = vshrl.u32 1326507024, %v1752
    %v1768 = vor.u32 %v1766, %v1767
    %vm1769 = vcmp.lt.s32.totalorder %v1750, 1
    %vm1770 = vcmp.lt.s32.totalorder %v1750, 2
    %vm1771 = vcmp.lt.s32.totalorder %v1750, 3
    %vm1772 = vcmp.lt.s32.totalorder %v1750, 4
    %v1773 = vsel %vm1769, %v1753, %v1756
    %v1774 = vsel %vm1772, %v1762, 2102212464
    %v1775 = vsel %vm1771, %v1759, %v1774
    %v1776 = vsel %vm1770, %v1773, %v1775
    %v1777 = vsel %vm1769, %v1756, %v1759
    %v1778 = vsel %vm1772, %v1765, 920167782
    %v1779 = vsel %vm1771, %v1762, %v1778
    %v1780 = vsel %vm1770, %v1777, %v1779
    %v1781 = vsel %vm1769, %v1759, %v1762
    %v1782 = vsel %vm1772, %v1768, 1326507024
    %v1783 = vsel %vm1771, %v1765, %v1782
    %v1784 = vsel %vm1770, %v1781, %v1783
    %v1785 = vshll.u32 %v1745, 8
    %v1786 = vmul.u32.u64.compose %v1785, %v1784
    %v1787 = vextract.low.u32 %v1786
    %v1788 = vextract.high.u32 %v1786
    %v1789 = vmul.u32.u64.compose %v1785, %v1780
    %v1790 = vextract.low.u32 %v1789
    %v1791 = vextract.high.u32 %v1789
    %v1792 = vmul.u32 %v1785, %v1776
    %v1793 = vadd.s32 %v1788, %v1790
    %vm1794 = vc.u32 %v1788, %v1790
    %v1795 = vadd.s32 %v1791, 1
    %v1796 = vsel %vm1794, %v1795, %v1791
    %v1797 = vadd.s32 %v1792, %v1796
    %v1798 = vadd.s32 %v1797, 536870912
    %v1799 = vshrl.u32 %v1798, 30
    %v1800 = vshll.u32 %v1799, 30
    %v1801 = vsub.s32 %v1797, %v1800
    %vm1802 = vcmp.lt.s32.totalorder %v1801, 0
    %v1803 = vsub.s32 0, %v1801
    %v1804 = vsel %vm1802, %v1803, %v1801
    %v1805 = vclz %v1804
    %v1806 = vsub.s32 %v1805, 2
    %vm1807 = vcmp.gt.s32.totalorder 0, %v1806
    %v1808 = vsel %vm1807, 0, %v1806
    %v1809 = vsub.s32 32, %v1808
    %v1810 = vshll.u32 %v1801, %v1808
    %v1811 = vshrl.u32 %v1793, %v1809
    %v1812 = vor.u32 %v1810, %v1811
    %v1813 = vsub.s32 4294967266, %v1808
    %v1814 = vadd.s32 %v1813, 127
    %v1815 = vshll.u32 %v1814, 23
    %v1816 = vor.u32 4788187, %v1815
    %v1817 = vand.u32 2147483647, %v1816
    %v1819 = vcvt.s32.f32 %v1812
    %v1820 = vmul.f32 %v1819, %v1817
    %v1821 = vxor.u32 %v1820, 2147483648
    %v1822 = vsel %vm1739, %v1821, %v1820
    %v1823 = vsub.s32 4, %v1799
    %v1824 = vsel %vm1739, %v1823, %v1799
    %v1825 = vsel %vm1738, %v1633, %v1822
    %v1826 = vsel %vm1738, 0, %v1824
    %v1827 = vcosq.f32.pop %v1825
    %v1828 = vsinq.f32.pop %v1825
    %vm1829 = vweird.f32 %v1633
    %v1830 = vand.u32 %v1826, 3
    %vm1831 = vcmp.lt.s32.totalorder %v1830, 2
    %vm1832 = vcmp.eq.s32.totalorder %v1830, 0
    %v1833 = vxor.u32 %v1828, 2147483648
    %v1834 = vsel %vm1832, %v1827, %v1833
    %vm1835 = vcmp.eq.s32.totalorder %v1830, 2
    %v1836 = vxor.u32 %v1827, 2147483648
    %v1837 = vsel %vm1835, %v1836, %v1828
    %v1838 = vsel %vm1831, %v1834, %v1837
    %v1839 = vsel %vm1829, nan, %v1838
    %v1840 = vadd.f32 %v1736, 1.0
    %v1841 = vadd.f32 %v1839, 1.0
    %v1842 = vmul.f32 %v1840, 0.5
    %v1843 = vmul.f32 %v1841, 0.5
    %v1844 = vsel %vm1628, %v1842, 0.0
    %v1845 = vsel %vm1629, %v1843, 0.0
    %v1846 = vmul.f32 %v1844, %v1844
    %v1847 = vmul.f32 %v1845, %v1845
    %v1848 = vlaneseq
    %v1849 = vshrl.u32 %v1848, 7
    %v1850 = vsub.s32 0, %v1849
    %v1851 = vrot.slane %v1846, %v1850
    %1853 = vbcast.lane.b32.xlu0 %v1851, 256
    %v1854 = vpop.permute.xlu0 %1853
    %s1856 = sor.u32 256, 8
    %1857 = vbcast.lane.b32.xlu0 %v1851, %s1856
    %v1858 = vpop.permute.xlu0 %1857
    %v1859 = vlaneseq
    %v1860 = vshrl.u32 %v1859, 7
    %v1861 = vsub.s32 1, %v1860
    %v1862 = vrot.slane %v1846, %v1861
    %1864 = vbcast.lane.b32.xlu0 %v1862, 256
    %v1865 = vpop.permute.xlu0 %1864
    %s1867 = sor.u32 256, 8
    %1868 = vbcast.lane.b32.xlu0 %v1862, %s1867
    %v1869 = vpop.permute.xlu0 %1868
    %v1870 = vlaneseq
    %v1871 = vshrl.u32 %v1870, 7
    %v1872 = vsub.s32 2, %v1871
    %v1873 = vrot.slane %v1846, %v1872
    %1875 = vbcast.lane.b32.xlu0 %v1873, 256
    %v1876 = vpop.permute.xlu0 %1875
    %s1878 = sor.u32 256, 8
    %1879 = vbcast.lane.b32.xlu0 %v1873, %s1878
    %v1880 = vpop.permute.xlu0 %1879
    %v1881 = vlaneseq
    %v1882 = vshrl.u32 %v1881, 7
    %v1883 = vsub.s32 3, %v1882
    %v1884 = vrot.slane %v1846, %v1883
    %1886 = vbcast.lane.b32.xlu0 %v1884, 256
    %v1887 = vpop.permute.xlu0 %1886
    %s1889 = sor.u32 256, 8
    %1890 = vbcast.lane.b32.xlu0 %v1884, %s1889
    %v1891 = vpop.permute.xlu0 %1890
    %v1892 = vlaneseq
    %v1893 = vshrl.u32 %v1892, 7
    %v1894 = vsub.s32 4, %v1893
    %v1895 = vrot.slane %v1846, %v1894
    %1897 = vbcast.lane.b32.xlu0 %v1895, 256
    %v1898 = vpop.permute.xlu0 %1897
    %s1900 = sor.u32 256, 8
    %1901 = vbcast.lane.b32.xlu0 %v1895, %s1900
    %v1902 = vpop.permute.xlu0 %1901
    %v1903 = vlaneseq
    %v1904 = vshrl.u32 %v1903, 7
    %v1905 = vsub.s32 5, %v1904
    %v1906 = vrot.slane %v1846, %v1905
    %1908 = vbcast.lane.b32.xlu0 %v1906, 256
    %v1909 = vpop.permute.xlu0 %1908
    %s1911 = sor.u32 256, 8
    %1912 = vbcast.lane.b32.xlu0 %v1906, %s1911
    %v1913 = vpop.permute.xlu0 %1912
    %v1914 = vlaneseq
    %v1915 = vshrl.u32 %v1914, 7
    %v1916 = vsub.s32 6, %v1915
    %v1917 = vrot.slane %v1846, %v1916
    %1919 = vbcast.lane.b32.xlu0 %v1917, 256
    %v1920 = vpop.permute.xlu0 %1919
    %s1922 = sor.u32 256, 8
    %1923 = vbcast.lane.b32.xlu0 %v1917, %s1922
    %v1924 = vpop.permute.xlu0 %1923
    %v1925 = vlaneseq
    %v1926 = vshrl.u32 %v1925, 7
    %v1927 = vsub.s32 7, %v1926
    %v1928 = vrot.slane %v1846, %v1927
    %1930 = vbcast.lane.b32.xlu0 %v1928, 256
    %v1931 = vpop.permute.xlu0 %1930
    %s1933 = sor.u32 256, 8
    %1934 = vbcast.lane.b32.xlu0 %v1928, %s1933
    %v1935 = vpop.permute.xlu0 %1934
    %v1936 = vlaneseq
    %v1937 = vshrl.u32 %v1936, 7
    %v1938 = vsub.s32 0, %v1937
    %v1939 = vrot.slane %v1847, %v1938
    %1941 = vbcast.lane.b32.xlu0 %v1939, 256
    %v1942 = vpop.permute.xlu0 %1941
    %s1944 = sor.u32 256, 8
    %1945 = vbcast.lane.b32.xlu0 %v1939, %s1944
    %v1946 = vpop.permute.xlu0 %1945
    %v1947 = vlaneseq
    %v1948 = vshrl.u32 %v1947, 7
    %v1949 = vsub.s32 1, %v1948
    %v1950 = vrot.slane %v1847, %v1949
    %1952 = vbcast.lane.b32.xlu0 %v1950, 256
    %v1953 = vpop.permute.xlu0 %1952
    %s1955 = sor.u32 256, 8
    %1956 = vbcast.lane.b32.xlu0 %v1950, %s1955
    %v1957 = vpop.permute.xlu0 %1956
    %v1958 = vlaneseq
    %v1959 = vshrl.u32 %v1958, 7
    %v1960 = vsub.s32 2, %v1959
    %v1961 = vrot.slane %v1847, %v1960
    %1963 = vbcast.lane.b32.xlu0 %v1961, 256
    %v1964 = vpop.permute.xlu0 %1963
    %s1966 = sor.u32 256, 8
    %1967 = vbcast.lane.b32.xlu0 %v1961, %s1966
    %v1968 = vpop.permute.xlu0 %1967
    %v1969 = vlaneseq
    %v1970 = vshrl.u32 %v1969, 7
    %v1971 = vsub.s32 3, %v1970
    %v1972 = vrot.slane %v1847, %v1971
    %1974 = vbcast.lane.b32.xlu0 %v1972, 256
    %v1975 = vpop.permute.xlu0 %1974
    %s1977 = sor.u32 256, 8
    %1978 = vbcast.lane.b32.xlu0 %v1972, %s1977
    %v1979 = vpop.permute.xlu0 %1978
    %v1980 = vlaneseq
    %v1981 = vshrl.u32 %v1980, 7
    %v1982 = vsub.s32 4, %v1981
    %v1983 = vrot.slane %v1847, %v1982
    %1985 = vbcast.lane.b32.xlu0 %v1983, 256
    %v1986 = vpop.permute.xlu0 %1985
    %s1988 = sor.u32 256, 8
    %1989 = vbcast.lane.b32.xlu0 %v1983, %s1988
    %v1990 = vpop.permute.xlu0 %1989
    %v1991 = vlaneseq
    %v1992 = vshrl.u32 %v1991, 7
    %v1993 = vsub.s32 5, %v1992
    %v1994 = vrot.slane %v1847, %v1993
    %1996 = vbcast.lane.b32.xlu0 %v1994, 256
    %v1997 = vpop.permute.xlu0 %1996
    %s1999 = sor.u32 256, 8
    %2000 = vbcast.lane.b32.xlu0 %v1994, %s1999
    %v2001 = vpop.permute.xlu0 %2000
    %v2002 = vlaneseq
    %v2003 = vshrl.u32 %v2002, 7
    %v2004 = vsub.s32 6, %v2003
    %v2005 = vrot.slane %v1847, %v2004
    %2007 = vbcast.lane.b32.xlu0 %v2005, 256
    %v2008 = vpop.permute.xlu0 %2007
    %s2010 = sor.u32 256, 8
    %2011 = vbcast.lane.b32.xlu0 %v2005, %s2010
    %v2012 = vpop.permute.xlu0 %2011
    %v2013 = vlaneseq
    %v2014 = vshrl.u32 %v2013, 7
    %v2015 = vsub.s32 7, %v2014
    %v2016 = vrot.slane %v1847, %v2015
    %2018 = vbcast.lane.b32.xlu0 %v2016, 256
    %v2019 = vpop.permute.xlu0 %2018
    %s2021 = sor.u32 256, 8
    %2022 = vbcast.lane.b32.xlu0 %v2016, %s2021
    %v2023 = vpop.permute.xlu0 %2022
    %v2024 = vlaneseq
    %v2025 = vshrl.u32 %v2024, 7
    %v2026 = vsub.s32 0, %v2025
    %v2027 = vrot.slane %v1587, %v2026
    %2029 = vbcast.lane.b32.xlu0 %v2027, 256
    %v2030 = vpop.permute.xlu0 %2029
    %s2032 = sor.u32 256, 8
    %2033 = vbcast.lane.b32.xlu0 %v2027, %s2032
    %v2034 = vpop.permute.xlu0 %2033
    %v2035 = vlaneseq
    %v2036 = vshrl.u32 %v2035, 7
    %v2037 = vsub.s32 1, %v2036
    %v2038 = vrot.slane %v1587, %v2037
    %2040 = vbcast.lane.b32.xlu0 %v2038, 256
    %v2041 = vpop.permute.xlu0 %2040
    %s2043 = sor.u32 256, 8
    %2044 = vbcast.lane.b32.xlu0 %v2038, %s2043
    %v2045 = vpop.permute.xlu0 %2044
    %v2046 = vlaneseq
    %v2047 = vshrl.u32 %v2046, 7
    %v2048 = vsub.s32 2, %v2047
    %v2049 = vrot.slane %v1587, %v2048
    %2051 = vbcast.lane.b32.xlu0 %v2049, 256
    %v2052 = vpop.permute.xlu0 %2051
    %s2054 = sor.u32 256, 8
    %2055 = vbcast.lane.b32.xlu0 %v2049, %s2054
    %v2056 = vpop.permute.xlu0 %2055
    %v2057 = vlaneseq
    %v2058 = vshrl.u32 %v2057, 7
    %v2059 = vsub.s32 3, %v2058
    %v2060 = vrot.slane %v1587, %v2059
    %2062 = vbcast.lane.b32.xlu0 %v2060, 256
    %v2063 = vpop.permute.xlu0 %2062
    %s2065 = sor.u32 256, 8
    %2066 = vbcast.lane.b32.xlu0 %v2060, %s2065
    %v2067 = vpop.permute.xlu0 %2066
    %v2068 = vlaneseq
    %v2069 = vshrl.u32 %v2068, 7
    %v2070 = vsub.s32 4, %v2069
    %v2071 = vrot.slane %v1587, %v2070
    %2073 = vbcast.lane.b32.xlu0 %v2071, 256
    %v2074 = vpop.permute.xlu0 %2073
    %s2076 = sor.u32 256, 8
    %2077 = vbcast.lane.b32.xlu0 %v2071, %s2076
    %v2078 = vpop.permute.xlu0 %2077
    %v2079 = vlaneseq
    %v2080 = vshrl.u32 %v2079, 7
    %v2081 = vsub.s32 5, %v2080
    %v2082 = vrot.slane %v1587, %v2081
    %2084 = vbcast.lane.b32.xlu0 %v2082, 256
    %v2085 = vpop.permute.xlu0 %2084
    %s2087 = sor.u32 256, 8
    %2088 = vbcast.lane.b32.xlu0 %v2082, %s2087
    %v2089 = vpop.permute.xlu0 %2088
    %v2090 = vlaneseq
    %v2091 = vshrl.u32 %v2090, 7
    %v2092 = vsub.s32 6, %v2091
    %v2093 = vrot.slane %v1587, %v2092
    %2095 = vbcast.lane.b32.xlu0 %v2093, 256
    %v2096 = vpop.permute.xlu0 %2095
    %s2098 = sor.u32 256, 8
    %2099 = vbcast.lane.b32.xlu0 %v2093, %s2098
    %v2100 = vpop.permute.xlu0 %2099
    %v2101 = vlaneseq
    %v2102 = vshrl.u32 %v2101, 7
    %v2103 = vsub.s32 7, %v2102
    %v2104 = vrot.slane %v1587, %v2103
    %2106 = vbcast.lane.b32.xlu0 %v2104, 256
    %v2107 = vpop.permute.xlu0 %2106
    %s2109 = sor.u32 256, 8
    %2110 = vbcast.lane.b32.xlu0 %v2104, %s2109
    %v2111 = vpop.permute.xlu0 %2110
    %v2112 = vlaneseq
    %v2113 = vshrl.u32 %v2112, 7
    %v2114 = vsub.s32 0, %v2113
    %v2115 = vrot.slane %v1588, %v2114
    %2117 = vbcast.lane.b32.xlu0 %v2115, 256
    %v2118 = vpop.permute.xlu0 %2117
    %s2120 = sor.u32 256, 8
    %2121 = vbcast.lane.b32.xlu0 %v2115, %s2120
    %v2122 = vpop.permute.xlu0 %2121
    %v2123 = vlaneseq
    %v2124 = vshrl.u32 %v2123, 7
    %v2125 = vsub.s32 1, %v2124
    %v2126 = vrot.slane %v1588, %v2125
    %2128 = vbcast.lane.b32.xlu0 %v2126, 256
    %v2129 = vpop.permute.xlu0 %2128
    %s2131 = sor.u32 256, 8
    %2132 = vbcast.lane.b32.xlu0 %v2126, %s2131
    %v2133 = vpop.permute.xlu0 %2132
    %v2134 = vlaneseq
    %v2135 = vshrl.u32 %v2134, 7
    %v2136 = vsub.s32 2, %v2135
    %v2137 = vrot.slane %v1588, %v2136
    %2139 = vbcast.lane.b32.xlu0 %v2137, 256
    %v2140 = vpop.permute.xlu0 %2139
    %s2142 = sor.u32 256, 8
    %2143 = vbcast.lane.b32.xlu0 %v2137, %s2142
    %v2144 = vpop.permute.xlu0 %2143
    %v2145 = vlaneseq
    %v2146 = vshrl.u32 %v2145, 7
    %v2147 = vsub.s32 3, %v2146
    %v2148 = vrot.slane %v1588, %v2147
    %2150 = vbcast.lane.b32.xlu0 %v2148, 256
    %v2151 = vpop.permute.xlu0 %2150
    %s2153 = sor.u32 256, 8
    %2154 = vbcast.lane.b32.xlu0 %v2148, %s2153
    %v2155 = vpop.permute.xlu0 %2154
    %v2156 = vlaneseq
    %v2157 = vshrl.u32 %v2156, 7
    %v2158 = vsub.s32 4, %v2157
    %v2159 = vrot.slane %v1588, %v2158
    %2161 = vbcast.lane.b32.xlu0 %v2159, 256
    %v2162 = vpop.permute.xlu0 %2161
    %s2164 = sor.u32 256, 8
    %2165 = vbcast.lane.b32.xlu0 %v2159, %s2164
    %v2166 = vpop.permute.xlu0 %2165
    %v2167 = vlaneseq
    %v2168 = vshrl.u32 %v2167, 7
    %v2169 = vsub.s32 5, %v2168
    %v2170 = vrot.slane %v1588, %v2169
    %2172 = vbcast.lane.b32.xlu0 %v2170, 256
    %v2173 = vpop.permute.xlu0 %2172
    %s2175 = sor.u32 256, 8
    %2176 = vbcast.lane.b32.xlu0 %v2170, %s2175
    %v2177 = vpop.permute.xlu0 %2176
    %v2178 = vlaneseq
    %v2179 = vshrl.u32 %v2178, 7
    %v2180 = vsub.s32 6, %v2179
    %v2181 = vrot.slane %v1588, %v2180
    %2183 = vbcast.lane.b32.xlu0 %v2181, 256
    %v2184 = vpop.permute.xlu0 %2183
    %s2186 = sor.u32 256, 8
    %2187 = vbcast.lane.b32.xlu0 %v2181, %s2186
    %v2188 = vpop.permute.xlu0 %2187
    %v2189 = vlaneseq
    %v2190 = vshrl.u32 %v2189, 7
    %v2191 = vsub.s32 7, %v2190
    %v2192 = vrot.slane %v1588, %v2191
    %2194 = vbcast.lane.b32.xlu0 %v2192, 256
    %v2195 = vpop.permute.xlu0 %2194
    %s2197 = sor.u32 256, 8
    %2198 = vbcast.lane.b32.xlu0 %v2192, %s2197
    %v2199 = vpop.permute.xlu0 %2198
    %v2200 = vsub.f32 %v2030, %v742
    %v2201 = vsub.f32 %v2034, %v742
    %v2202 = vsub.f32 %v2041, %v742
    %v2203 = vsub.f32 %v2045, %v742
    %v2204 = vsub.f32 %v2052, %v742
    %v2205 = vsub.f32 %v2056, %v742
    %v2206 = vsub.f32 %v2063, %v742
    %v2207 = vsub.f32 %v2067, %v742
    %v2208 = vsub.f32 %v2074, %v742
    %v2209 = vsub.f32 %v2078, %v742
    %v2210 = vsub.f32 %v2085, %v742
    %v2211 = vsub.f32 %v2089, %v742
    %v2212 = vsub.f32 %v2096, %v742
    %v2213 = vsub.f32 %v2100, %v742
    %v2214 = vsub.f32 %v2107, %v742
    %v2215 = vsub.f32 %v2111, %v742
    %v2216 = vsub.f32 %v2118, %v742
    %v2217 = vsub.f32 %v2122, %v742
    %v2218 = vsub.f32 %v2129, %v742
    %v2219 = vsub.f32 %v2133, %v742
    %v2220 = vsub.f32 %v2140, %v742
    %v2221 = vsub.f32 %v2144, %v742
    %v2222 = vsub.f32 %v2151, %v742
    %v2223 = vsub.f32 %v2155, %v742
    %v2224 = vsub.f32 %v2162, %v742
    %v2225 = vsub.f32 %v2166, %v742
    %v2226 = vsub.f32 %v2173, %v742
    %v2227 = vsub.f32 %v2177, %v742
    %v2228 = vsub.f32 %v2184, %v742
    %v2229 = vsub.f32 %v2188, %v742
    %v2230 = vsub.f32 %v2195, %v742
    %v2231 = vsub.f32 %v2199, %v742
    %v2232 = vmul.f32 %v2200, %v2200
    %v2233 = vmul.f32 %v2201, %v2201
    %v2234 = vmul.f32 %v2202, %v2202
    %v2235 = vmul.f32 %v2203, %v2203
    %v2236 = vmul.f32 %v2204, %v2204
    %v2237 = vmul.f32 %v2205, %v2205
    %v2238 = vmul.f32 %v2206, %v2206
    %v2239 = vmul.f32 %v2207, %v2207
    %v2240 = vmul.f32 %v2208, %v2208
    %v2241 = vmul.f32 %v2209, %v2209
    %v2242 = vmul.f32 %v2210, %v2210
    %v2243 = vmul.f32 %v2211, %v2211
    %v2244 = vmul.f32 %v2212, %v2212
    %v2245 = vmul.f32 %v2213, %v2213
    %v2246 = vmul.f32 %v2214, %v2214
    %v2247 = vmul.f32 %v2215, %v2215
    %v2248 = vmul.f32 %v2216, %v2216
    %v2249 = vmul.f32 %v2217, %v2217
    %v2250 = vmul.f32 %v2218, %v2218
    %v2251 = vmul.f32 %v2219, %v2219
    %v2252 = vmul.f32 %v2220, %v2220
    %v2253 = vmul.f32 %v2221, %v2221
    %v2254 = vmul.f32 %v2222, %v2222
    %v2255 = vmul.f32 %v2223, %v2223
    %v2256 = vmul.f32 %v2224, %v2224
    %v2257 = vmul.f32 %v2225, %v2225
    %v2258 = vmul.f32 %v2226, %v2226
    %v2259 = vmul.f32 %v2227, %v2227
    %v2260 = vmul.f32 %v2228, %v2228
    %v2261 = vmul.f32 %v2229, %v2229
    %v2262 = vmul.f32 %v2230, %v2230
    %v2263 = vmul.f32 %v2231, %v2231
    %v2264 = vmul.f32 %v2232, -158.76
    %v2265 = vmul.f32 %v2233, -158.76
    %v2266 = vmul.f32 %v2234, -158.76
    %v2267 = vmul.f32 %v2235, -158.76
    %v2268 = vmul.f32 %v2236, -158.76
    %v2269 = vmul.f32 %v2237, -158.76
    %v2270 = vmul.f32 %v2238, -158.76
    %v2271 = vmul.f32 %v2239, -158.76
    %v2272 = vmul.f32 %v2240, -158.76
    %v2273 = vmul.f32 %v2241, -158.76
    %v2274 = vmul.f32 %v2242, -158.76
    %v2275 = vmul.f32 %v2243, -158.76
    %v2276 = vmul.f32 %v2244, -158.76
    %v2277 = vmul.f32 %v2245, -158.76
    %v2278 = vmul.f32 %v2246, -158.76
    %v2279 = vmul.f32 %v2247, -158.76
    %v2280 = vmul.f32 %v2248, -158.76
    %v2281 = vmul.f32 %v2249, -158.76
    %v2282 = vmul.f32 %v2250, -158.76
    %v2283 = vmul.f32 %v2251, -158.76
    %v2284 = vmul.f32 %v2252, -158.76
    %v2285 = vmul.f32 %v2253, -158.76
    %v2286 = vmul.f32 %v2254, -158.76
    %v2287 = vmul.f32 %v2255, -158.76
    %v2288 = vmul.f32 %v2256, -158.76
    %v2289 = vmul.f32 %v2257, -158.76
    %v2290 = vmul.f32 %v2258, -158.76
    %v2291 = vmul.f32 %v2259, -158.76
    %v2292 = vmul.f32 %v2260, -158.76
    %v2293 = vmul.f32 %v2261, -158.76
    %v2294 = vmul.f32 %v2262, -158.76
    %v2295 = vmul.f32 %v2263, -158.76
    %v2296 = vmul.f32 %v2264, 1.442695
    %v2297 = vpow.pop %v2296
    %v2298 = vmul.f32 %v2265, 1.442695
    %v2299 = vpow.pop %v2298
    %v2300 = vmul.f32 %v2266, 1.442695
    %v2301 = vpow.pop %v2300
    %v2302 = vmul.f32 %v2267, 1.442695
    %v2303 = vpow.pop %v2302
    %v2304 = vmul.f32 %v2268, 1.442695
    %v2305 = vpow.pop %v2304
    %v2306 = vmul.f32 %v2269, 1.442695
    %v2307 = vpow.pop %v2306
    %v2308 = vmul.f32 %v2270, 1.442695
    %v2309 = vpow.pop %v2308
    %v2310 = vmul.f32 %v2271, 1.442695
    %v2311 = vpow.pop %v2310
    %v2312 = vmul.f32 %v2272, 1.442695
    %v2313 = vpow.pop %v2312
    %v2314 = vmul.f32 %v2273, 1.442695
    %v2315 = vpow.pop %v2314
    %v2316 = vmul.f32 %v2274, 1.442695
    %v2317 = vpow.pop %v2316
    %v2318 = vmul.f32 %v2275, 1.442695
    %v2319 = vpow.pop %v2318
    %v2320 = vmul.f32 %v2276, 1.442695
    %v2321 = vpow.pop %v2320
    %v2322 = vmul.f32 %v2277, 1.442695
    %v2323 = vpow.pop %v2322
    %v2324 = vmul.f32 %v2278, 1.442695
    %v2325 = vpow.pop %v2324
    %v2326 = vmul.f32 %v2279, 1.442695
    %v2327 = vpow.pop %v2326
    %v2328 = vmul.f32 %v2280, 1.442695
    %v2329 = vpow.pop %v2328
    %v2330 = vmul.f32 %v2281, 1.442695
    %v2331 = vpow.pop %v2330
    %v2332 = vmul.f32 %v2282, 1.442695
    %v2333 = vpow.pop %v2332
    %v2334 = vmul.f32 %v2283, 1.442695
    %v2335 = vpow.pop %v2334
    %v2336 = vmul.f32 %v2284, 1.442695
    %v2337 = vpow.pop %v2336
    %v2338 = vmul.f32 %v2285, 1.442695
    %v2339 = vpow.pop %v2338
    %v2340 = vmul.f32 %v2286, 1.442695
    %v2341 = vpow.pop %v2340
    %v2342 = vmul.f32 %v2287, 1.442695
    %v2343 = vpow.pop %v2342
    %v2344 = vmul.f32 %v2288, 1.442695
    %v2345 = vpow.pop %v2344
    %v2346 = vmul.f32 %v2289, 1.442695
    %v2347 = vpow.pop %v2346
    %v2348 = vmul.f32 %v2290, 1.442695
    %v2349 = vpow.pop %v2348
    %v2350 = vmul.f32 %v2291, 1.442695
    %v2351 = vpow.pop %v2350
    %v2352 = vmul.f32 %v2292, 1.442695
    %v2353 = vpow.pop %v2352
    %v2354 = vmul.f32 %v2293, 1.442695
    %v2355 = vpow.pop %v2354
    %v2356 = vmul.f32 %v2294, 1.442695
    %v2357 = vpow.pop %v2356
    %v2358 = vmul.f32 %v2295, 1.442695
    %v2359 = vpow.pop %v2358
    %v2360 = vmul.f32 %v1593, %v1596
    %v2361 = vmul.f32 %v1594, %v1597
    %v2362 = vmul.f32 %v1593, %v1598
    %v2363 = vmul.f32 %v1594, %v1599
    %v2364 = vmul.f32 %v1593, %v1600
    %v2365 = vmul.f32 %v1594, %v1601
    %v2366 = vmul.f32 %v1593, %v1602
    %v2367 = vmul.f32 %v1594, %v1603
    %v2368 = vmul.f32 %v1593, %v1604
    %v2369 = vmul.f32 %v1594, %v1605
    %v2370 = vmul.f32 %v1593, %v1606
    %v2371 = vmul.f32 %v1594, %v1607
    %v2372 = vmul.f32 %v1593, %v1608
    %v2373 = vmul.f32 %v1594, %v1609
    %v2374 = vmul.f32 %v1593, %v1610
    %v2375 = vmul.f32 %v1594, %v1611
    %v2376 = vmul.f32 %v1593, %v1612
    %v2377 = vmul.f32 %v1594, %v1613
    %v2378 = vmul.f32 %v1593, %v1614
    %v2379 = vmul.f32 %v1594, %v1615
    %v2380 = vmul.f32 %v1593, %v1616
    %v2381 = vmul.f32 %v1594, %v1617
    %v2382 = vmul.f32 %v1593, %v1618
    %v2383 = vmul.f32 %v1594, %v1619
    %v2384 = vmul.f32 %v1593, %v1620
    %v2385 = vmul.f32 %v1594, %v1621
    %v2386 = vmul.f32 %v1593, %v1622
    %v2387 = vmul.f32 %v1594, %v1623
    %v2388 = vmul.f32 %v1593, %v1624
    %v2389 = vmul.f32 %v1594, %v1625
    %v2390 = vmul.f32 %v1593, %v1626
    %v2391 = vmul.f32 %v1594, %v1627
    %v2392 = vmul.f32 %v2297, %v1854
    %v2393 = vmul.f32 %v2299, %v1858
    %v2394 = vmul.f32 %v2301, %v1865
    %v2395 = vmul.f32 %v2303, %v1869
    %v2396 = vmul.f32 %v2305, %v1876
    %v2397 = vmul.f32 %v2307, %v1880
    %v2398 = vmul.f32 %v2309, %v1887
    %v2399 = vmul.f32 %v2311, %v1891
    %v2400 = vmul.f32 %v2313, %v1898
    %v2401 = vmul.f32 %v2315, %v1902
    %v2402 = vmul.f32 %v2317, %v1909
    %v2403 = vmul.f32 %v2319, %v1913
    %v2404 = vmul.f32 %v2321, %v1920
    %v2405 = vmul.f32 %v2323, %v1924
    %v2406 = vmul.f32 %v2325, %v1931
    %v2407 = vmul.f32 %v2327, %v1935
    %v2408 = vmul.f32 %v2329, %v1942
    %v2409 = vmul.f32 %v2331, %v1946
    %v2410 = vmul.f32 %v2333, %v1953
    %v2411 = vmul.f32 %v2335, %v1957
    %v2412 = vmul.f32 %v2337, %v1964
    %v2413 = vmul.f32 %v2339, %v1968
    %v2414 = vmul.f32 %v2341, %v1975
    %v2415 = vmul.f32 %v2343, %v1979
    %v2416 = vmul.f32 %v2345, %v1986
    %v2417 = vmul.f32 %v2347, %v1990
    %v2418 = vmul.f32 %v2349, %v1997
    %v2419 = vmul.f32 %v2351, %v2001
    %v2420 = vmul.f32 %v2353, %v2008
    %v2421 = vmul.f32 %v2355, %v2012
    %v2422 = vmul.f32 %v2357, %v2019
    %v2423 = vmul.f32 %v2359, %v2023
    %v2424 = vmul.f32 %v2360, %v2392
    %v2425 = vmul.f32 %v2361, %v2393
    %v2426 = vmul.f32 %v2362, %v2394
    %v2427 = vmul.f32 %v2363, %v2395
    %v2428 = vmul.f32 %v2364, %v2396
    %v2429 = vmul.f32 %v2365, %v2397
    %v2430 = vmul.f32 %v2366, %v2398
    %v2431 = vmul.f32 %v2367, %v2399
    %v2432 = vmul.f32 %v2368, %v2400
    %v2433 = vmul.f32 %v2369, %v2401
    %v2434 = vmul.f32 %v2370, %v2402
    %v2435 = vmul.f32 %v2371, %v2403
    %v2436 = vmul.f32 %v2372, %v2404
    %v2437 = vmul.f32 %v2373, %v2405
    %v2438 = vmul.f32 %v2374, %v2406
    %v2439 = vmul.f32 %v2375, %v2407
    %v2440 = vmul.f32 %v2376, %v2408
    %v2441 = vmul.f32 %v2377, %v2409
    %v2442 = vmul.f32 %v2378, %v2410
    %v2443 = vmul.f32 %v2379, %v2411
    %v2444 = vmul.f32 %v2380, %v2412
    %v2445 = vmul.f32 %v2381, %v2413
    %v2446 = vmul.f32 %v2382, %v2414
    %v2447 = vmul.f32 %v2383, %v2415
    %v2448 = vmul.f32 %v2384, %v2416
    %v2449 = vmul.f32 %v2385, %v2417
    %v2450 = vmul.f32 %v2386, %v2418
    %v2451 = vmul.f32 %v2387, %v2419
    %v2452 = vmul.f32 %v2388, %v2420
    %v2453 = vmul.f32 %v2389, %v2421
    %v2454 = vmul.f32 %v2390, %v2422
    %v2455 = vmul.f32 %v2391, %v2423
    %v2456 = vlaneseq
    %v2457 = vshrl.u32 %v2456, 7
    %v2458 = vsub.s32 0, %v2457
    %v2459 = vrot.slane %v1590, %v2458
    %2461 = vbcast.lane.b32.xlu0 %v2459, 256
    %v2462 = vpop.permute.xlu0 %2461
    %s2464 = sor.u32 256, 8
    %2465 = vbcast.lane.b32.xlu0 %v2459, %s2464
    %v2466 = vpop.permute.xlu0 %2465
    %v2467 = vlaneseq
    %v2468 = vshrl.u32 %v2467, 7
    %v2469 = vsub.s32 1, %v2468
    %v2470 = vrot.slane %v1590, %v2469
    %2472 = vbcast.lane.b32.xlu0 %v2470, 256
    %v2473 = vpop.permute.xlu0 %2472
    %s2475 = sor.u32 256, 8
    %2476 = vbcast.lane.b32.xlu0 %v2470, %s2475
    %v2477 = vpop.permute.xlu0 %2476
    %v2478 = vlaneseq
    %v2479 = vshrl.u32 %v2478, 7
    %v2480 = vsub.s32 2, %v2479
    %v2481 = vrot.slane %v1590, %v2480
    %2483 = vbcast.lane.b32.xlu0 %v2481, 256
    %v2484 = vpop.permute.xlu0 %2483
    %s2486 = sor.u32 256, 8
    %2487 = vbcast.lane.b32.xlu0 %v2481, %s2486
    %v2488 = vpop.permute.xlu0 %2487
    %v2489 = vlaneseq
    %v2490 = vshrl.u32 %v2489, 7
    %v2491 = vsub.s32 3, %v2490
    %v2492 = vrot.slane %v1590, %v2491
    %2494 = vbcast.lane.b32.xlu0 %v2492, 256
    %v2495 = vpop.permute.xlu0 %2494
    %s2497 = sor.u32 256, 8
    %2498 = vbcast.lane.b32.xlu0 %v2492, %s2497
    %v2499 = vpop.permute.xlu0 %2498
    %v2500 = vlaneseq
    %v2501 = vshrl.u32 %v2500, 7
    %v2502 = vsub.s32 4, %v2501
    %v2503 = vrot.slane %v1590, %v2502
    %2505 = vbcast.lane.b32.xlu0 %v2503, 256
    %v2506 = vpop.permute.xlu0 %2505
    %s2508 = sor.u32 256, 8
    %2509 = vbcast.lane.b32.xlu0 %v2503, %s2508
    %v2510 = vpop.permute.xlu0 %2509
    %v2511 = vlaneseq
    %v2512 = vshrl.u32 %v2511, 7
    %v2513 = vsub.s32 5, %v2512
    %v2514 = vrot.slane %v1590, %v2513
    %2516 = vbcast.lane.b32.xlu0 %v2514, 256
    %v2517 = vpop.permute.xlu0 %2516
    %s2519 = sor.u32 256, 8
    %2520 = vbcast.lane.b32.xlu0 %v2514, %s2519
    %v2521 = vpop.permute.xlu0 %2520
    %v2522 = vlaneseq
    %v2523 = vshrl.u32 %v2522, 7
    %v2524 = vsub.s32 6, %v2523
    %v2525 = vrot.slane %v1590, %v2524
    %2527 = vbcast.lane.b32.xlu0 %v2525, 256
    %v2528 = vpop.permute.xlu0 %2527
    %s2530 = sor.u32 256, 8
    %2531 = vbcast.lane.b32.xlu0 %v2525, %s2530
    %v2532 = vpop.permute.xlu0 %2531
    %v2533 = vlaneseq
    %v2534 = vshrl.u32 %v2533, 7
    %v2535 = vsub.s32 7, %v2534
    %v2536 = vrot.slane %v1590, %v2535
    %2538 = vbcast.lane.b32.xlu0 %v2536, 256
    %v2539 = vpop.permute.xlu0 %2538
    %s2541 = sor.u32 256, 8
    %2542 = vbcast.lane.b32.xlu0 %v2536, %s2541
    %v2543 = vpop.permute.xlu0 %2542
    %v2544 = vlaneseq
    %v2545 = vshrl.u32 %v2544, 7
    %v2546 = vsub.s32 0, %v2545
    %v2547 = vrot.slane %v1591, %v2546
    %2549 = vbcast.lane.b32.xlu0 %v2547, 256
    %v2550 = vpop.permute.xlu0 %2549
    %s2552 = sor.u32 256, 8
    %2553 = vbcast.lane.b32.xlu0 %v2547, %s2552
    %v2554 = vpop.permute.xlu0 %2553
    %v2555 = vlaneseq
    %v2556 = vshrl.u32 %v2555, 7
    %v2557 = vsub.s32 1, %v2556
    %v2558 = vrot.slane %v1591, %v2557
    %2560 = vbcast.lane.b32.xlu0 %v2558, 256
    %v2561 = vpop.permute.xlu0 %2560
    %s2563 = sor.u32 256, 8
    %2564 = vbcast.lane.b32.xlu0 %v2558, %s2563
    %v2565 = vpop.permute.xlu0 %2564
    %v2566 = vlaneseq
    %v2567 = vshrl.u32 %v2566, 7
    %v2568 = vsub.s32 2, %v2567
    %v2569 = vrot.slane %v1591, %v2568
    %2571 = vbcast.lane.b32.xlu0 %v2569, 256
    %v2572 = vpop.permute.xlu0 %2571
    %s2574 = sor.u32 256, 8
    %2575 = vbcast.lane.b32.xlu0 %v2569, %s2574
    %v2576 = vpop.permute.xlu0 %2575
    %v2577 = vlaneseq
    %v2578 = vshrl.u32 %v2577, 7
    %v2579 = vsub.s32 3, %v2578
    %v2580 = vrot.slane %v1591, %v2579
    %2582 = vbcast.lane.b32.xlu0 %v2580, 256
    %v2583 = vpop.permute.xlu0 %2582
    %s2585 = sor.u32 256, 8
    %2586 = vbcast.lane.b32.xlu0 %v2580, %s2585
    %v2587 = vpop.permute.xlu0 %2586
    %v2588 = vlaneseq
    %v2589 = vshrl.u32 %v2588, 7
    %v2590 = vsub.s32 4, %v2589
    %v2591 = vrot.slane %v1591, %v2590
    %2593 = vbcast.lane.b32.xlu0 %v2591, 256
    %v2594 = vpop.permute.xlu0 %2593
    %s2596 = sor.u32 256, 8
    %2597 = vbcast.lane.b32.xlu0 %v2591, %s2596
    %v2598 = vpop.permute.xlu0 %2597
    %v2599 = vlaneseq
    %v2600 = vshrl.u32 %v2599, 7
    %v2601 = vsub.s32 5, %v2600
    %v2602 = vrot.slane %v1591, %v2601
    %2604 = vbcast.lane.b32.xlu0 %v2602, 256
    %v2605 = vpop.permute.xlu0 %2604
    %s2607 = sor.u32 256, 8
    %2608 = vbcast.lane.b32.xlu0 %v2602, %s2607
    %v2609 = vpop.permute.xlu0 %2608
    %v2610 = vlaneseq
    %v2611 = vshrl.u32 %v2610, 7
    %v2612 = vsub.s32 6, %v2611
    %v2613 = vrot.slane %v1591, %v2612
    %2615 = vbcast.lane.b32.xlu0 %v2613, 256
    %v2616 = vpop.permute.xlu0 %2615
    %s2618 = sor.u32 256, 8
    %2619 = vbcast.lane.b32.xlu0 %v2613, %s2618
    %v2620 = vpop.permute.xlu0 %2619
    %v2621 = vlaneseq
    %v2622 = vshrl.u32 %v2621, 7
    %v2623 = vsub.s32 7, %v2622
    %v2624 = vrot.slane %v1591, %v2623
    %2626 = vbcast.lane.b32.xlu0 %v2624, 256
    %v2627 = vpop.permute.xlu0 %2626
    %s2629 = sor.u32 256, 8
    %2630 = vbcast.lane.b32.xlu0 %v2624, %s2629
    %v2631 = vpop.permute.xlu0 %2630
    %vm2632 = vcmp.gt.f32.partialorder %v2462, 0.5
    %vm2633 = vcmp.gt.f32.partialorder %v2466, 0.5
    %vm2634 = vcmp.gt.f32.partialorder %v2473, 0.5
    %vm2635 = vcmp.gt.f32.partialorder %v2477, 0.5
    %vm2636 = vcmp.gt.f32.partialorder %v2484, 0.5
    %vm2637 = vcmp.gt.f32.partialorder %v2488, 0.5
    %vm2638 = vcmp.gt.f32.partialorder %v2495, 0.5
    %vm2639 = vcmp.gt.f32.partialorder %v2499, 0.5
    %vm2640 = vcmp.gt.f32.partialorder %v2506, 0.5
    %vm2641 = vcmp.gt.f32.partialorder %v2510, 0.5
    %vm2642 = vcmp.gt.f32.partialorder %v2517, 0.5
    %vm2643 = vcmp.gt.f32.partialorder %v2521, 0.5
    %vm2644 = vcmp.gt.f32.partialorder %v2528, 0.5
    %vm2645 = vcmp.gt.f32.partialorder %v2532, 0.5
    %vm2646 = vcmp.gt.f32.partialorder %v2539, 0.5
    %vm2647 = vcmp.gt.f32.partialorder %v2543, 0.5
    %vm2648 = vcmp.gt.f32.partialorder %v2550, 0.5
    %vm2649 = vcmp.gt.f32.partialorder %v2554, 0.5
    %vm2650 = vcmp.gt.f32.partialorder %v2561, 0.5
    %vm2651 = vcmp.gt.f32.partialorder %v2565, 0.5
    %vm2652 = vcmp.gt.f32.partialorder %v2572, 0.5
    %vm2653 = vcmp.gt.f32.partialorder %v2576, 0.5
    %vm2654 = vcmp.gt.f32.partialorder %v2583, 0.5
    %vm2655 = vcmp.gt.f32.partialorder %v2587, 0.5
    %vm2656 = vcmp.gt.f32.partialorder %v2594, 0.5
    %vm2657 = vcmp.gt.f32.partialorder %v2598, 0.5
    %vm2658 = vcmp.gt.f32.partialorder %v2605, 0.5
    %vm2659 = vcmp.gt.f32.partialorder %v2609, 0.5
    %vm2660 = vcmp.gt.f32.partialorder %v2616, 0.5
    %vm2661 = vcmp.gt.f32.partialorder %v2620, 0.5
    %vm2662 = vcmp.gt.f32.partialorder %v2627, 0.5
    %vm2663 = vcmp.gt.f32.partialorder %v2631, 0.5
    %v2664 = vsel %vm2632, 1, 0
    %v2665 = vsel %vm2633, 1, 0
    %v2666 = vsel %vm2634, 1, 0
    %v2667 = vsel %vm2635, 1, 0
    %v2668 = vsel %vm2636, 1, 0
    %v2669 = vsel %vm2637, 1, 0
    %v2670 = vsel %vm2638, 1, 0
    %v2671 = vsel %vm2639, 1, 0
    %v2672 = vsel %vm2640, 1, 0
    %v2673 = vsel %vm2641, 1, 0
    %v2674 = vsel %vm2642, 1, 0
    %v2675 = vsel %vm2643, 1, 0
    %v2676 = vsel %vm2644, 1, 0
    %v2677 = vsel %vm2645, 1, 0
    %v2678 = vsel %vm2646, 1, 0
    %v2679 = vsel %vm2647, 1, 0
    %v2680 = vsel %vm2648, 1, 0
    %v2681 = vsel %vm2649, 1, 0
    %v2682 = vsel %vm2650, 1, 0
    %v2683 = vsel %vm2651, 1, 0
    %v2684 = vsel %vm2652, 1, 0
    %v2685 = vsel %vm2653, 1, 0
    %v2686 = vsel %vm2654, 1, 0
    %v2687 = vsel %vm2655, 1, 0
    %v2688 = vsel %vm2656, 1, 0
    %v2689 = vsel %vm2657, 1, 0
    %v2690 = vsel %vm2658, 1, 0
    %v2691 = vsel %vm2659, 1, 0
    %v2692 = vsel %vm2660, 1, 0
    %v2693 = vsel %vm2661, 1, 0
    %v2694 = vsel %vm2662, 1, 0
    %v2695 = vsel %vm2663, 1, 0
    %vm2696 = vcmp.eq.s32.totalorder %v2664, 1
    %vm2697 = vcmp.eq.s32.totalorder %v2665, 1
    %vm2698 = vcmp.eq.s32.totalorder %v2666, 1
    %vm2699 = vcmp.eq.s32.totalorder %v2667, 1
    %vm2700 = vcmp.eq.s32.totalorder %v2668, 1
    %vm2701 = vcmp.eq.s32.totalorder %v2669, 1
    %vm2702 = vcmp.eq.s32.totalorder %v2670, 1
    %vm2703 = vcmp.eq.s32.totalorder %v2671, 1
    %vm2704 = vcmp.eq.s32.totalorder %v2672, 1
    %vm2705 = vcmp.eq.s32.totalorder %v2673, 1
    %vm2706 = vcmp.eq.s32.totalorder %v2674, 1
    %vm2707 = vcmp.eq.s32.totalorder %v2675, 1
    %vm2708 = vcmp.eq.s32.totalorder %v2676, 1
    %vm2709 = vcmp.eq.s32.totalorder %v2677, 1
    %vm2710 = vcmp.eq.s32.totalorder %v2678, 1
    %vm2711 = vcmp.eq.s32.totalorder %v2679, 1
    %vm2712 = vcmp.eq.s32.totalorder %v2680, 1
    %vm2713 = vcmp.eq.s32.totalorder %v2681, 1
    %vm2714 = vcmp.eq.s32.totalorder %v2682, 1
    %vm2715 = vcmp.eq.s32.totalorder %v2683, 1
    %vm2716 = vcmp.eq.s32.totalorder %v2684, 1
    %vm2717 = vcmp.eq.s32.totalorder %v2685, 1
    %vm2718 = vcmp.eq.s32.totalorder %v2686, 1
    %vm2719 = vcmp.eq.s32.totalorder %v2687, 1
    %vm2720 = vcmp.eq.s32.totalorder %v2688, 1
    %vm2721 = vcmp.eq.s32.totalorder %v2689, 1
    %vm2722 = vcmp.eq.s32.totalorder %v2690, 1
    %vm2723 = vcmp.eq.s32.totalorder %v2691, 1
    %vm2724 = vcmp.eq.s32.totalorder %v2692, 1
    %vm2725 = vcmp.eq.s32.totalorder %v2693, 1
    %vm2726 = vcmp.eq.s32.totalorder %v2694, 1
    %vm2727 = vcmp.eq.s32.totalorder %v2695, 1
    %v2728 = vsel %vm2696, %v2424, 1.0
    %v2729 = vsel %vm2697, %v2425, 1.0
    %v2730 = vsel %vm2698, %v2426, 1.0
    %v2731 = vsel %vm2699, %v2427, 1.0
    %v2732 = vsel %vm2700, %v2428, 1.0
    %v2733 = vsel %vm2701, %v2429, 1.0
    %v2734 = vsel %vm2702, %v2430, 1.0
    %v2735 = vsel %vm2703, %v2431, 1.0
    %v2736 = vsel %vm2704, %v2432, 1.0
    %v2737 = vsel %vm2705, %v2433, 1.0
    %v2738 = vsel %vm2706, %v2434, 1.0
    %v2739 = vsel %vm2707, %v2435, 1.0
    %v2740 = vsel %vm2708, %v2436, 1.0
    %v2741 = vsel %vm2709, %v2437, 1.0
    %v2742 = vsel %vm2710, %v2438, 1.0
    %v2743 = vsel %vm2711, %v2439, 1.0
    %v2744 = vsel %vm2712, %v2440, 1.0
    %v2745 = vsel %vm2713, %v2441, 1.0
    %v2746 = vsel %vm2714, %v2442, 1.0
    %v2747 = vsel %vm2715, %v2443, 1.0
    %v2748 = vsel %vm2716, %v2444, 1.0
    %v2749 = vsel %vm2717, %v2445, 1.0
    %v2750 = vsel %vm2718, %v2446, 1.0
    %v2751 = vsel %vm2719, %v2447, 1.0
    %v2752 = vsel %vm2720, %v2448, 1.0
    %v2753 = vsel %vm2721, %v2449, 1.0
    %v2754 = vsel %vm2722, %v2450, 1.0
    %v2755 = vsel %vm2723, %v2451, 1.0
    %v2756 = vsel %vm2724, %v2452, 1.0
    %v2757 = vsel %vm2725, %v2453, 1.0
    %v2758 = vsel %vm2726, %v2454, 1.0
    %v2759 = vsel %vm2727, %v2455, 1.0
    %v2760 = vmul.f32 %v2728, %v2729
    %v2761 = vmul.f32 %v2730, %v2731
    %v2762 = vmul.f32 %v2732, %v2733
    %v2763 = vmul.f32 %v2734, %v2735
    %v2764 = vmul.f32 %v2736, %v2737
    %v2765 = vmul.f32 %v2738, %v2739
    %v2766 = vmul.f32 %v2740, %v2741
    %v2767 = vmul.f32 %v2742, %v2743
    %v2768 = vmul.f32 %v2744, %v2745
    %v2769 = vmul.f32 %v2746, %v2747
    %v2770 = vmul.f32 %v2748, %v2749
    %v2771 = vmul.f32 %v2750, %v2751
    %v2772 = vmul.f32 %v2752, %v2753
    %v2773 = vmul.f32 %v2754, %v2755
    %v2774 = vmul.f32 %v2756, %v2757
    %v2775 = vmul.f32 %v2758, %v2759
    %v2792 = vrot.slane %v2760, 4
    %v2793 = vrot.slane %v2761, 4
    %v2794 = vrot.slane %v2762, 4
    %v2795 = vrot.slane %v2763, 4
    %v2796 = vrot.slane %v2764, 4
    %v2797 = vrot.slane %v2765, 4
    %v2798 = vrot.slane %v2766, 4
    %v2799 = vrot.slane %v2767, 4
    %v2800 = vrot.slane %v2768, 4
    %v2801 = vrot.slane %v2769, 4
    %v2802 = vrot.slane %v2770, 4
    %v2803 = vrot.slane %v2771, 4
    %v2804 = vrot.slane %v2772, 4
    %v2805 = vrot.slane %v2773, 4
    %v2806 = vrot.slane %v2774, 4
    %v2807 = vrot.slane %v2775, 4
    %v2824 = vmul.f32 %v2760, %v2792
    %v2825 = vmul.f32 %v2761, %v2793
    %v2826 = vmul.f32 %v2762, %v2794
    %v2827 = vmul.f32 %v2763, %v2795
    %v2828 = vmul.f32 %v2764, %v2796
    %v2829 = vmul.f32 %v2765, %v2797
    %v2830 = vmul.f32 %v2766, %v2798
    %v2831 = vmul.f32 %v2767, %v2799
    %v2832 = vmul.f32 %v2768, %v2800
    %v2833 = vmul.f32 %v2769, %v2801
    %v2834 = vmul.f32 %v2770, %v2802
    %v2835 = vmul.f32 %v2771, %v2803
    %v2836 = vmul.f32 %v2772, %v2804
    %v2837 = vmul.f32 %v2773, %v2805
    %v2838 = vmul.f32 %v2774, %v2806
    %v2839 = vmul.f32 %v2775, %v2807
    %v2856 = vrot.slane %v2824, 2
    %v2857 = vrot.slane %v2825, 2
    %v2858 = vrot.slane %v2826, 2
    %v2859 = vrot.slane %v2827, 2
    %v2860 = vrot.slane %v2828, 2
    %v2861 = vrot.slane %v2829, 2
    %v2862 = vrot.slane %v2830, 2
    %v2863 = vrot.slane %v2831, 2
    %v2864 = vrot.slane %v2832, 2
    %v2865 = vrot.slane %v2833, 2
    %v2866 = vrot.slane %v2834, 2
    %v2867 = vrot.slane %v2835, 2
    %v2868 = vrot.slane %v2836, 2
    %v2869 = vrot.slane %v2837, 2
    %v2870 = vrot.slane %v2838, 2
    %v2871 = vrot.slane %v2839, 2
    %v2888 = vmul.f32 %v2824, %v2856
    %v2889 = vmul.f32 %v2825, %v2857
    %v2890 = vmul.f32 %v2826, %v2858
    %v2891 = vmul.f32 %v2827, %v2859
    %v2892 = vmul.f32 %v2828, %v2860
    %v2893 = vmul.f32 %v2829, %v2861
    %v2894 = vmul.f32 %v2830, %v2862
    %v2895 = vmul.f32 %v2831, %v2863
    %v2896 = vmul.f32 %v2832, %v2864
    %v2897 = vmul.f32 %v2833, %v2865
    %v2898 = vmul.f32 %v2834, %v2866
    %v2899 = vmul.f32 %v2835, %v2867
    %v2900 = vmul.f32 %v2836, %v2868
    %v2901 = vmul.f32 %v2837, %v2869
    %v2902 = vmul.f32 %v2838, %v2870
    %v2903 = vmul.f32 %v2839, %v2871
    %v2920 = vrot.slane %v2888, 1
    %v2921 = vrot.slane %v2889, 1
    %v2922 = vrot.slane %v2890, 1
    %v2923 = vrot.slane %v2891, 1
    %v2924 = vrot.slane %v2892, 1
    %v2925 = vrot.slane %v2893, 1
    %v2926 = vrot.slane %v2894, 1
    %v2927 = vrot.slane %v2895, 1
    %v2928 = vrot.slane %v2896, 1
    %v2929 = vrot.slane %v2897, 1
    %v2930 = vrot.slane %v2898, 1
    %v2931 = vrot.slane %v2899, 1
    %v2932 = vrot.slane %v2900, 1
    %v2933 = vrot.slane %v2901, 1
    %v2934 = vrot.slane %v2902, 1
    %v2935 = vrot.slane %v2903, 1
    %v2952 = vmul.f32 %v2888, %v2920
    %v2953 = vmul.f32 %v2889, %v2921
    %v2954 = vmul.f32 %v2890, %v2922
    %v2955 = vmul.f32 %v2891, %v2923
    %v2956 = vmul.f32 %v2892, %v2924
    %v2957 = vmul.f32 %v2893, %v2925
    %v2958 = vmul.f32 %v2894, %v2926
    %v2959 = vmul.f32 %v2895, %v2927
    %v2960 = vmul.f32 %v2896, %v2928
    %v2961 = vmul.f32 %v2897, %v2929
    %v2962 = vmul.f32 %v2898, %v2930
    %v2963 = vmul.f32 %v2899, %v2931
    %v2964 = vmul.f32 %v2900, %v2932
    %v2965 = vmul.f32 %v2901, %v2933
    %v2966 = vmul.f32 %v2902, %v2934
    %v2967 = vmul.f32 %v2903, %v2935
    %s2968 = scalar_lea.vmem [#allocation2], 16
    %v2969 = vld [vmem:[%s2968] sm:$0xff]
    %v2970 = vld [vmem:[%s2968 + $0x8] sm:$0xff]
    %v2987 = vrot.slane %v2953, 7
    %v2988 = vsel %vm1531, %v2987, %v2952
    %v2989 = vrot.slane %v2954, 6
    %v2990 = vsel %vm1534, %v2989, %v2988
    %v2991 = vrot.slane %v2955, 5
    %v2992 = vsel %vm1537, %v2991, %v2990
    %v2993 = vrot.slane %v2956, 4
    %v2994 = vsel %vm1540, %v2993, %v2992
    %v2995 = vrot.slane %v2957, 3
    %v2996 = vsel %vm1543, %v2995, %v2994
    %v2997 = vrot.slane %v2958, 2
    %v2998 = vsel %vm1546, %v2997, %v2996
    %v2999 = vrot.slane %v2959, 1
    %v3000 = vsel %vm1549, %v2999, %v2998
    %v3001 = vrot.slane %v2961, 7
    %v3002 = vsel %vm1531, %v3001, %v2960
    %v3003 = vrot.slane %v2962, 6
    %v3004 = vsel %vm1534, %v3003, %v3002
    %v3005 = vrot.slane %v2963, 5
    %v3006 = vsel %vm1537, %v3005, %v3004
    %v3007 = vrot.slane %v2964, 4
    %v3008 = vsel %vm1540, %v3007, %v3006
    %v3009 = vrot.slane %v2965, 3
    %v3010 = vsel %vm1543, %v3009, %v3008
    %v3011 = vrot.slane %v2966, 2
    %v3012 = vsel %vm1546, %v3011, %v3010
    %v3013 = vrot.slane %v2967, 1
    %v3014 = vsel %vm1549, %v3013, %v3012
    %v3017 = vmul.f32 %v2969, %v3000
    %v3018 = vmul.f32 %v2970, %v3014
    %3019 = vst.msk [vmem:[%s2968] sm:$0xff] %vm1569, %v3017
    %3020 = vst.msk [vmem:[%s2968 + $0x8] sm:$0xff] %vm1569, %v3018
    %s3021 = scalar_lea.vmem [#allocation3], 16
    %v3022 = vld [vmem:[%s3021] sm:$0xff]
    %v3023 = vld [vmem:[%s3021 + $0x8] sm:$0xff]
    %v3024 = vsel %vm1574, %v1590, 0.0
    %3025 = vadd.xlane.f32.xlu0 %v3024
    %v3026 = vpop.xlane.xlu0 %3025
    %v3027 = vsel %vm1574, %v1591, 0.0
    %3028 = vadd.xlane.f32.xlu0 %v3027
    %v3029 = vpop.xlane.xlu0 %3028
    %v3030 = vadd.f32 %v3022, %v3026
    %v3031 = vadd.f32 %v3023, %v3029
    %3032 = vst.msk [vmem:[%s3021] sm:$0xff] %vm1583, %v3030
    %3033 = vst.msk [vmem:[%s3021 + $0x8] sm:$0xff] %vm1583, %v3031
    // Predicated region
    $region62: #{tpu_custom_call.1} parent=1 // pred_check
      %p3034 = pneg %p112
    $region63: #{tpu_custom_call.1} parent=1 // pred_check_branch
      %3036 = sbr.rel (%p3034) target = $region65
    $region64: #{tpu_custom_call.1} parent=1 // pred_region
      %v3037 = vld [vmem:[#allocation7] sm:$0xff]
      %v3038 = vld [vmem:[#allocation7 + $0x8] sm:$0xff]
      %v3039 = vld [vmem:[#allocation3] sm:$0xff]
      %v3040 = vld [vmem:[#allocation3 + $0x8] sm:$0xff]
      %vm3041 = vcmp.gt.f32.partialorder %v3039, 0.5
      %vm3042 = vcmp.gt.f32.partialorder %v3040, 0.5
      %v3043 = vld [vmem:[#allocation2] sm:$0xff]
      %v3044 = vld [vmem:[#allocation2 + $0x8] sm:$0xff]
      %v3045 = vsel %vm3041, 1, 0
      %v3046 = vsel %vm3042, 1, 0
      %3047 = vset.pattern.permute.xlu0 0
      %3048 = vperm.xlu0 %3047, %v3045
      %v3049 = vpop.permute.xlu0 %3048
      %3050 = vset.pattern.permute.xlu0 0
      %3051 = vperm.xlu0 %3050, %v3046
      %v3052 = vpop.permute.xlu0 %3051
      %vm3053 = vcmp.eq.s32.totalorder %v3049, 1
      %vm3054 = vcmp.eq.s32.totalorder %v3052, 1
      %v3055 = vsel %vm3053, %v3043, %v3037
      %v3056 = vsel %vm3054, %v3044, %v3038
      %s3057 = scalar_lea.vmem [#allocation7], 16
      %v3058 = vld [vmem:[%s3057] sm:$0xff]
      %v3059 = vld [vmem:[%s3057 + $0x8] sm:$0xff]
      %v3060 = vld [vmem:[%s3021] sm:$0xff]
      %v3061 = vld [vmem:[%s3021 + $0x8] sm:$0xff]
      %vm3062 = vcmp.gt.f32.partialorder %v3060, 0.5
      %vm3063 = vcmp.gt.f32.partialorder %v3061, 0.5
      %v3064 = vld [vmem:[%s2968] sm:$0xff]
      %v3065 = vld [vmem:[%s2968 + $0x8] sm:$0xff]
      %v3066 = vsel %vm3062, 1, 0
      %v3067 = vsel %vm3063, 1, 0
      %3068 = vset.pattern.permute.xlu0 0
      %3069 = vperm.xlu0 %3068, %v3066
      %v3070 = vpop.permute.xlu0 %3069
      %3071 = vset.pattern.permute.xlu0 0
      %3072 = vperm.xlu0 %3071, %v3067
      %v3073 = vpop.permute.xlu0 %3072
      %vm3074 = vcmp.eq.s32.totalorder %v3070, 1
      %vm3075 = vcmp.eq.s32.totalorder %v3073, 1
      %v3076 = vsel %vm3074, %v3064, %v3058
      %v3077 = vsel %vm3075, %v3065, %v3059
      %3080 = vrot.lane.b32.xlu0 %v3076, 64
      %v3081 = vpop.permute.xlu0 %3080
      %3082 = vrot.lane.b32.xlu0 %v3077, 64
      %v3083 = vpop.permute.xlu0 %3082
      %v3086 = vsel %vm1569, %v3055, %v3081
      %v3087 = vsel %vm1569, %v3056, %v3083
      %v3088 = vld [vmem:[#allocation13] sm:$0xff]
      %v3089 = vld [vmem:[#allocation13 + $0x8] sm:$0xff]
      %v3090 = vld [vmem:[#allocation13 + $0x10] sm:$0xff]
      %v3091 = vld [vmem:[#allocation13 + $0x18] sm:$0xff]
      %v3092 = vld [vmem:[#allocation13 + $0x20] sm:$0xff]
      %v3093 = vld [vmem:[#allocation13 + $0x28] sm:$0xff]
      %v3094 = vld [vmem:[#allocation13 + $0x30] sm:$0xff]
      %v3095 = vld [vmem:[#allocation13 + $0x38] sm:$0xff]
      %v3096 = vld [vmem:[#allocation13 + $0x40] sm:$0xff]
      %v3097 = vld [vmem:[#allocation13 + $0x48] sm:$0xff]
      %v3098 = vld [vmem:[#allocation13 + $0x50] sm:$0xff]
      %v3099 = vld [vmem:[#allocation13 + $0x58] sm:$0xff]
      %v3100 = vld [vmem:[#allocation13 + $0x60] sm:$0xff]
      %v3101 = vld [vmem:[#allocation13 + $0x68] sm:$0xff]
      %v3102 = vld [vmem:[#allocation13 + $0x70] sm:$0xff]
      %v3103 = vld [vmem:[#allocation13 + $0x78] sm:$0xff]
      %v3104 = vld [vmem:[%s7] sm:$0x1]
      %v3106 = vlaneseq
      %v3107 = vshrl.u32 %v3106, 7
      %v3108 = vsub.s32 0, %v3107
      %v3109 = vrot.slane %v3104, %v3108
      %3111 = vmatprep.subr.mxu0 0.0
      %3112 = vmatpush1.msra.mxu0 %v3088
      %3113 = vmatprep.subr.mxu0 0.0
      %3114 = vmatpush1.msra.mxu0 %v3089
      %3115 = vmatprep.subr.mxu0 0.0
      %3116 = vmatpush1.msra.mxu0 %v3090
      %3117 = vmatprep.subr.mxu0 0.0
      %3118 = vmatpush1.msra.mxu0 %v3091
      %3119 = vmatprep.subr.mxu0 0.0
      %3120 = vmatpush1.msra.mxu0 %v3092
      %3121 = vmatprep.subr.mxu0 0.0
      %3122 = vmatpush1.msra.mxu0 %v3093
      %3123 = vmatprep.subr.mxu0 0.0
      %3124 = vmatpush1.msra.mxu0 %v3094
      %3125 = vmatprep.subr.mxu0 0.0
      %3126 = vmatpush1.msra.mxu0 %v3095
      %3127 = vmatprep.subr.mxu0 0.0
      %3128 = vmatpush1.msra.mxu0 %v3096
      %3129 = vmatprep.subr.mxu0 0.0
      %3130 = vmatpush1.msra.mxu0 %v3097
      %3131 = vmatprep.subr.mxu0 0.0
      %3132 = vmatpush1.msra.mxu0 %v3098
      %3133 = vmatprep.subr.mxu0 0.0
      %3134 = vmatpush1.msra.mxu0 %v3099
      %3135 = vmatprep.subr.mxu0 0.0
      %3136 = vmatpush1.msra.mxu0 %v3100
      %3137 = vmatprep.subr.mxu0 0.0
      %3138 = vmatpush1.msra.mxu0 %v3101
      %3139 = vmatprep.subr.mxu0 0.0
      %3140 = vmatpush1.msra.mxu0 %v3102
      %3141 = vmatprep.subr.mxu0 0.0
      %3142 = vmatpush1.msra.mxu0 %v3103
      %3143 = vmatprep.subr.mxu0 0.0
      %3144 = vmatpush1.msra.mxu0 0.0
      %3145 = vmatprep.subr.mxu0 0.0
      %3146 = vmatpush1.msra.mxu0 0.0
      %3147 = vmatprep.subr.mxu0 0.0
      %3148 = vmatpush1.msra.mxu0 0.0
      %3149 = vmatprep.subr.mxu0 0.0
      %3150 = vmatpush1.msra.mxu0 0.0
      %3151 = vmatprep.subr.mxu0 0.0
      %3152 = vmatpush1.msra.mxu0 0.0
      %3153 = vmatprep.subr.mxu0 0.0
      %3154 = vmatpush1.msra.mxu0 0.0
      %3155 = vmatprep.subr.mxu0 0.0
      %3156 = vmatpush1.msra.mxu0 0.0
      %3157 = vmatprep.subr.mxu0 0.0
      %3158 = vmatpush1.msra.mxu0 0.0
      %3159 = vmatprep.subr.mxu0 0.0
      %3160 = vmatpush1.msra.mxu0 0.0
      %3161 = vmatprep.subr.mxu0 0.0
      %3162 = vmatpush1.msra.mxu0 0.0
      %3163 = vmatprep.subr.mxu0 0.0
      %3164 = vmatpush1.msra.mxu0 0.0
      %3165 = vmatprep.subr.mxu0 0.0
      %3166 = vmatpush1.msra.mxu0 0.0
      %3167 = vmatprep.subr.mxu0 0.0
      %3168 = vmatpush1.msra.mxu0 0.0
      %3169 = vmatprep.subr.mxu0 0.0
      %3170 = vmatpush1.msra.mxu0 0.0
      %3171 = vmatprep.subr.mxu0 0.0
      %3172 = vmatpush1.msra.mxu0 0.0
      %3173 = vmatprep.subr.mxu0 0.0
      %3174 = vmatpush1.msra.mxu0 0.0
      %3175 = vmatprep.mubr.f32.mxu0 0.0
      %3176 = vmatmul.mubr.f32.gmra.mrb[0].mxu0 %v3086
      %v3177 = vpop.f32.mrb[0].mxu0
      %v3178 = vadd.f32 %v3109, %v3177
      %v3179 = vpop.f32.mrb[0].mxu0
      %3180 = vmatprep.mubr.f32.mxu0 0.0
      %3181 = vmatmul.mubr.f32.gmra.mrb[0].mxu0 %v3087
      %v3182 = vpop.f32.mrb[0].mxu0
      %v3183 = vadd.f32 %v3109, %v3182
      %v3184 = vpop.f32.mrb[0].mxu0
      %3185 = vdwg.mxu0
      %v3186 = vmax.f32 %v3178, 0.0
      %v3187 = vmax.f32 %v3183, 0.0
      %vm3188 = vcmp.ne.f32.partialorder %v3178, %v3178
      %vm3189 = vcmp.ne.f32.partialorder %v3183, %v3183
      %v3190 = vadd.f32 %v3178, 0.0
      %v3191 = vadd.f32 %v3183, 0.0
      %v3192 = vand.u32 2147483647, %v3178
      %v3193 = vand.u32 2147483647, %v3183
      %v3194 = vsub.f32 0.0, %v3192
      %v3195 = vsub.f32 0.0, %v3193
      %v3196 = vmul.f32 %v3194, 1.442695
      %v3197 = vpow.pop %v3196
      %v3198 = vmul.f32 %v3195, 1.442695
      %v3199 = vpow.pop %v3198
      %v3200 = vadd.f32 %v3197, 1.0
      %v3201 = vlog2.pop %v3200
      %v3202 = vmul.f32 %v3201, 0.6931472
      %v3203 = vmul.f32 -0.5, %v3197
      %v3204 = vadd.f32 %v3203, 1.0
      %v3205 = vmul.f32 %v3204, %v3197
      %v3206 = vand.u32 2147483647, %v3197
      %vm3207 = vcmp.lt.f32.partialorder %v3206, 0.0004427343
      %v3208 = vsel %vm3207, %v3205, %v3202
      %v3209 = vadd.f32 %v3199, 1.0
      %v3210 = vlog2.pop %v3209
      %v3211 = vmul.f32 %v3210, 0.6931472
      %v3212 = vmul.f32 -0.5, %v3199
      %v3213 = vadd.f32 %v3212, 1.0
      %v3214 = vmul.f32 %v3213, %v3199
      %v3215 = vand.u32 2147483647, %v3199
      %vm3216 = vcmp.lt.f32.partialorder %v3215, 0.0004427343
      %v3217 = vsel %vm3216, %v3214, %v3211
      %v3218 = vadd.f32 %v3186, %v3208
      %v3219 = vadd.f32 %v3187, %v3217
      %v3220 = vsel %vm3188, %v3190, %v3218
      %v3221 = vsel %vm3189, %v3191, %v3219
      %3222 = vst [vmem:[#allocation15] sm:$0xff] %v3220
      %3223 = vst [vmem:[#allocation15 + $0x8] sm:$0xff] %v3221
    $region65: #{tpu_custom_call.1} parent=1 // pred_fallthru
      _
    // Predicated region
    $region66: #{tpu_custom_call.1} parent=1 // pred_check
      _
    $region67: #{tpu_custom_call.1} parent=1 // pred_check_branch
      %3225 = sbr.rel (0) target = $region69
    $region68: #{tpu_custom_call.1} parent=1 // pred_region
      %s3227 = ssub.s32 256, 256
      %3228 = vsyncadd [#allocation6], %s3227
      %s3229 = sshll.u32 [#allocation15], 4
      %s3230 = int_to_ptr.vmem [resolvable:$true] %s3229
      %3235 = dma.vmem_to_hbm [thread:$0]  %s3230, 256, %s8, [#allocation6], 128, 128, 8
    $region69: #{tpu_custom_call.1} parent=1 // pred_fallthru
      _
    // Predicated region
    $region70: #{tpu_custom_call.1} parent=1 // pred_check
      _
    $region71: #{tpu_custom_call.1} parent=1 // pred_check_branch
      %3237 = sbr.rel (0) target = $region73
    $region72: #{tpu_custom_call.1} parent=1 // pred_region
      %3238 = dma.done [#allocation6], 256
    $region73: #{tpu_custom_call.1} parent=1 // pred_fallthru
      _
    %3239 = vsyncpa [#allocation5], 1
    %3240 = vsyncpa [#allocation8], 1
    %3241 = vsyncpa [#allocation11], 1
    %3242 = vsyncpa [#allocation14], 1
    %3243 = vsyncpa [#allocation6], 1

</llo_original>
